<compile_context>
chip_gen: v6e
topology: v6e:2x2x1
jax: 0.10.0
libtpu: 0.0.40
codegen_flags: <defaults>
</compile_context>

<pallas_src>
import functools

import jax
import jax.numpy as jnp
from jax import lax
from jax.experimental import pallas as pl
from jax.experimental.pallas import tpu as pltpu

F32 = jnp.float32
BF16 = jnp.bfloat16
EPS = 1e-5


def _pick_vmem_limit():
    try:
        cap = int(getattr(pltpu.get_tpu_info(), "vmem_capacity_bytes", 0) or 0)
        if cap > 0:
            return int(min(max(cap * 3 // 4, 32 << 20), 112 << 20))
    except Exception:
        pass
    return 48 << 20


_VMEM_LIMIT = _pick_vmem_limit()


# ----------------------------------------------------------------------------- helpers
def _ceil_to(x, m):
    return ((x + m - 1) // m) * m


def _tile_dim(dim, pref=512, cap=1024):
    """(tile, padded_dim) for a tiled axis: full dim when small, else `pref`."""
    if dim <= cap:
        return dim, dim
    return pref, _ceil_to(dim, pref)


def _row_tile(m, d, itemsize=4, target=2 << 20, max_tile=512):
    """Row tile for elementwise/LN kernels: ~`target` bytes per (rows, d) block."""
    t = min(max_tile, max(8, target // max(d * itemsize, 1)))
    t = max(8, (t // 8) * 8)
    if m <= t:
        return m, m
    return t, _ceil_to(m, t)


def _chan_tile(c, cap=512):
    """Largest 128-multiple divisor of c that is <= cap, else the full dim."""
    if c <= cap or c % 128 != 0:
        return c
    for t in (512, 384, 256, 128):
        if t <= cap and c % t == 0:
            return t
    return c


def _pad_rows(x, mp):
    m = x.shape[0]
    if mp == m:
        return x
    return jnp.pad(x, ((0, mp - m), (0, 0)))


def _sigmoid(x):
    return 1.0 / (1.0 + jnp.exp(-x))


def _softplus(x):
    return jnp.maximum(x, 0.0) + jnp.log(1.0 + jnp.exp(-jnp.abs(x)))


def _layernorm(x, g, b):
    mu = jnp.mean(x, axis=-1, keepdims=True)
    xc = x - mu
    var = jnp.mean(xc * xc, axis=-1, keepdims=True)
    return xc * lax.rsqrt(var + EPS) * g + b


# ----------------------------------------------------------------------------- tiled matmul (MXU, bf16)
def _matmul_kernel(x_ref, w_ref, o_ref, acc_ref):
    @pl.when(pl.program_id(2) == 0)
    def _():
        acc_ref[...] = jnp.zeros_like(acc_ref)

    acc_ref[...] += jnp.dot(x_ref[...].astype(BF16), w_ref[...].astype(BF16),
                            preferred_element_type=jnp.float32)

    @pl.when(pl.program_id(2) == pl.num_programs(2) - 1)
    def _():
        o_ref[...] = acc_ref[...].astype(o_ref.dtype)


def matmul_bf16(x, w, out_dtype=F32):
    """x (M, K) @ w (K, N).  Tiled (M, N, K) grid, bf16 MXU, f32 accumulator."""
    m, k = x.shape
    _, n = w.shape
    tm, mp = _tile_dim(m, 512, 1024)
    tn, np_ = _tile_dim(n, 512, 1024)
    tk, kp = _tile_dim(k, 512, 1024)
    xp = x if (mp, kp) == (m, k) else jnp.pad(x, ((0, mp - m), (0, kp - k)))
    wp = w if (kp, np_) == (k, n) else jnp.pad(w, ((0, kp - k), (0, np_ - n)))
    out = pl.pallas_call(
        _matmul_kernel,
        out_shape=jax.ShapeDtypeStruct((mp, np_), out_dtype),
        grid=(mp // tm, np_ // tn, kp // tk),
        in_specs=[pl.BlockSpec((tm, tk), lambda i, j, kk: (i, kk)),
                  pl.BlockSpec((tk, tn), lambda i, j, kk: (kk, j))],
        out_specs=pl.BlockSpec((tm, tn), lambda i, j, kk: (i, j)),
        scratch_shapes=[pltpu.VMEM((tm, tn), jnp.float32)],
        compiler_params=pltpu.CompilerParams(
            dimension_semantics=("parallel", "parallel", "arbitrary"),
            vmem_limit_bytes=_VMEM_LIMIT),
    )(xp, wp)
    if (mp, np_) != (m, n):
        out = out[:m, :n]
    return out


# ----------------------------------------------------------------------------- fused GRU gate (z, r, h-candidate)
def _gru_gate_kernel(h_ref, p_ref, wz1, wz2, wr1, wr2, wh1, wh2,
                     bz, gz, btz, br, gr, btr, bh, z_out, h_out):
    hf = h_ref[...]
    pf = p_ref[...]
    h = hf.astype(BF16)
    p = pf.astype(BF16)

    def lin2(a, wa, b, wb, bias):
        # concat([a, b], -1) @ W + bias  ==  a @ W_a + b @ W_b + bias
        return (jnp.dot(a, wa[...], preferred_element_type=jnp.float32)
                + jnp.dot(b, wb[...], preferred_element_type=jnp.float32)
                + bias[...])

    z = _sigmoid(_layernorm(lin2(h, wz1, p, wz2, bz), gz[...], btz[...]))
    r = _sigmoid(_layernorm(lin2(h, wr1, p, wr2, br), gr[...], btr[...]))
    z_out[...] = z
    rp = (r * pf).astype(BF16)
    h_out[...] = lin2(h, wh1, rp, wh2, bh)


def gru_gate(h, pre, gp):
    bsz, seqlen, d = h.shape
    m = bsz * seqlen
    tm, mp = _row_tile(m, d)
    h2 = _pad_rows(h.reshape(m, d), mp)
    p2 = _pad_rows(pre.reshape(m, d), mp)
    row = pl.BlockSpec((tm, d), lambda i: (i, 0))
    wsp = pl.BlockSpec((d, d), lambda i: (0, 0))   # weights resident across the M grid
    vsp = pl.BlockSpec((1, d), lambda i: (0, 0))
    vec = lambda a: a.reshape(1, d)
    z, hn = pl.pallas_call(
        _gru_gate_kernel,
        out_shape=(jax.ShapeDtypeStruct((mp, d), F32),
                   jax.ShapeDtypeStruct((mp, d), F32)),
        grid=(mp // tm,),
        in_specs=[row, row, wsp, wsp, wsp, wsp, wsp, wsp,
                  vsp, vsp, vsp, vsp, vsp, vsp, vsp],
        out_specs=(row, row),
        compiler_params=pltpu.CompilerParams(
            dimension_semantics=("parallel",),
            vmem_limit_bytes=_VMEM_LIMIT),
    )(h2, p2, gp["wz1"], gp["wz2"], gp["wr1"], gp["wr2"], gp["wh1"], gp["wh2"],
      vec(gp["bz"]), vec(gp["gz"]), vec(gp["btz"]),
      vec(gp["br"]), vec(gp["gr"]), vec(gp["btr"]), vec(gp["bh"]))
    if mp != m:
        z, hn = z[:m], hn[:m]
    return z.reshape(bsz, seqlen, d), hn.reshape(bsz, seqlen, d)


# ----------------------------------------------------------------------------- fused add + dual LayerNorm
def _add_dual_ln_kernel(x_ref, r_ref, g1, b1, g2, b2, res_ref, nf_ref, nb_ref):
    s = x_ref[...] + r_ref[...]
    res_ref[...] = s
    mu = jnp.mean(s, axis=-1, keepdims=True)
    xc = s - mu
    var = jnp.mean(xc * xc, axis=-1, keepdims=True)
    xn = xc * lax.rsqrt(var + EPS)
    nf_ref[...] = (xn * g1[...] + b1[...]).astype(nf_ref.dtype)
    nb_ref[...] = (xn * g2[...] + b2[...]).astype(nb_ref.dtype)


def add_dual_layer_norm(x, r, gf, bf, gb, bb):
    """res = x + r (f32);  normed_f = LN_f(res), normed_b = LN_b(res) (bf16)."""
    bsz, seqlen, d = x.shape
    m = bsz * seqlen
    tm, mp = _row_tile(m, d)
    x2 = _pad_rows(x.reshape(m, d), mp)
    r2 = _pad_rows(r.reshape(m, d), mp)
    row = pl.BlockSpec((tm, d), lambda i: (i, 0))
    vsp = pl.BlockSpec((1, d), lambda i: (0, 0))
    res, nf, nb = pl.pallas_call(
        _add_dual_ln_kernel,
        out_shape=(jax.ShapeDtypeStruct((mp, d), F32),
                   jax.ShapeDtypeStruct((mp, d), BF16),
                   jax.ShapeDtypeStruct((mp, d), BF16)),
        grid=(mp // tm,),
        in_specs=[row, row, vsp, vsp, vsp, vsp],
        out_specs=(row, row, row),
        compiler_params=pltpu.CompilerParams(
            dimension_semantics=("parallel",),
            vmem_limit_bytes=_VMEM_LIMIT),
    )(x2, r2, gf.reshape(1, d), bf.reshape(1, d), gb.reshape(1, d), bb.reshape(1, d))
    if mp != m:
        res, nf, nb = res[:m], nf[:m], nb[:m]
    sh = (bsz, seqlen, d)
    return res.reshape(sh), nf.reshape(sh), nb.reshape(sh)


def _add_ln_kernel(x_ref, r_ref, g_ref, b_ref, o_ref):
    s = x_ref[...] + r_ref[...]
    o_ref[...] = _layernorm(s, g_ref[...], b_ref[...])


def add_layer_norm(x, r, g, b):
    bsz, seqlen, d = x.shape
    m = bsz * seqlen
    tm, mp = _row_tile(m, d)
    x2 = _pad_rows(x.reshape(m, d), mp)
    r2 = _pad_rows(r.reshape(m, d), mp)
    row = pl.BlockSpec((tm, d), lambda i: (i, 0))
    vsp = pl.BlockSpec((1, d), lambda i: (0, 0))
    out = pl.pallas_call(
        _add_ln_kernel,
        out_shape=jax.ShapeDtypeStruct((mp, d), F32),
        grid=(mp // tm,),
        in_specs=[row, row, vsp, vsp],
        out_specs=row,
        compiler_params=pltpu.CompilerParams(
            dimension_semantics=("parallel",),
            vmem_limit_bytes=_VMEM_LIMIT),
    )(x2, r2, g.reshape(1, d), b.reshape(1, d))
    if mp != m:
        out = out[:m]
    return out.reshape(bsz, seqlen, d)


# ----------------------------------------------------------------------------- causal depthwise conv + SiLU
def _conv_silu_kernel(xp_ref, w_ref, b_ref, o_ref):
    seqlen = o_ref.shape[0]
    k = w_ref.shape[0]
    w = w_ref[...]                                            # (K, tc) f32
    acc = w[0:1, :] * xp_ref[pl.ds(0, seqlen), :].astype(F32)
    for j in range(1, k):                                     # static unroll over taps
        acc = acc + w[j:j + 1, :] * xp_ref[pl.ds(j, seqlen), :].astype(F32)
    acc = acc + b_ref[...]
    o_ref[...] = (acc * _sigmoid(acc)).astype(o_ref.dtype)    # SiLU


def causal_conv1d_silu(x, w, b, reverse):
    """x: (B, L, C) bf16;  w: (K, C) (= torch conv weight (C,1,K) transposed);  b: (C,).
    reverse=True runs the conv in reversed time (== flip-conv-flip)."""
    bsz, seqlen, c = x.shape
    k = w.shape[0]
    if reverse:
        w = w[::-1]
        xp = jnp.pad(x, ((0, 0), (0, k - 1), (0, 0)))
    else:
        xp = jnp.pad(x, ((0, 0), (k - 1, 0), (0, 0)))
    tc = _chan_tile(c, cap=512)
    # keep per-block footprint modest (full L held per block).
    while tc >= 256 and (seqlen + k) * tc * x.dtype.itemsize > (4 << 20):
        tc //= 2
    return pl.pallas_call(
        _conv_silu_kernel,
        out_shape=jax.ShapeDtypeStruct((bsz, seqlen, c), BF16),
        grid=(bsz, c // tc),
        in_specs=[pl.BlockSpec((None, seqlen + k - 1, tc), lambda bi, ci: (bi, 0, ci)),
                  pl.BlockSpec((k, tc), lambda bi, ci: (0, ci)),
                  pl.BlockSpec((1, tc), lambda bi, ci: (0, ci))],
        out_specs=pl.BlockSpec((None, seqlen, tc), lambda bi, ci: (bi, 0, ci)),
        compiler_params=pltpu.CompilerParams(
            dimension_semantics=("parallel", "parallel"),
            vmem_limit_bytes=_VMEM_LIMIT),
    )(xp, w.astype(F32), b.reshape(1, c).astype(F32))


# ----------------------------------------------------------------------------- selective scan
def _scan_kernel(u_ref, dt_ref, b_ref, c_ref, z_ref, a_ref, d_ref, dtb_ref, o_ref,
                 state_ref, dts_ref, dbu_ref, cb_ref, ys_ref, *, nsteps, reverse):
    n, tc = a_ref.shape

    @pl.when(pl.program_id(2) == 0)
    def _():
        state_ref[...] = jnp.zeros_like(state_ref)

    # ---- chunk-level precompute (vectorized; off the serial critical path) ------------
    dt_sp = _softplus(dt_ref[...].astype(F32) + dtb_ref[...])          # (tl, tc)
    dts_ref[...] = dt_sp
    x = dt_sp * u_ref[...].astype(F32)                                  # x = dt * u
    b32 = b_ref[...].astype(F32)                                        # (tl, n)
    c32 = c_ref[...].astype(F32)                                        # (tl, n)
    dbu_ref[...] = b32[:, :, None] * x[:, None, :]                      # (tl, n, tc)
    cb_ref[...] = jnp.broadcast_to(c32[:, :, None], (nsteps, n, tc))    # (tl, n, tc)

    A = a_ref[...]                                                      # (n, tc)

    # ---- serial recurrence: exp(dt*A)*state + dBu, then C*state via sublane reduce ----
    @pl.loop(0, nsteps)
    def _(t):
        i = (nsteps - 1 - t) if reverse else t
        dt_i = dts_ref[pl.ds(i, 1), :]                                  # (1, tc)
        dA = jnp.exp(dt_i * A)                                          # (n, tc)  EUP
        st = dA * state_ref[...] + dbu_ref[i]                           # VPU
        state_ref[...] = st
        ys_ref[pl.ds(i, 1), :] = jnp.sum(cb_ref[i] * st, axis=0, keepdims=True)

    # ---- vectorized epilogue: (+u*D) * silu(z), one lane-dense store ------------------
    z32 = z_ref[...].astype(F32)
    y = (ys_ref[...] + u_ref[...].astype(F32) * d_ref[...]) * (z32 * _sigmoid(z32))
    o_ref[...] = y.astype(o_ref.dtype)


def selective_scan(u, dt, a_t, bmat, cmat, dvec, z, dt_bias, reverse):
    """u, dt, z: (B, L, d_inner) bf16; bmat, cmat: (B, L, d_state) bf16;
    a_t: (d_state, d_inner) f32.  Returns y: (B, L, d_inner) bf16."""
    bsz, seqlen, d_in = u.shape
    n = a_t.shape[0]
    tl = _ceil_to(seqlen, 8) if seqlen <= 64 else 64
    lp = _ceil_to(seqlen, tl)
    if lp != seqlen:
        pad = ((0, 0), (0, lp - seqlen), (0, 0))
        u, dt, z, bmat, cmat = (jnp.pad(t, pad) for t in (u, dt, z, bmat, cmat))
    nlc = lp // tl
    tc = _chan_tile(d_in, cap=256)
    nci = d_in // tc

    if reverse:
        tmap = lambda b, ci, lc: (b, nlc - 1 - lc, ci)
        nmap = lambda b, ci, lc: (b, nlc - 1 - lc, 0)
    else:
        tmap = lambda b, ci, lc: (b, lc, ci)
        nmap = lambda b, ci, lc: (b, lc, 0)
    cmap = lambda b, ci, lc: (0, ci)

    y = pl.pallas_call(
        functools.partial(_scan_kernel, nsteps=tl, reverse=reverse),
        out_shape=jax.ShapeDtypeStruct((bsz, lp, d_in), BF16),
        grid=(bsz, nci, nlc),
        in_specs=[pl.BlockSpec((None, tl, tc), tmap),   # u
                  pl.BlockSpec((None, tl, tc), tmap),   # dt
                  pl.BlockSpec((None, tl, n), nmap),    # B
                  pl.BlockSpec((None, tl, n), nmap),    # C
                  pl.BlockSpec((None, tl, tc), tmap),   # z (gate)
                  pl.BlockSpec((n, tc), cmap),          # A^T
                  pl.BlockSpec((1, tc), cmap),          # D
                  pl.BlockSpec((1, tc), cmap)],         # dt bias
        out_specs=pl.BlockSpec((None, tl, tc), tmap),
        scratch_shapes=[pltpu.VMEM((n, tc), F32),       # carried state
                        pltpu.VMEM((tl, tc), F32),      # softplus(dt + bias)
                        pltpu.VMEM((tl, n, tc), F32),   # dB * u per step
                        pltpu.VMEM((tl, n, tc), F32),   # C broadcast per step
                        pltpu.VMEM((tl, tc), F32)],     # raw C . state
        compiler_params=pltpu.CompilerParams(
            dimension_semantics=("parallel", "parallel", "arbitrary"),
            vmem_limit_bytes=_VMEM_LIMIT),
    )(u, dt, bmat, cmat, z, a_t,
      dvec.reshape(1, d_in).astype(F32), dt_bias.reshape(1, d_in).astype(F32))
    if lp != seqlen:
        y = y[:, :seqlen, :]
    return y


# ----------------------------------------------------------------------------- fused dual out_proj + average + GRU output gate
def _dual_out_gate_kernel(yf_ref, yb_ref, wf_ref, wb_ref, z_ref, p_ref,
                          h_ref, g_ref, acc_ref):
    @pl.when(pl.program_id(1) == 0)
    def _():
        acc_ref[...] = jnp.zeros_like(acc_ref)

    acc_ref[...] += (jnp.dot(yf_ref[...].astype(BF16), wf_ref[...].astype(BF16),
                             preferred_element_type=jnp.float32)
                     + jnp.dot(yb_ref[...].astype(BF16), wb_ref[...].astype(BF16),
                               preferred_element_type=jnp.float32))

    @pl.when(pl.program_id(1) == pl.num_programs(1) - 1)
    def _():
        h = acc_ref[...] * 0.5
        z = z_ref[...]
        h_ref[...] = h
        g_ref[...] = (1.0 - z) * h + z * p_ref[...]


def dual_out_gate(y_f, y_b, w_f, w_b, z, pre):
    """hidden = (y_f @ W_f + y_b @ W_b) / 2;  gated = (1-z)*hidden + z*pre."""
    bsz, seqlen, d_model = z.shape
    m, k = y_f.shape
    tm, mp = _tile_dim(m, 512, 1024)
    tk, kp = _tile_dim(k, 512, 1024)

    def pad_cols(a):
        return a if kp == k else jnp.pad(a, ((0, 0), (0, kp - k)))

    def pad_w(wm):
        return wm if kp == k else jnp.pad(wm, ((0, kp - k), (0, 0)))

    yf = _pad_rows(pad_cols(y_f), mp)
    yb = _pad_rows(pad_cols(y_b), mp)
    z2 = _pad_rows(z.reshape(m, d_model), mp)
    p2 = _pad_rows(pre.reshape(m, d_model), mp)
    rowd = pl.BlockSpec((tm, d_model), lambda i, kk: (i, 0))
    h, g = pl.pallas_call(
        _dual_out_gate_kernel,
        out_shape=(jax.ShapeDtypeStruct((mp, d_model), F32),
                   jax.ShapeDtypeStruct((mp, d_model), F32)),
        grid=(mp // tm, kp // tk),
        in_specs=[pl.BlockSpec((tm, tk), lambda i, kk: (i, kk)),
                  pl.BlockSpec((tm, tk), lambda i, kk: (i, kk)),
                  pl.BlockSpec((tk, d_model), lambda i, kk: (kk, 0)),
                  pl.BlockSpec((tk, d_model), lambda i, kk: (kk, 0)),
                  rowd, rowd],
        out_specs=(rowd, rowd),
        scratch_shapes=[pltpu.VMEM((tm, d_model), F32)],
        compiler_params=pltpu.CompilerParams(
            dimension_semantics=("parallel", "arbitrary"),
            vmem_limit_bytes=_VMEM_LIMIT),
    )(yf, yb, pad_w(w_f), pad_w(w_b), z2, p2)
    if mp != m:
        h, g = h[:m], g[:m]
    sh = (bsz, seqlen, d_model)
    return h.reshape(sh), g.reshape(sh)


# ----------------------------------------------------------------------------- model glue
def mamba_inner(mp, xn, reverse):
    """xn: (B, L, d_model) bf16 (pre-normed).  Returns y: (B*L, d_inner) bf16
    (everything up to but not including out_proj, which is fused into dual_out_gate)."""
    bsz, seqlen, d_model = xn.shape
    d_inner = mp["in_proj_w"].shape[1] // 2
    dt_rank = mp["dt_proj_w"].shape[0]
    n = mp["A_log"].shape[1]
    m = bsz * seqlen

    xz = matmul_bf16(xn.reshape(m, d_model), mp["in_proj_w"], out_dtype=BF16)
    xr = xz[:, :d_inner].reshape(bsz, seqlen, d_inner)
    zg = xz[:, d_inner:].reshape(bsz, seqlen, d_inner)

    xc = causal_conv1d_silu(xr, mp["conv_w"], mp["conv_b"], reverse)           # bf16

    # single lane-dense x-projection (dt_low | B | C), then the dt up-projection.
    xdbl = matmul_bf16(xc.reshape(m, d_inner), mp["x_proj_w"], out_dtype=BF16)
    dt_low = xdbl[:, :dt_rank]
    bmat = xdbl[:, dt_rank:dt_rank + n].reshape(bsz, seqlen, n)
    cmat = xdbl[:, dt_rank + n:dt_rank + 2 * n].reshape(bsz, seqlen, n)
    dt2 = matmul_bf16(dt_low, mp["dt_proj_w"], out_dtype=BF16)
    dt2 = dt2.reshape(bsz, seqlen, d_inner)

    a_t = (-jnp.exp(mp["A_log"].astype(F32))).T                                # (n, d_inner)
    y = selective_scan(xc, dt2, a_t, bmat, cmat, mp["D"], zg, mp["dt_proj_b"],
                       reverse)
    return y.reshape(m, d_inner)


def mixer_model_forward(params, hidden, pre_hidden_states_list=None):
    residual = None
    hidden_states_list = []
    n_pairs = len(params["layers"]) // 2
    for i in range(n_pairs):
        pre = (pre_hidden_states_list[i] if pre_hidden_states_list is not None
               else jnp.zeros_like(hidden))
        z, hmix = gru_gate(hidden, pre, params["gru"][i])

        lf = params["layers"][2 * i]
        lb = params["layers"][2 * i + 1]
        # flip-free bidirectional pair: residual_b == flip(residual_f), so the averaged
        # residual collapses to res_f and the backward pre-norm is LN_b of the same sum;
        # direction-sensitive ops (conv, scan) run time-reversed via index_maps.
        r_in = residual if residual is not None else jnp.zeros_like(hmix)
        res, normed_f, normed_b = add_dual_layer_norm(
            hmix, r_in, lf["norm_g"], lf["norm_b"], lb["norm_g"], lb["norm_b"])

        y_f = mamba_inner(lf["mamba"], normed_f, reverse=False)
        y_b = mamba_inner(lb["mamba"], normed_b, reverse=True)

        hidden, gated = dual_out_gate(y_f, y_b,
                                      lf["mamba"]["out_proj_w"],
                                      lb["mamba"]["out_proj_w"], z, pre)
        residual = res
        hidden_states_list.append(gated)

    r_in = residual if residual is not None else jnp.zeros_like(hidden)
    hidden = add_layer_norm(hidden, r_in, params["norm_f_g"], params["norm_f_b"])
    return hidden, hidden_states_list


# ----------------------------------------------------------------------------- params
def init_params(key, d_model, n_layer, d_state=16, d_conv=4, expand=2):
    d_inner = expand * d_model
    dt_rank = -(-d_model // 16)
    keys = iter(jax.random.split(key, 9 * n_layer + 8))

    def nrm(shape, scale=0.02, dtype=F32):
        return (scale * jax.random.normal(next(keys), shape, dtype=F32)).astype(dtype)

    xproj_n = dt_rank + 2 * d_state
    xproj_pad = _ceil_to(xproj_n, 128)

    layers = []
    for _ in range(n_layer):
        x_proj_w = nrm((d_inner, xproj_n), dtype=BF16)
        if xproj_pad != xproj_n:
            x_proj_w = jnp.pad(x_proj_w, ((0, 0), (0, xproj_pad - xproj_n)))
        layers.append({
            "norm_g": jnp.ones((d_model,), F32),
            "norm_b": jnp.zeros((d_model,), F32),
            "mamba": {
                "in_proj_w": nrm((d_model, 2 * d_inner), dtype=BF16),
                "conv_w": nrm((d_conv, d_inner)),
                "conv_b": nrm((d_inner,)),
                "x_proj_w": x_proj_w,                       # [dt_low | B | C], lane-padded
                "dt_proj_w": nrm((dt_rank, d_inner), dtype=BF16),
                "dt_proj_b": jnp.log(jnp.expm1(
                    jnp.linspace(1e-3, 1e-1, d_inner, dtype=F32))),
                "A_log": jnp.log(jnp.broadcast_to(
                    jnp.arange(1, d_state + 1, dtype=F32), (d_inner, d_state))),
                "D": jnp.ones((d_inner,), F32),
                "out_proj_w": nrm((d_inner, d_model), dtype=BF16),
            },
        })
    grus = []
    for _ in range(n_layer // 2):
        grus.append({
            "wz1": nrm((d_model, d_model), dtype=BF16),
            "wz2": nrm((d_model, d_model), dtype=BF16),
            "wr1": nrm((d_model, d_model), dtype=BF16),
            "wr2": nrm((d_model, d_model), dtype=BF16),
            "wh1": nrm((d_model, d_model), dtype=BF16),
            "wh2": nrm((d_model, d_model), dtype=BF16),
            "bz": jnp.zeros((d_model,), F32),
            "gz": jnp.ones((d_model,), F32),
            "btz": jnp.zeros((d_model,), F32),
            "br": jnp.zeros((d_model,), F32),
            "gr": jnp.ones((d_model,), F32),
            "btr": jnp.zeros((d_model,), F32),
            "bh": jnp.zeros((d_model,), F32),
        })
    return {"layers": layers, "gru": grus,
            "norm_f_g": jnp.ones((d_model,), F32),
            "norm_f_b": jnp.zeros((d_model,), F32)}


# ----------------------------------------------------------------------------- main
if __name__ == "__main__":
    d_model, n_layer = 32, 2
    batch, seqlen = 2, 8

    key = jax.random.PRNGKey(0)
    pkey, xkey = jax.random.split(key)
    params = init_params(pkey, d_model, n_layer)
    x = jax.random.normal(xkey, (batch, seqlen, d_model), dtype=F32)

    fwd = jax.jit(functools.partial(mixer_model_forward, params))
    out, hs_list = fwd(x)
    out = jax.block_until_ready(out)
    for h in hs_list:
        jax.block_until_ready(h)

    assert out.shape == (batch, seqlen, d_model)
    assert len(hs_list) == n_layer // 2
    assert bool(jnp.all(jnp.isfinite(out)))
    print("KERNEL_OK")
</pallas_src>

<mosaic_0001>
module attributes {stable_mosaic.version = 11 : i64} {
  func.func @_add_dual_ln_kernel(%arg0: i32, %arg1: memref<16x32xf32, #tpu.memory_space<vmem>>, %arg2: memref<16x32xf32, #tpu.memory_space<vmem>>, %arg3: memref<1x32xf32, #tpu.memory_space<vmem>>, %arg4: memref<1x32xf32, #tpu.memory_space<vmem>>, %arg5: memref<1x32xf32, #tpu.memory_space<vmem>>, %arg6: memref<1x32xf32, #tpu.memory_space<vmem>>, %arg7: memref<16x32xf32, #tpu.memory_space<vmem>>, %arg8: memref<16x32xbf16, #tpu.memory_space<vmem>>, %arg9: memref<16x32xbf16, #tpu.memory_space<vmem>>) attributes {dimension_semantics = [#tpu.dimension_semantics<parallel>], iteration_bounds = array<i64: 1>, scalar_prefetch = 0 : i64, scratch_operands = 0 : i64, tpu.core_type = #tpu.core_type<tc>, window_params = [{transform_indices = @transform_0, window_bounds = array<i64: 16, 32>}, {transform_indices = @transform_1, window_bounds = array<i64: 16, 32>}, {pipeline_mode = #tpu.pipeline_mode<synchronous>, transform_indices = @transform_2, window_bounds = array<i64: 1, 32>}, {pipeline_mode = #tpu.pipeline_mode<synchronous>, transform_indices = @transform_3, window_bounds = array<i64: 1, 32>}, {pipeline_mode = #tpu.pipeline_mode<synchronous>, transform_indices = @transform_4, window_bounds = array<i64: 1, 32>}, {pipeline_mode = #tpu.pipeline_mode<synchronous>, transform_indices = @transform_5, window_bounds = array<i64: 1, 32>}, {transform_indices = @transform_6, window_bounds = array<i64: 16, 32>}, {transform_indices = @transform_7, window_bounds = array<i64: 16, 32>}, {transform_indices = @transform_8, window_bounds = array<i64: 16, 32>}]} {
    %c0 = arith.constant 0 : index
    %c0_0 = arith.constant 0 : index
    %0 = vector.load %arg1[%c0, %c0_0] : memref<16x32xf32, #tpu.memory_space<vmem>>, vector<16x32xf32>
    %c0_1 = arith.constant 0 : index
    %c0_2 = arith.constant 0 : index
    %1 = vector.load %arg2[%c0_1, %c0_2] : memref<16x32xf32, #tpu.memory_space<vmem>>, vector<16x32xf32>
    %2 = arith.addf %0, %1 : vector<16x32xf32>
    %c0_3 = arith.constant 0 : index
    %c0_4 = arith.constant 0 : index
    %3 = vector.load %arg7[%c0_3, %c0_4] : memref<16x32xf32, #tpu.memory_space<vmem>>, vector<16x32xf32>
    tpu.vector_store %arg7[%c0_3, %c0_4], %2 {strides = array<i32>} : memref<16x32xf32, #tpu.memory_space<vmem>>, vector<16x32xf32>,
    %cst = arith.constant dense<0.000000e+00> : vector<16xf32>
    %4 = vector.multi_reduction <add>, %2, %cst [1] : vector<16x32xf32> to vector<16xf32>
    %5 = vector.shape_cast %4 : vector<16xf32> to vector<16x1xf32>
    %cst_5 = arith.constant 3.200000e+01 : f32
    %6 = vector.broadcast %cst_5 : f32 to vector<16x1xf32>
    %7 = arith.divf %5, %6 : vector<16x1xf32>
    %8 = vector.broadcast %7 : vector<16x1xf32> to vector<16x32xf32>
    %9 = arith.subf %2, %8 : vector<16x32xf32>
    %10 = arith.mulf %9, %9 : vector<16x32xf32>
    %cst_6 = arith.constant dense<0.000000e+00> : vector<16xf32>
    %11 = vector.multi_reduction <add>, %10, %cst_6 [1] : vector<16x32xf32> to vector<16xf32>
    %12 = vector.shape_cast %11 : vector<16xf32> to vector<16x1xf32>
    %cst_7 = arith.constant 3.200000e+01 : f32
    %13 = vector.broadcast %cst_7 : f32 to vector<16x1xf32>
    %14 = arith.divf %12, %13 : vector<16x1xf32>
    %cst_8 = arith.constant 9.99999974E-6 : f32
    %15 = vector.broadcast %cst_8 : f32 to vector<16x1xf32>
    %16 = arith.addf %14, %15 : vector<16x1xf32>
    %17 = math.rsqrt %16 : vector<16x1xf32>
    %18 = vector.broadcast %17 : vector<16x1xf32> to vector<16x32xf32>
    %19 = arith.mulf %9, %18 : vector<16x32xf32>
    %c0_9 = arith.constant 0 : index
    %c0_10 = arith.constant 0 : index
    %20 = vector.load %arg3[%c0_9, %c0_10] : memref<1x32xf32, #tpu.memory_space<vmem>>, vector<1x32xf32>
    %21 = vector.broadcast %20 : vector<1x32xf32> to vector<16x32xf32>
    %22 = arith.mulf %19, %21 : vector<16x32xf32>
    %c0_11 = arith.constant 0 : index
    %c0_12 = arith.constant 0 : index
    %23 = vector.load %arg4[%c0_11, %c0_12] : memref<1x32xf32, #tpu.memory_space<vmem>>, vector<1x32xf32>
    %24 = vector.broadcast %23 : vector<1x32xf32> to vector<16x32xf32>
    %25 = arith.addf %22, %24 : vector<16x32xf32>
    %26 = arith.truncf %25 : vector<16x32xf32> to vector<16x32xbf16>
    %c0_13 = arith.constant 0 : index
    %c0_14 = arith.constant 0 : index
    %27 = vector.load %arg8[%c0_13, %c0_14] : memref<16x32xbf16, #tpu.memory_space<vmem>>, vector<16x32xbf16>
    tpu.vector_store %arg8[%c0_13, %c0_14], %26 {strides = array<i32>} : memref<16x32xbf16, #tpu.memory_space<vmem>>, vector<16x32xbf16>,
    %c0_15 = arith.constant 0 : index
    %c0_16 = arith.constant 0 : index
    %28 = vector.load %arg5[%c0_15, %c0_16] : memref<1x32xf32, #tpu.memory_space<vmem>>, vector<1x32xf32>
    %29 = vector.broadcast %28 : vector<1x32xf32> to vector<16x32xf32>
    %30 = arith.mulf %19, %29 : vector<16x32xf32>
    %c0_17 = arith.constant 0 : index
    %c0_18 = arith.constant 0 : index
    %31 = vector.load %arg6[%c0_17, %c0_18] : memref<1x32xf32, #tpu.memory_space<vmem>>, vector<1x32xf32>
    %32 = vector.broadcast %31 : vector<1x32xf32> to vector<16x32xf32>
    %33 = arith.addf %30, %32 : vector<16x32xf32>
    %34 = arith.truncf %33 : vector<16x32xf32> to vector<16x32xbf16>
    %c0_19 = arith.constant 0 : index
    %c0_20 = arith.constant 0 : index
    %35 = vector.load %arg9[%c0_19, %c0_20] : memref<16x32xbf16, #tpu.memory_space<vmem>>, vector<16x32xbf16>
    tpu.vector_store %arg9[%c0_19, %c0_20], %34 {strides = array<i32>} : memref<16x32xbf16, #tpu.memory_space<vmem>>, vector<16x32xbf16>,
    return
  }
  func.func @transform_0(%arg0: i32) -> (i32, i32) {
    %c0_i32 = arith.constant 0 : i32
    %c0_i32_0 = arith.constant 0 : i32
    return %arg0, %c0_i32 : i32, i32
  }
  func.func @transform_1(%arg0: i32) -> (i32, i32) {
    %c0_i32 = arith.constant 0 : i32
    %c0_i32_0 = arith.constant 0 : i32
    return %arg0, %c0_i32 : i32, i32
  }
  func.func @transform_2(%arg0: i32) -> (i32, i32) {
    %c0_i32 = arith.constant 0 : i32
    %c0_i32_0 = arith.constant 0 : i32
    %c0_i32_1 = arith.constant 0 : i32
    return %c0_i32, %c0_i32_0 : i32, i32
  }
  func.func @transform_3(%arg0: i32) -> (i32, i32) {
    %c0_i32 = arith.constant 0 : i32
    %c0_i32_0 = arith.constant 0 : i32
    %c0_i32_1 = arith.constant 0 : i32
    return %c0_i32, %c0_i32_0 : i32, i32
  }
  func.func @transform_4(%arg0: i32) -> (i32, i32) {
    %c0_i32 = arith.constant 0 : i32
    %c0_i32_0 = arith.constant 0 : i32
    %c0_i32_1 = arith.constant 0 : i32
    return %c0_i32, %c0_i32_0 : i32, i32
  }
  func.func @transform_5(%arg0: i32) -> (i32, i32) {
    %c0_i32 = arith.constant 0 : i32
    %c0_i32_0 = arith.constant 0 : i32
    %c0_i32_1 = arith.constant 0 : i32
    return %c0_i32, %c0_i32_0 : i32, i32
  }
  func.func @transform_6(%arg0: i32) -> (i32, i32) {
    %c0_i32 = arith.constant 0 : i32
    %c0_i32_0 = arith.constant 0 : i32
    return %arg0, %c0_i32 : i32, i32
  }
  func.func @transform_7(%arg0: i32) -> (i32, i32) {
    %c0_i32 = arith.constant 0 : i32
    %c0_i32_0 = arith.constant 0 : i32
    return %arg0, %c0_i32 : i32, i32
  }
  func.func @transform_8(%arg0: i32) -> (i32, i32) {
    %c0_i32 = arith.constant 0 : i32
    %c0_i32_0 = arith.constant 0 : i32
    return %arg0, %c0_i32 : i32, i32
  }
}

module attributes {stable_mosaic.version = 11 : i64} {
  func.func @_gru_gate_kernel(%arg0: i32, %arg1: memref<16x32xf32, #tpu.memory_space<vmem>>, %arg2: memref<16x32xf32, #tpu.memory_space<vmem>>, %arg3: memref<32x32xbf16, #tpu.memory_space<vmem>>, %arg4: memref<32x32xbf16, #tpu.memory_space<vmem>>, %arg5: memref<32x32xbf16, #tpu.memory_space<vmem>>, %arg6: memref<32x32xbf16, #tpu.memory_space<vmem>>, %arg7: memref<32x32xbf16, #tpu.memory_space<vmem>>, %arg8: memref<32x32xbf16, #tpu.memory_space<vmem>>, %arg9: memref<1x32xf32, #tpu.memory_space<vmem>>, %arg10: memref<1x32xf32, #tpu.memory_space<vmem>>, %arg11: memref<1x32xf32, #tpu.memory_space<vmem>>, %arg12: memref<1x32xf32, #tpu.memory_space<vmem>>, %arg13: memref<1x32xf32, #tpu.memory_space<vmem>>, %arg14: memref<1x32xf32, #tpu.memory_space<vmem>>, %arg15: memref<1x32xf32, #tpu.memory_space<vmem>>, %arg16: memref<16x32xf32, #tpu.memory_space<vmem>>, %arg17: memref<16x32xf32, #tpu.memory_space<vmem>>) attributes {dimension_semantics = [#tpu.dimension_semantics<parallel>], iteration_bounds = array<i64: 1>, scalar_prefetch = 0 : i64, scratch_operands = 0 : i64, tpu.core_type = #tpu.core_type<tc>, window_params = [{transform_indices = @transform_0, window_bounds = array<i64: 16, 32>}, {transform_indices = @transform_1, window_bounds = array<i64: 16, 32>}, {pipeline_mode = #tpu.pipeline_mode<synchronous>, transform_indices = @transform_2, window_bounds = array<i64: 32, 32>}, {pipeline_mode = #tpu.pipeline_mode<synchronous>, transform_indices = @transform_3, window_bounds = array<i64: 32, 32>}, {pipeline_mode = #tpu.pipeline_mode<synchronous>, transform_indices = @transform_4, window_bounds = array<i64: 32, 32>}, {pipeline_mode = #tpu.pipeline_mode<synchronous>, transform_indices = @transform_5, window_bounds = array<i64: 32, 32>}, {pipeline_mode = #tpu.pipeline_mode<synchronous>, transform_indices = @transform_6, window_bounds = array<i64: 32, 32>}, {pipeline_mode = #tpu.pipeline_mode<synchronous>, transform_indices = @transform_7, window_bounds = array<i64: 32, 32>}, {pipeline_mode = #tpu.pipeline_mode<synchronous>, transform_indices = @transform_8, window_bounds = array<i64: 1, 32>}, {pipeline_mode = #tpu.pipeline_mode<synchronous>, transform_indices = @transform_9, window_bounds = array<i64: 1, 32>}, {pipeline_mode = #tpu.pipeline_mode<synchronous>, transform_indices = @transform_10, window_bounds = array<i64: 1, 32>}, {pipeline_mode = #tpu.pipeline_mode<synchronous>, transform_indices = @transform_11, window_bounds = array<i64: 1, 32>}, {pipeline_mode = #tpu.pipeline_mode<synchronous>, transform_indices = @transform_12, window_bounds = array<i64: 1, 32>}, {pipeline_mode = #tpu.pipeline_mode<synchronous>, transform_indices = @transform_13, window_bounds = array<i64: 1, 32>}, {pipeline_mode = #tpu.pipeline_mode<synchronous>, transform_indices = @transform_14, window_bounds = array<i64: 1, 32>}, {transform_indices = @transform_15, window_bounds = array<i64: 16, 32>}, {transform_indices = @transform_16, window_bounds = array<i64: 16, 32>}]} {
    %c0 = arith.constant 0 : index
    %c0_0 = arith.constant 0 : index
    %0 = vector.load %arg1[%c0, %c0_0] : memref<16x32xf32, #tpu.memory_space<vmem>>, vector<16x32xf32>
    %c0_1 = arith.constant 0 : index
    %c0_2 = arith.constant 0 : index
    %1 = vector.load %arg2[%c0_1, %c0_2] : memref<16x32xf32, #tpu.memory_space<vmem>>, vector<16x32xf32>
    %2 = arith.truncf %0 : vector<16x32xf32> to vector<16x32xbf16>
    %3 = arith.truncf %1 : vector<16x32xf32> to vector<16x32xbf16>
    %c0_3 = arith.constant 0 : index
    %c0_4 = arith.constant 0 : index
    %4 = vector.load %arg3[%c0_3, %c0_4] : memref<32x32xbf16, #tpu.memory_space<vmem>>, vector<32x32xbf16>
    %cst = arith.constant dense<0.000000e+00> : vector<16x32xf32>
    %5 = tpu.matmul %2, %4, %cst {dimension_numbers = #tpu.dot_dimension_numbers<[1], [0], [0], [1], [0, 0, 1, 1], [], []>} : vector<16x32xbf16>, vector<32x32xbf16>, vector<16x32xf32> -> vector<16x32xf32>
    %c0_5 = arith.constant 0 : index
    %c0_6 = arith.constant 0 : index
    %6 = vector.load %arg4[%c0_5, %c0_6] : memref<32x32xbf16, #tpu.memory_space<vmem>>, vector<32x32xbf16>
    %cst_7 = arith.constant dense<0.000000e+00> : vector<16x32xf32>
    %7 = tpu.matmul %3, %6, %cst_7 {dimension_numbers = #tpu.dot_dimension_numbers<[1], [0], [0], [1], [0, 0, 1, 1], [], []>} : vector<16x32xbf16>, vector<32x32xbf16>, vector<16x32xf32> -> vector<16x32xf32>
    %8 = arith.addf %5, %7 : vector<16x32xf32>
    %c0_8 = arith.constant 0 : index
    %c0_9 = arith.constant 0 : index
    %9 = vector.load %arg9[%c0_8, %c0_9] : memref<1x32xf32, #tpu.memory_space<vmem>>, vector<1x32xf32>
    %10 = vector.broadcast %9 : vector<1x32xf32> to vector<16x32xf32>
    %11 = arith.addf %8, %10 : vector<16x32xf32>
    %c0_10 = arith.constant 0 : index
    %c0_11 = arith.constant 0 : index
    %12 = vector.load %arg10[%c0_10, %c0_11] : memref<1x32xf32, #tpu.memory_space<vmem>>, vector<1x32xf32>
    %c0_12 = arith.constant 0 : index
    %c0_13 = arith.constant 0 : index
    %13 = vector.load %arg11[%c0_12, %c0_13] : memref<1x32xf32, #tpu.memory_space<vmem>>, vector<1x32xf32>
    %cst_14 = arith.constant dense<0.000000e+00> : vector<16xf32>
    %14 = vector.multi_reduction <add>, %11, %cst_14 [1] : vector<16x32xf32> to vector<16xf32>
    %15 = vector.shape_cast %14 : vector<16xf32> to vector<16x1xf32>
    %cst_15 = arith.constant 3.200000e+01 : f32
    %16 = vector.broadcast %cst_15 : f32 to vector<16x1xf32>
    %17 = arith.divf %15, %16 : vector<16x1xf32>
    %18 = vector.broadcast %17 : vector<16x1xf32> to vector<16x32xf32>
    %19 = arith.subf %11, %18 : vector<16x32xf32>
    %20 = arith.mulf %19, %19 : vector<16x32xf32>
    %cst_16 = arith.constant dense<0.000000e+00> : vector<16xf32>
    %21 = vector.multi_reduction <add>, %20, %cst_16 [1] : vector<16x32xf32> to vector<16xf32>
    %22 = vector.shape_cast %21 : vector<16xf32> to vector<16x1xf32>
    %cst_17 = arith.constant 3.200000e+01 : f32
    %23 = vector.broadcast %cst_17 : f32 to vector<16x1xf32>
    %24 = arith.divf %22, %23 : vector<16x1xf32>
    %cst_18 = arith.constant 9.99999974E-6 : f32
    %25 = vector.broadcast %cst_18 : f32 to vector<16x1xf32>
    %26 = arith.addf %24, %25 : vector<16x1xf32>
    %27 = math.rsqrt %26 : vector<16x1xf32>
    %28 = vector.broadcast %27 : vector<16x1xf32> to vector<16x32xf32>
    %29 = arith.mulf %19, %28 : vector<16x32xf32>
    %30 = vector.broadcast %12 : vector<1x32xf32> to vector<16x32xf32>
    %31 = arith.mulf %29, %30 : vector<16x32xf32>
    %32 = vector.broadcast %13 : vector<1x32xf32> to vector<16x32xf32>
    %33 = arith.addf %31, %32 : vector<16x32xf32>
    %cst_19 = arith.constant 0.000000e+00 : f32
    %34 = vector.broadcast %cst_19 : f32 to vector<16x32xf32>
    %35 = arith.subf %34, %33 : vector<16x32xf32>
    %36 = math.exp %35 : vector<16x32xf32>
    %cst_20 = arith.constant 1.000000e+00 : f32
    %37 = vector.broadcast %cst_20 : f32 to vector<16x32xf32>
    %38 = arith.addf %37, %36 : vector<16x32xf32>
    %cst_21 = arith.constant 1.000000e+00 : f32
    %39 = vector.broadcast %cst_21 : f32 to vector<16x32xf32>
    %40 = arith.divf %39, %38 : vector<16x32xf32>
    %c0_22 = arith.constant 0 : index
    %c0_23 = arith.constant 0 : index
    %41 = vector.load %arg5[%c0_22, %c0_23] : memref<32x32xbf16, #tpu.memory_space<vmem>>, vector<32x32xbf16>
    %cst_24 = arith.constant dense<0.000000e+00> : vector<16x32xf32>
    %42 = tpu.matmul %2, %41, %cst_24 {dimension_numbers = #tpu.dot_dimension_numbers<[1], [0], [0], [1], [0, 0, 1, 1], [], []>} : vector<16x32xbf16>, vector<32x32xbf16>, vector<16x32xf32> -> vector<16x32xf32>
    %c0_25 = arith.constant 0 : index
    %c0_26 = arith.constant 0 : index
    %43 = vector.load %arg6[%c0_25, %c0_26] : memref<32x32xbf16, #tpu.memory_space<vmem>>, vector<32x32xbf16>
    %cst_27 = arith.constant dense<0.000000e+00> : vector<16x32xf32>
    %44 = tpu.matmul %3, %43, %cst_27 {dimension_numbers = #tpu.dot_dimension_numbers<[1], [0], [0], [1], [0, 0, 1, 1], [], []>} : vector<16x32xbf16>, vector<32x32xbf16>, vector<16x32xf32> -> vector<16x32xf32>
    %45 = arith.addf %42, %44 : vector<16x32xf32>
    %c0_28 = arith.constant 0 : index
    %c0_29 = arith.constant 0 : index
    %46 = vector.load %arg12[%c0_28, %c0_29] : memref<1x32xf32, #tpu.memory_space<vmem>>, vector<1x32xf32>
    %47 = vector.broadcast %46 : vector<1x32xf32> to vector<16x32xf32>
    %48 = arith.addf %45, %47 : vector<16x32xf32>
    %c0_30 = arith.constant 0 : index
    %c0_31 = arith.constant 0 : index
    %49 = vector.load %arg13[%c0_30, %c0_31] : memref<1x32xf32, #tpu.memory_space<vmem>>, vector<1x32xf32>
    %c0_32 = arith.constant 0 : index
    %c0_33 = arith.constant 0 : index
    %50 = vector.load %arg14[%c0_32, %c0_33] : memref<1x32xf32, #tpu.memory_space<vmem>>, vector<1x32xf32>
    %cst_34 = arith.constant dense<0.000000e+00> : vector<16xf32>
    %51 = vector.multi_reduction <add>, %48, %cst_34 [1] : vector<16x32xf32> to vector<16xf32>
    %52 = vector.shape_cast %51 : vector<16xf32> to vector<16x1xf32>
    %cst_35 = arith.constant 3.200000e+01 : f32
    %53 = vector.broadcast %cst_35 : f32 to vector<16x1xf32>
    %54 = arith.divf %52, %53 : vector<16x1xf32>
    %55 = vector.broadcast %54 : vector<16x1xf32> to vector<16x32xf32>
    %56 = arith.subf %48, %55 : vector<16x32xf32>
    %57 = arith.mulf %56, %56 : vector<16x32xf32>
    %cst_36 = arith.constant dense<0.000000e+00> : vector<16xf32>
    %58 = vector.multi_reduction <add>, %57, %cst_36 [1] : vector<16x32xf32> to vector<16xf32>
    %59 = vector.shape_cast %58 : vector<16xf32> to vector<16x1xf32>
    %cst_37 = arith.constant 3.200000e+01 : f32
    %60 = vector.broadcast %cst_37 : f32 to vector<16x1xf32>
    %61 = arith.divf %59, %60 : vector<16x1xf32>
    %cst_38 = arith.constant 9.99999974E-6 : f32
    %62 = vector.broadcast %cst_38 : f32 to vector<16x1xf32>
    %63 = arith.addf %61, %62 : vector<16x1xf32>
    %64 = math.rsqrt %63 : vector<16x1xf32>
    %65 = vector.broadcast %64 : vector<16x1xf32> to vector<16x32xf32>
    %66 = arith.mulf %56, %65 : vector<16x32xf32>
    %67 = vector.broadcast %49 : vector<1x32xf32> to vector<16x32xf32>
    %68 = arith.mulf %66, %67 : vector<16x32xf32>
    %69 = vector.broadcast %50 : vector<1x32xf32> to vector<16x32xf32>
    %70 = arith.addf %68, %69 : vector<16x32xf32>
    %cst_39 = arith.constant 0.000000e+00 : f32
    %71 = vector.broadcast %cst_39 : f32 to vector<16x32xf32>
    %72 = arith.subf %71, %70 : vector<16x32xf32>
    %73 = math.exp %72 : vector<16x32xf32>
    %cst_40 = arith.constant 1.000000e+00 : f32
    %74 = vector.broadcast %cst_40 : f32 to vector<16x32xf32>
    %75 = arith.addf %74, %73 : vector<16x32xf32>
    %cst_41 = arith.constant 1.000000e+00 : f32
    %76 = vector.broadcast %cst_41 : f32 to vector<16x32xf32>
    %77 = arith.divf %76, %75 : vector<16x32xf32>
    %c0_42 = arith.constant 0 : index
    %c0_43 = arith.constant 0 : index
    %78 = vector.load %arg16[%c0_42, %c0_43] : memref<16x32xf32, #tpu.memory_space<vmem>>, vector<16x32xf32>
    tpu.vector_store %arg16[%c0_42, %c0_43], %40 {strides = array<i32>} : memref<16x32xf32, #tpu.memory_space<vmem>>, vector<16x32xf32>,
    %79 = arith.mulf %77, %1 : vector<16x32xf32>
    %80 = arith.truncf %79 : vector<16x32xf32> to vector<16x32xbf16>
    %c0_44 = arith.constant 0 : index
    %c0_45 = arith.constant 0 : index
    %81 = vector.load %arg7[%c0_44, %c0_45] : memref<32x32xbf16, #tpu.memory_space<vmem>>, vector<32x32xbf16>
    %cst_46 = arith.constant dense<0.000000e+00> : vector<16x32xf32>
    %82 = tpu.matmul %2, %81, %cst_46 {dimension_numbers = #tpu.dot_dimension_numbers<[1], [0], [0], [1], [0, 0, 1, 1], [], []>} : vector<16x32xbf16>, vector<32x32xbf16>, vector<16x32xf32> -> vector<16x32xf32>
    %c0_47 = arith.constant 0 : index
    %c0_48 = arith.constant 0 : index
    %83 = vector.load %arg8[%c0_47, %c0_48] : memref<32x32xbf16, #tpu.memory_space<vmem>>, vector<32x32xbf16>
    %cst_49 = arith.constant dense<0.000000e+00> : vector<16x32xf32>
    %84 = tpu.matmul %80, %83, %cst_49 {dimension_numbers = #tpu.dot_dimension_numbers<[1], [0], [0], [1], [0, 0, 1, 1], [], []>} : vector<16x32xbf16>, vector<32x32xbf16>, vector<16x32xf32> -> vector<16x32xf32>
    %85 = arith.addf %82, %84 : vector<16x32xf32>
    %c0_50 = arith.constant 0 : index
    %c0_51 = arith.constant 0 : index
    %86 = vector.load %arg15[%c0_50, %c0_51] : memref<1x32xf32, #tpu.memory_space<vmem>>, vector<1x32xf32>
    %87 = vector.broadcast %86 : vector<1x32xf32> to vector<16x32xf32>
    %88 = arith.addf %85, %87 : vector<16x32xf32>
    %c0_52 = arith.constant 0 : index
    %c0_53 = arith.constant 0 : index
    %89 = vector.load %arg17[%c0_52, %c0_53] : memref<16x32xf32, #tpu.memory_space<vmem>>, vector<16x32xf32>
    tpu.vector_store %arg17[%c0_52, %c0_53], %88 {strides = array<i32>} : memref<16x32xf32, #tpu.memory_space<vmem>>, vector<16x32xf32>,
    return
  }
  func.func @transform_0(%arg0: i32) -> (i32, i32) {
    %c0_i32 = arith.constant 0 : i32
    %c0_i32_0 = arith.constant 0 : i32
    return %arg0, %c0_i32 : i32, i32
  }
  func.func @transform_1(%arg0: i32) -> (i32, i32) {
    %c0_i32 = arith.constant 0 : i32
    %c0_i32_0 = arith.constant 0 : i32
    return %arg0, %c0_i32 : i32, i32
  }
  func.func @transform_2(%arg0: i32) -> (i32, i32) {
    %c0_i32 = arith.constant 0 : i32
    %c0_i32_0 = arith.constant 0 : i32
    %c0_i32_1 = arith.constant 0 : i32
    return %c0_i32, %c0_i32_0 : i32, i32
  }
  func.func @transform_3(%arg0: i32) -> (i32, i32) {
    %c0_i32 = arith.constant 0 : i32
    %c0_i32_0 = arith.constant 0 : i32
    %c0_i32_1 = arith.constant 0 : i32
    return %c0_i32, %c0_i32_0 : i32, i32
  }
  func.func @transform_4(%arg0: i32) -> (i32, i32) {
    %c0_i32 = arith.constant 0 : i32
    %c0_i32_0 = arith.constant 0 : i32
    %c0_i32_1 = arith.constant 0 : i32
    return %c0_i32, %c0_i32_0 : i32, i32
  }
  func.func @transform_5(%arg0: i32) -> (i32, i32) {
    %c0_i32 = arith.constant 0 : i32
    %c0_i32_0 = arith.constant 0 : i32
    %c0_i32_1 = arith.constant 0 : i32
    return %c0_i32, %c0_i32_0 : i32, i32
  }
  func.func @transform_6(%arg0: i32) -> (i32, i32) {
    %c0_i32 = arith.constant 0 : i32
    %c0_i32_0 = arith.constant 0 : i32
    %c0_i32_1 = arith.constant 0 : i32
    return %c0_i32, %c0_i32_0 : i32, i32
  }
  func.func @transform_7(%arg0: i32) -> (i32, i32) {
    %c0_i32 = arith.constant 0 : i32
    %c0_i32_0 = arith.constant 0 : i32
    %c0_i32_1 = arith.constant 0 : i32
    return %c0_i32, %c0_i32_0 : i32, i32
  }
  func.func @transform_8(%arg0: i32) -> (i32, i32) {
    %c0_i32 = arith.constant 0 : i32
    %c0_i32_0 = arith.constant 0 : i32
    %c0_i32_1 = arith.constant 0 : i32
    return %c0_i32, %c0_i32_0 : i32, i32
  }
  func.func @transform_9(%arg0: i32) -> (i32, i32) {
    %c0_i32 = arith.constant 0 : i32
    %c0_i32_0 = arith.constant 0 : i32
    %c0_i32_1 = arith.constant 0 : i32
    return %c0_i32, %c0_i32_0 : i32, i32
  }
  func.func @transform_10(%arg0: i32) -> (i32, i32) {
    %c0_i32 = arith.constant 0 : i32
    %c0_i32_0 = arith.constant 0 : i32
    %c0_i32_1 = arith.constant 0 : i32
    return %c0_i32, %c0_i32_0 : i32, i32
  }
  func.func @transform_11(%arg0: i32) -> (i32, i32) {
    %c0_i32 = arith.constant 0 : i32
    %c0_i32_0 = arith.constant 0 : i32
    %c0_i32_1 = arith.constant 0 : i32
    return %c0_i32, %c0_i32_0 : i32, i32
  }
  func.func @transform_12(%arg0: i32) -> (i32, i32) {
    %c0_i32 = arith.constant 0 : i32
    %c0_i32_0 = arith.constant 0 : i32
    %c0_i32_1 = arith.constant 0 : i32
    return %c0_i32, %c0_i32_0 : i32, i32
  }
  func.func @transform_13(%arg0: i32) -> (i32, i32) {
    %c0_i32 = arith.constant 0 : i32
    %c0_i32_0 = arith.constant 0 : i32
    %c0_i32_1 = arith.constant 0 : i32
    return %c0_i32, %c0_i32_0 : i32, i32
  }
  func.func @transform_14(%arg0: i32) -> (i32, i32) {
    %c0_i32 = arith.constant 0 : i32
    %c0_i32_0 = arith.constant 0 : i32
    %c0_i32_1 = arith.constant 0 : i32
    return %c0_i32, %c0_i32_0 : i32, i32
  }
  func.func @transform_15(%arg0: i32) -> (i32, i32) {
    %c0_i32 = arith.constant 0 : i32
    %c0_i32_0 = arith.constant 0 : i32
    return %arg0, %c0_i32 : i32, i32
  }
  func.func @transform_16(%arg0: i32) -> (i32, i32) {
    %c0_i32 = arith.constant 0 : i32
    %c0_i32_0 = arith.constant 0 : i32
    return %arg0, %c0_i32 : i32, i32
  }
}

module attributes {stable_mosaic.version = 11 : i64} {
  func.func @_matmul_kernel(%arg0: i32, %arg1: i32, %arg2: i32, %arg3: memref<16x32xbf16, #tpu.memory_space<vmem>>, %arg4: memref<32x128xbf16, #tpu.memory_space<vmem>>, %arg5: memref<16x128xbf16, #tpu.memory_space<vmem>>, %arg6: memref<16x128xf32, #tpu.memory_space<vmem>>) attributes {dimension_semantics = [#tpu.dimension_semantics<parallel>, #tpu.dimension_semantics<parallel>, #tpu.dimension_semantics<arbitrary>], iteration_bounds = array<i64: 1, 1, 1>, scalar_prefetch = 0 : i64, scratch_operands = 1 : i64, tpu.core_type = #tpu.core_type<tc>, window_params = [{transform_indices = @transform_0, window_bounds = array<i64: 16, 32>}, {transform_indices = @transform_1, window_bounds = array<i64: 32, 128>}, {transform_indices = @transform_2, window_bounds = array<i64: 16, 128>}]} {
    %c0_i32 = arith.constant 0 : i32
    %0 = arith.cmpi eq, %arg2, %c0_i32 : i32
    %1 = arith.extui %0 : i1 to i32
    %c0_i32_0 = arith.constant 0 : i32
    %2 = arith.cmpi ne, %1, %c0_i32_0 : i32
    scf.if %2 {
      %cst_10 = arith.constant 0.000000e+00 : f32
      %12 = vector.broadcast %cst_10 : f32 to vector<16x128xf32>
      %c0_11 = arith.constant 0 : index
      %c0_12 = arith.constant 0 : index
      %13 = vector.load %arg6[%c0_11, %c0_12] : memref<16x128xf32, #tpu.memory_space<vmem>>, vector<16x128xf32>
      tpu.vector_store %arg6[%c0_11, %c0_12], %12 {strides = array<i32>} : memref<16x128xf32, #tpu.memory_space<vmem>>, vector<16x128xf32>,
    } else {
    }
    %c0 = arith.constant 0 : index
    %c0_1 = arith.constant 0 : index
    %3 = vector.load %arg6[%c0, %c0_1] : memref<16x128xf32, #tpu.memory_space<vmem>>, vector<16x128xf32>
    %c0_2 = arith.constant 0 : index
    %c0_3 = arith.constant 0 : index
    %4 = vector.load %arg3[%c0_2, %c0_3] : memref<16x32xbf16, #tpu.memory_space<vmem>>, vector<16x32xbf16>
    %c0_4 = arith.constant 0 : index
    %c0_5 = arith.constant 0 : index
    %5 = vector.load %arg4[%c0_4, %c0_5] : memref<32x128xbf16, #tpu.memory_space<vmem>>, vector<32x128xbf16>
    %cst = arith.constant dense<0.000000e+00> : vector<16x128xf32>
    %6 = tpu.matmul %4, %5, %cst {dimension_numbers = #tpu.dot_dimension_numbers<[1], [0], [0], [1], [0, 0, 1, 1], [], []>} : vector<16x32xbf16>, vector<32x128xbf16>, vector<16x128xf32> -> vector<16x128xf32>
    %7 = arith.addf %3, %6 : vector<16x128xf32>
    %c0_6 = arith.constant 0 : index
    %c0_7 = arith.constant 0 : index
    %8 = vector.load %arg6[%c0_6, %c0_7] : memref<16x128xf32, #tpu.memory_space<vmem>>, vector<16x128xf32>
    tpu.vector_store %arg6[%c0_6, %c0_7], %7 {strides = array<i32>} : memref<16x128xf32, #tpu.memory_space<vmem>>, vector<16x128xf32>,
    %c0_i32_8 = arith.constant 0 : i32
    %9 = arith.cmpi eq, %arg2, %c0_i32_8 : i32
    %10 = arith.extui %9 : i1 to i32
    %c0_i32_9 = arith.constant 0 : i32
    %11 = arith.cmpi ne, %10, %c0_i32_9 : i32
    scf.if %11 {
      %c0_10 = arith.constant 0 : index
      %c0_11 = arith.constant 0 : index
      %12 = vector.load %arg6[%c0_10, %c0_11] : memref<16x128xf32, #tpu.memory_space<vmem>>, vector<16x128xf32>
      %13 = arith.truncf %12 : vector<16x128xf32> to vector<16x128xbf16>
      %c0_12 = arith.constant 0 : index
      %c0_13 = arith.constant 0 : index
      %14 = vector.load %arg5[%c0_12, %c0_13] : memref<16x128xbf16, #tpu.memory_space<vmem>>, vector<16x128xbf16>
      tpu.vector_store %arg5[%c0_12, %c0_13], %13 {strides = array<i32>} : memref<16x128xbf16, #tpu.memory_space<vmem>>, vector<16x128xbf16>,
    } else {
    }
    return
  }
  func.func @transform_0(%arg0: i32, %arg1: i32, %arg2: i32) -> (i32, i32) {
    %c0_i32 = arith.constant 0 : i32
    return %arg0, %arg2 : i32, i32
  }
  func.func @transform_1(%arg0: i32, %arg1: i32, %arg2: i32) -> (i32, i32) {
    %c0_i32 = arith.constant 0 : i32
    return %arg2, %arg1 : i32, i32
  }
  func.func @transform_2(%arg0: i32, %arg1: i32, %arg2: i32) -> (i32, i32) {
    %c0_i32 = arith.constant 0 : i32
    return %arg0, %arg1 : i32, i32
  }
}

module attributes {stable_mosaic.version = 11 : i64} {
  func.func @_conv_silu_kernel(%arg0: i32, %arg1: i32, %arg2: memref<1x11x64xbf16, #tpu.memory_space<vmem>>, %arg3: memref<4x64xf32, #tpu.memory_space<vmem>>, %arg4: memref<1x64xf32, #tpu.memory_space<vmem>>, %arg5: memref<1x8x64xbf16, #tpu.memory_space<vmem>>) attributes {dimension_semantics = [#tpu.dimension_semantics<parallel>, #tpu.dimension_semantics<parallel>], iteration_bounds = array<i64: 2, 1>, scalar_prefetch = 0 : i64, scratch_operands = 0 : i64, tpu.core_type = #tpu.core_type<tc>, window_params = [{transform_indices = @transform_0, window_bounds = array<i64: 1, 11, 64>}, {transform_indices = @transform_1, window_bounds = array<i64: 4, 64>}, {transform_indices = @transform_2, window_bounds = array<i64: 1, 64>}, {transform_indices = @transform_3, window_bounds = array<i64: 1, 8, 64>}]} {
    %c0 = arith.constant 0 : index
    %c0_0 = arith.constant 0 : index
    %0 = vector.load %arg3[%c0, %c0_0] : memref<4x64xf32, #tpu.memory_space<vmem>>, vector<4x64xf32>
    %1 = vector.extract_strided_slice %0 {offsets = [0, 0], sizes = [1, 64], strides = [1, 1]} : vector<4x64xf32> to vector<1x64xf32>
    %c0_1 = arith.constant 0 : index
    %c0_2 = arith.constant 0 : index
    %c0_3 = arith.constant 0 : index
    %2 = vector.load %arg2[%c0_1, %c0_2, %c0_3] : memref<1x11x64xbf16, #tpu.memory_space<vmem>>, vector<1x8x64xbf16>
    %3 = vector.shape_cast %2 : vector<1x8x64xbf16> to vector<8x64xbf16>
    %4 = arith.extf %3 : vector<8x64xbf16> to vector<8x64xf32>
    %5 = vector.broadcast %1 : vector<1x64xf32> to vector<8x64xf32>
    %6 = arith.mulf %5, %4 : vector<8x64xf32>
    %7 = vector.extract_strided_slice %0 {offsets = [1, 0], sizes = [1, 64], strides = [1, 1]} : vector<4x64xf32> to vector<1x64xf32>
    %c0_4 = arith.constant 0 : index
    %c1 = arith.constant 1 : index
    %c0_5 = arith.constant 0 : index
    %8 = vector.load %arg2[%c0_4, %c1, %c0_5] : memref<1x11x64xbf16, #tpu.memory_space<vmem>>, vector<1x8x64xbf16>
    %9 = vector.shape_cast %8 : vector<1x8x64xbf16> to vector<8x64xbf16>
    %10 = arith.extf %9 : vector<8x64xbf16> to vector<8x64xf32>
    %11 = vector.broadcast %7 : vector<1x64xf32> to vector<8x64xf32>
    %12 = arith.mulf %11, %10 : vector<8x64xf32>
    %13 = arith.addf %6, %12 : vector<8x64xf32>
    %14 = vector.extract_strided_slice %0 {offsets = [2, 0], sizes = [1, 64], strides = [1, 1]} : vector<4x64xf32> to vector<1x64xf32>
    %c0_6 = arith.constant 0 : index
    %c2 = arith.constant 2 : index
    %c0_7 = arith.constant 0 : index
    %15 = vector.load %arg2[%c0_6, %c2, %c0_7] : memref<1x11x64xbf16, #tpu.memory_space<vmem>>, vector<1x8x64xbf16>
    %16 = vector.shape_cast %15 : vector<1x8x64xbf16> to vector<8x64xbf16>
    %17 = arith.extf %16 : vector<8x64xbf16> to vector<8x64xf32>
    %18 = vector.broadcast %14 : vector<1x64xf32> to vector<8x64xf32>
    %19 = arith.mulf %18, %17 : vector<8x64xf32>
    %20 = arith.addf %13, %19 : vector<8x64xf32>
    %21 = vector.extract_strided_slice %0 {offsets = [3, 0], sizes = [1, 64], strides = [1, 1]} : vector<4x64xf32> to vector<1x64xf32>
    %c0_8 = arith.constant 0 : index
    %c3 = arith.constant 3 : index
    %c0_9 = arith.constant 0 : index
    %22 = vector.load %arg2[%c0_8, %c3, %c0_9] : memref<1x11x64xbf16, #tpu.memory_space<vmem>>, vector<1x8x64xbf16>
    %23 = vector.shape_cast %22 : vector<1x8x64xbf16> to vector<8x64xbf16>
    %24 = arith.extf %23 : vector<8x64xbf16> to vector<8x64xf32>
    %25 = vector.broadcast %21 : vector<1x64xf32> to vector<8x64xf32>
    %26 = arith.mulf %25, %24 : vector<8x64xf32>
    %27 = arith.addf %20, %26 : vector<8x64xf32>
    %c0_10 = arith.constant 0 : index
    %c0_11 = arith.constant 0 : index
    %28 = vector.load %arg4[%c0_10, %c0_11] : memref<1x64xf32, #tpu.memory_space<vmem>>, vector<1x64xf32>
    %29 = vector.broadcast %28 : vector<1x64xf32> to vector<8x64xf32>
    %30 = arith.addf %27, %29 : vector<8x64xf32>
    %cst = arith.constant 0.000000e+00 : f32
    %31 = vector.broadcast %cst : f32 to vector<8x64xf32>
    %32 = arith.subf %31, %30 : vector<8x64xf32>
    %33 = math.exp %32 : vector<8x64xf32>
    %cst_12 = arith.constant 1.000000e+00 : f32
    %34 = vector.broadcast %cst_12 : f32 to vector<8x64xf32>
    %35 = arith.addf %34, %33 : vector<8x64xf32>
    %cst_13 = arith.constant 1.000000e+00 : f32
    %36 = vector.broadcast %cst_13 : f32 to vector<8x64xf32>
    %37 = arith.divf %36, %35 : vector<8x64xf32>
    %38 = arith.mulf %30, %37 : vector<8x64xf32>
    %39 = arith.truncf %38 : vector<8x64xf32> to vector<8x64xbf16>
    %c0_14 = arith.constant 0 : index
    %c0_15 = arith.constant 0 : index
    %c0_16 = arith.constant 0 : index
    %40 = vector.load %arg5[%c0_14, %c0_15, %c0_16] : memref<1x8x64xbf16, #tpu.memory_space<vmem>>, vector<1x8x64xbf16>
    %41 = vector.shape_cast %40 : vector<1x8x64xbf16> to vector<8x64xbf16>
    %42 = vector.shape_cast %39 : vector<8x64xbf16> to vector<1x8x64xbf16>
    tpu.vector_store %arg5[%c0_14, %c0_15, %c0_16], %42 {strides = array<i32>} : memref<1x8x64xbf16, #tpu.memory_space<vmem>>, vector<1x8x64xbf16>,
    return
  }
  func.func @transform_0(%arg0: i32, %arg1: i32) -> (i32, i32, i32) {
    %c0_i32 = arith.constant 0 : i32
    %c0_i32_0 = arith.constant 0 : i32
    return %arg0, %c0_i32, %arg1 : i32, i32, i32
  }
  func.func @transform_1(%arg0: i32, %arg1: i32) -> (i32, i32) {
    %c0_i32 = arith.constant 0 : i32
    %c0_i32_0 = arith.constant 0 : i32
    return %c0_i32, %arg1 : i32, i32
  }
  func.func @transform_2(%arg0: i32, %arg1: i32) -> (i32, i32) {
    %c0_i32 = arith.constant 0 : i32
    %c0_i32_0 = arith.constant 0 : i32
    return %c0_i32, %arg1 : i32, i32
  }
  func.func @transform_3(%arg0: i32, %arg1: i32) -> (i32, i32, i32) {
    %c0_i32 = arith.constant 0 : i32
    %c0_i32_0 = arith.constant 0 : i32
    return %arg0, %c0_i32, %arg1 : i32, i32, i32
  }
}

module attributes {stable_mosaic.version = 11 : i64} {
  func.func @_matmul_kernel(%arg0: i32, %arg1: i32, %arg2: i32, %arg3: memref<16x2xbf16, #tpu.memory_space<vmem>>, %arg4: memref<2x64xbf16, #tpu.memory_space<vmem>>, %arg5: memref<16x64xbf16, #tpu.memory_space<vmem>>, %arg6: memref<16x64xf32, #tpu.memory_space<vmem>>) attributes {dimension_semantics = [#tpu.dimension_semantics<parallel>, #tpu.dimension_semantics<parallel>, #tpu.dimension_semantics<arbitrary>], iteration_bounds = array<i64: 1, 1, 1>, scalar_prefetch = 0 : i64, scratch_operands = 1 : i64, tpu.core_type = #tpu.core_type<tc>, window_params = [{transform_indices = @transform_0, window_bounds = array<i64: 16, 2>}, {transform_indices = @transform_1, window_bounds = array<i64: 2, 64>}, {transform_indices = @transform_2, window_bounds = array<i64: 16, 64>}]} {
    %c0_i32 = arith.constant 0 : i32
    %0 = arith.cmpi eq, %arg2, %c0_i32 : i32
    %1 = arith.extui %0 : i1 to i32
    %c0_i32_0 = arith.constant 0 : i32
    %2 = arith.cmpi ne, %1, %c0_i32_0 : i32
    scf.if %2 {
      %cst_10 = arith.constant 0.000000e+00 : f32
      %12 = vector.broadcast %cst_10 : f32 to vector<16x64xf32>
      %c0_11 = arith.constant 0 : index
      %c0_12 = arith.constant 0 : index
      %13 = vector.load %arg6[%c0_11, %c0_12] : memref<16x64xf32, #tpu.memory_space<vmem>>, vector<16x64xf32>
      tpu.vector_store %arg6[%c0_11, %c0_12], %12 {strides = array<i32>} : memref<16x64xf32, #tpu.memory_space<vmem>>, vector<16x64xf32>,
    } else {
    }
    %c0 = arith.constant 0 : index
    %c0_1 = arith.constant 0 : index
    %3 = vector.load %arg6[%c0, %c0_1] : memref<16x64xf32, #tpu.memory_space<vmem>>, vector<16x64xf32>
    %c0_2 = arith.constant 0 : index
    %c0_3 = arith.constant 0 : index
    %4 = vector.load %arg3[%c0_2, %c0_3] : memref<16x2xbf16, #tpu.memory_space<vmem>>, vector<16x2xbf16>
    %c0_4 = arith.constant 0 : index
    %c0_5 = arith.constant 0 : index
    %5 = vector.load %arg4[%c0_4, %c0_5] : memref<2x64xbf16, #tpu.memory_space<vmem>>, vector<2x64xbf16>
    %cst = arith.constant dense<0.000000e+00> : vector<16x64xf32>
    %6 = tpu.matmul %4, %5, %cst {dimension_numbers = #tpu.dot_dimension_numbers<[1], [0], [0], [1], [0, 0, 1, 1], [], []>} : vector<16x2xbf16>, vector<2x64xbf16>, vector<16x64xf32> -> vector<16x64xf32>
    %7 = arith.addf %3, %6 : vector<16x64xf32>
    %c0_6 = arith.constant 0 : index
    %c0_7 = arith.constant 0 : index
    %8 = vector.load %arg6[%c0_6, %c0_7] : memref<16x64xf32, #tpu.memory_space<vmem>>, vector<16x64xf32>
    tpu.vector_store %arg6[%c0_6, %c0_7], %7 {strides = array<i32>} : memref<16x64xf32, #tpu.memory_space<vmem>>, vector<16x64xf32>,
    %c0_i32_8 = arith.constant 0 : i32
    %9 = arith.cmpi eq, %arg2, %c0_i32_8 : i32
    %10 = arith.extui %9 : i1 to i32
    %c0_i32_9 = arith.constant 0 : i32
    %11 = arith.cmpi ne, %10, %c0_i32_9 : i32
    scf.if %11 {
      %c0_10 = arith.constant 0 : index
      %c0_11 = arith.constant 0 : index
      %12 = vector.load %arg6[%c0_10, %c0_11] : memref<16x64xf32, #tpu.memory_space<vmem>>, vector<16x64xf32>
      %13 = arith.truncf %12 : vector<16x64xf32> to vector<16x64xbf16>
      %c0_12 = arith.constant 0 : index
      %c0_13 = arith.constant 0 : index
      %14 = vector.load %arg5[%c0_12, %c0_13] : memref<16x64xbf16, #tpu.memory_space<vmem>>, vector<16x64xbf16>
      tpu.vector_store %arg5[%c0_12, %c0_13], %13 {strides = array<i32>} : memref<16x64xbf16, #tpu.memory_space<vmem>>, vector<16x64xbf16>,
    } else {
    }
    return
  }
  func.func @transform_0(%arg0: i32, %arg1: i32, %arg2: i32) -> (i32, i32) {
    %c0_i32 = arith.constant 0 : i32
    return %arg0, %arg2 : i32, i32
  }
  func.func @transform_1(%arg0: i32, %arg1: i32, %arg2: i32) -> (i32, i32) {
    %c0_i32 = arith.constant 0 : i32
    return %arg2, %arg1 : i32, i32
  }
  func.func @transform_2(%arg0: i32, %arg1: i32, %arg2: i32) -> (i32, i32) {
    %c0_i32 = arith.constant 0 : i32
    return %arg0, %arg1 : i32, i32
  }
}

module attributes {stable_mosaic.version = 11 : i64} {
  func.func @_scan_kernel(%arg0: i32, %arg1: i32, %arg2: i32, %arg3: memref<1x8x64xbf16, #tpu.memory_space<vmem>>, %arg4: memref<1x8x64xbf16, #tpu.memory_space<vmem>>, %arg5: memref<1x8x16xbf16, #tpu.memory_space<vmem>>, %arg6: memref<1x8x16xbf16, #tpu.memory_space<vmem>>, %arg7: memref<1x8x64xbf16, #tpu.memory_space<vmem>>, %arg8: memref<16x64xf32, #tpu.memory_space<vmem>>, %arg9: memref<1x64xf32, #tpu.memory_space<vmem>>, %arg10: memref<1x64xf32, #tpu.memory_space<vmem>>, %arg11: memref<1x8x64xbf16, #tpu.memory_space<vmem>>, %arg12: memref<16x64xf32, #tpu.memory_space<vmem>>, %arg13: memref<8x64xf32, #tpu.memory_space<vmem>>, %arg14: memref<8x16x64xf32, #tpu.memory_space<vmem>>, %arg15: memref<8x16x64xf32, #tpu.memory_space<vmem>>, %arg16: memref<8x64xf32, #tpu.memory_space<vmem>>) attributes {dimension_semantics = [#tpu.dimension_semantics<parallel>, #tpu.dimension_semantics<parallel>, #tpu.dimension_semantics<arbitrary>], iteration_bounds = array<i64: 2, 1, 1>, scalar_prefetch = 0 : i64, scratch_operands = 5 : i64, tpu.core_type = #tpu.core_type<tc>, window_params = [{transform_indices = @transform_0, window_bounds = array<i64: 1, 8, 64>}, {transform_indices = @transform_1, window_bounds = array<i64: 1, 8, 64>}, {transform_indices = @transform_2, window_bounds = array<i64: 1, 8, 16>}, {transform_indices = @transform_3, window_bounds = array<i64: 1, 8, 16>}, {transform_indices = @transform_4, window_bounds = array<i64: 1, 8, 64>}, {transform_indices = @transform_5, window_bounds = array<i64: 16, 64>}, {transform_indices = @transform_6, window_bounds = array<i64: 1, 64>}, {transform_indices = @transform_7, window_bounds = array<i64: 1, 64>}, {transform_indices = @transform_8, window_bounds = array<i64: 1, 8, 64>}]} {
    %c0_i32 = arith.constant 0 : i32
    %0 = arith.cmpi eq, %arg2, %c0_i32 : i32
    %1 = arith.extui %0 : i1 to i32
    %c0_i32_0 = arith.constant 0 : i32
    %2 = arith.cmpi ne, %1, %c0_i32_0 : i32
    scf.if %2 {
      %cst_44 = arith.constant 0.000000e+00 : f32
      %66 = vector.broadcast %cst_44 : f32 to vector<16x64xf32>
      %c0_45 = arith.constant 0 : index
      %c0_46 = arith.constant 0 : index
      %67 = vector.load %arg12[%c0_45, %c0_46] : memref<16x64xf32, #tpu.memory_space<vmem>>, vector<16x64xf32>
      tpu.vector_store %arg12[%c0_45, %c0_46], %66 {strides = array<i32>} : memref<16x64xf32, #tpu.memory_space<vmem>>, vector<16x64xf32>,
    } else {
    }
    %c0 = arith.constant 0 : index
    %c0_1 = arith.constant 0 : index
    %c0_2 = arith.constant 0 : index
    %3 = vector.load %arg4[%c0, %c0_1, %c0_2] : memref<1x8x64xbf16, #tpu.memory_space<vmem>>, vector<1x8x64xbf16>
    %4 = vector.shape_cast %3 : vector<1x8x64xbf16> to vector<8x64xbf16>
    %5 = arith.extf %4 : vector<8x64xbf16> to vector<8x64xf32>
    %c0_3 = arith.constant 0 : index
    %c0_4 = arith.constant 0 : index
    %6 = vector.load %arg10[%c0_3, %c0_4] : memref<1x64xf32, #tpu.memory_space<vmem>>, vector<1x64xf32>
    %7 = vector.broadcast %6 : vector<1x64xf32> to vector<8x64xf32>
    %8 = arith.addf %5, %7 : vector<8x64xf32>
    %cst = arith.constant 0.000000e+00 : f32
    %9 = vector.broadcast %cst : f32 to vector<8x64xf32>
    %10 = arith.maximumf %8, %9 : vector<8x64xf32>
    %11 = math.absf %8 : vector<8x64xf32>
    %cst_5 = arith.constant 0.000000e+00 : f32
    %12 = vector.broadcast %cst_5 : f32 to vector<8x64xf32>
    %13 = arith.subf %12, %11 : vector<8x64xf32>
    %14 = math.exp %13 : vector<8x64xf32>
    %cst_6 = arith.constant 1.000000e+00 : f32
    %15 = vector.broadcast %cst_6 : f32 to vector<8x64xf32>
    %16 = arith.addf %15, %14 : vector<8x64xf32>
    %17 = math.log %16 : vector<8x64xf32>
    %18 = arith.addf %10, %17 : vector<8x64xf32>
    %c0_7 = arith.constant 0 : index
    %c0_8 = arith.constant 0 : index
    %19 = vector.load %arg13[%c0_7, %c0_8] : memref<8x64xf32, #tpu.memory_space<vmem>>, vector<8x64xf32>
    tpu.vector_store %arg13[%c0_7, %c0_8], %18 {strides = array<i32>} : memref<8x64xf32, #tpu.memory_space<vmem>>, vector<8x64xf32>,
    %c0_9 = arith.constant 0 : index
    %c0_10 = arith.constant 0 : index
    %c0_11 = arith.constant 0 : index
    %20 = vector.load %arg3[%c0_9, %c0_10, %c0_11] : memref<1x8x64xbf16, #tpu.memory_space<vmem>>, vector<1x8x64xbf16>
    %21 = vector.shape_cast %20 : vector<1x8x64xbf16> to vector<8x64xbf16>
    %22 = arith.extf %21 : vector<8x64xbf16> to vector<8x64xf32>
    %23 = arith.mulf %18, %22 : vector<8x64xf32>
    %c0_12 = arith.constant 0 : index
    %c0_13 = arith.constant 0 : index
    %c0_14 = arith.constant 0 : index
    %24 = vector.load %arg5[%c0_12, %c0_13, %c0_14] : memref<1x8x16xbf16, #tpu.memory_space<vmem>>, vector<1x8x16xbf16>
    %25 = vector.shape_cast %24 : vector<1x8x16xbf16> to vector<8x16xbf16>
    %26 = arith.extf %25 : vector<8x16xbf16> to vector<8x16xf32>
    %c0_15 = arith.constant 0 : index
    %c0_16 = arith.constant 0 : index
    %c0_17 = arith.constant 0 : index
    %27 = vector.load %arg6[%c0_15, %c0_16, %c0_17] : memref<1x8x16xbf16, #tpu.memory_space<vmem>>, vector<1x8x16xbf16>
    %28 = vector.shape_cast %27 : vector<1x8x16xbf16> to vector<8x16xbf16>
    %29 = arith.extf %28 : vector<8x16xbf16> to vector<8x16xf32>
    %30 = vector.shape_cast %26 : vector<8x16xf32> to vector<8x16x1xf32>
    %31 = vector.shape_cast %23 : vector<8x64xf32> to vector<8x1x64xf32>
    %32 = vector.broadcast %30 : vector<8x16x1xf32> to vector<8x16x64xf32>
    %33 = vector.broadcast %31 : vector<8x1x64xf32> to vector<8x16x64xf32>
    %34 = arith.mulf %32, %33 : vector<8x16x64xf32>
    %c0_18 = arith.constant 0 : index
    %c0_19 = arith.constant 0 : index
    %c0_20 = arith.constant 0 : index
    %35 = vector.load %arg14[%c0_18, %c0_19, %c0_20] : memref<8x16x64xf32, #tpu.memory_space<vmem>>, vector<8x16x64xf32>
    tpu.vector_store %arg14[%c0_18, %c0_19, %c0_20], %34 {strides = array<i32>} : memref<8x16x64xf32, #tpu.memory_space<vmem>>, vector<8x16x64xf32>,
    %36 = vector.shape_cast %29 : vector<8x16xf32> to vector<8x16x1xf32>
    %37 = vector.shape_cast %36 : vector<8x16x1xf32> to vector<8x16x1xf32>
    %38 = vector.broadcast %37 : vector<8x16x1xf32> to vector<8x16x64xf32>
    %c0_21 = arith.constant 0 : index
    %c0_22 = arith.constant 0 : index
    %c0_23 = arith.constant 0 : index
    %39 = vector.load %arg15[%c0_21, %c0_22, %c0_23] : memref<8x16x64xf32, #tpu.memory_space<vmem>>, vector<8x16x64xf32>
    tpu.vector_store %arg15[%c0_21, %c0_22, %c0_23], %38 {strides = array<i32>} : memref<8x16x64xf32, #tpu.memory_space<vmem>>, vector<8x16x64xf32>,
    %c0_24 = arith.constant 0 : index
    %c0_25 = arith.constant 0 : index
    %40 = vector.load %arg8[%c0_24, %c0_25] : memref<16x64xf32, #tpu.memory_space<vmem>>, vector<16x64xf32>
    %c0_i32_26 = arith.constant 0 : i32
    %c8_i32 = arith.constant 8 : i32
    %41 = arith.addi %c0_i32_26, %c8_i32 : i32
    %c1_i32 = arith.constant 1 : i32
    scf.for %arg17 = %c0_i32_26 to %41 step %c1_i32  : i32 {
      %c1_i32_44 = arith.constant 1 : i32
      %66 = arith.muli %arg17, %c1_i32_44 : i32
      %c0_i32_45 = arith.constant 0 : i32
      %67 = arith.addi %c0_i32_45, %66 : i32
      %c7_i32 = arith.constant 7 : i32
      %68 = arith.subi %c7_i32, %67 : i32
      %69 = arith.index_cast %68 : i32 to index
      %c0_46 = arith.constant 0 : index
      %70 = vector.load %arg13[%69, %c0_46] : memref<8x64xf32, #tpu.memory_space<vmem>>, vector<1x64xf32>
      %71 = vector.broadcast %70 : vector<1x64xf32> to vector<16x64xf32>
      %72 = arith.mulf %71, %40 : vector<16x64xf32>
      %73 = math.exp %72 : vector<16x64xf32>
      %c0_47 = arith.constant 0 : index
      %c0_48 = arith.constant 0 : index
      %74 = vector.load %arg12[%c0_47, %c0_48] : memref<16x64xf32, #tpu.memory_space<vmem>>, vector<16x64xf32>
      %75 = arith.mulf %73, %74 : vector<16x64xf32>
      %76 = arith.index_cast %68 : i32 to index
      %c0_49 = arith.constant 0 : index
      %c0_50 = arith.constant 0 : index
      %77 = vector.load %arg14[%76, %c0_49, %c0_50] : memref<8x16x64xf32, #tpu.memory_space<vmem>>, vector<1x16x64xf32>
      %78 = vector.shape_cast %77 : vector<1x16x64xf32> to vector<16x64xf32>
      %79 = arith.addf %75, %78 : vector<16x64xf32>
      %c0_51 = arith.constant 0 : index
      %c0_52 = arith.constant 0 : index
      %80 = vector.load %arg12[%c0_51, %c0_52] : memref<16x64xf32, #tpu.memory_space<vmem>>, vector<16x64xf32>
      tpu.vector_store %arg12[%c0_51, %c0_52], %79 {strides = array<i32>} : memref<16x64xf32, #tpu.memory_space<vmem>>, vector<16x64xf32>,
      %81 = arith.index_cast %68 : i32 to index
      %c0_53 = arith.constant 0 : index
      %c0_54 = arith.constant 0 : index
      %82 = vector.load %arg15[%81, %c0_53, %c0_54] : memref<8x16x64xf32, #tpu.memory_space<vmem>>, vector<1x16x64xf32>
      %83 = vector.shape_cast %82 : vector<1x16x64xf32> to vector<16x64xf32>
      %84 = arith.mulf %83, %79 : vector<16x64xf32>
      %cst_55 = arith.constant dense<0.000000e+00> : vector<64xf32>
      %85 = vector.multi_reduction <add>, %84, %cst_55 [0] : vector<16x64xf32> to vector<64xf32>
      %86 = vector.shape_cast %85 : vector<64xf32> to vector<1x64xf32>
      %87 = arith.index_cast %68 : i32 to index
      %c0_56 = arith.constant 0 : index
      %88 = vector.load %arg16[%87, %c0_56] : memref<8x64xf32, #tpu.memory_space<vmem>>, vector<1x64xf32>
      tpu.vector_store %arg16[%87, %c0_56], %86 {strides = array<i32>} : memref<8x64xf32, #tpu.memory_space<vmem>>, vector<1x64xf32>,
    }
    %c8_i32_27 = arith.constant 8 : i32
    %c0_28 = arith.constant 0 : index
    %c0_29 = arith.constant 0 : index
    %c0_30 = arith.constant 0 : index
    %42 = vector.load %arg7[%c0_28, %c0_29, %c0_30] : memref<1x8x64xbf16, #tpu.memory_space<vmem>>, vector<1x8x64xbf16>
    %43 = vector.shape_cast %42 : vector<1x8x64xbf16> to vector<8x64xbf16>
    %44 = arith.extf %43 : vector<8x64xbf16> to vector<8x64xf32>
    %c0_31 = arith.constant 0 : index
    %c0_32 = arith.constant 0 : index
    %45 = vector.load %arg16[%c0_31, %c0_32] : memref<8x64xf32, #tpu.memory_space<vmem>>, vector<8x64xf32>
    %c0_33 = arith.constant 0 : index
    %c0_34 = arith.constant 0 : index
    %c0_35 = arith.constant 0 : index
    %46 = vector.load %arg3[%c0_33, %c0_34, %c0_35] : memref<1x8x64xbf16, #tpu.memory_space<vmem>>, vector<1x8x64xbf16>
    %47 = vector.shape_cast %46 : vector<1x8x64xbf16> to vector<8x64xbf16>
    %48 = arith.extf %47 : vector<8x64xbf16> to vector<8x64xf32>
    %c0_36 = arith.constant 0 : index
    %c0_37 = arith.constant 0 : index
    %49 = vector.load %arg9[%c0_36, %c0_37] : memref<1x64xf32, #tpu.memory_space<vmem>>, vector<1x64xf32>
    %50 = vector.broadcast %49 : vector<1x64xf32> to vector<8x64xf32>
    %51 = arith.mulf %48, %50 : vector<8x64xf32>
    %52 = arith.addf %45, %51 : vector<8x64xf32>
    %cst_38 = arith.constant 0.000000e+00 : f32
    %53 = vector.broadcast %cst_38 : f32 to vector<8x64xf32>
    %54 = arith.subf %53, %44 : vector<8x64xf32>
    %55 = math.exp %54 : vector<8x64xf32>
    %cst_39 = arith.constant 1.000000e+00 : f32
    %56 = vector.broadcast %cst_39 : f32 to vector<8x64xf32>
    %57 = arith.addf %56, %55 : vector<8x64xf32>
    %cst_40 = arith.constant 1.000000e+00 : f32
    %58 = vector.broadcast %cst_40 : f32 to vector<8x64xf32>
    %59 = arith.divf %58, %57 : vector<8x64xf32>
    %60 = arith.mulf %44, %59 : vector<8x64xf32>
    %61 = arith.mulf %52, %60 : vector<8x64xf32>
    %62 = arith.truncf %61 : vector<8x64xf32> to vector<8x64xbf16>
    %c0_41 = arith.constant 0 : index
    %c0_42 = arith.constant 0 : index
    %c0_43 = arith.constant 0 : index
    %63 = vector.load %arg11[%c0_41, %c0_42, %c0_43] : memref<1x8x64xbf16, #tpu.memory_space<vmem>>, vector<1x8x64xbf16>
    %64 = vector.shape_cast %63 : vector<1x8x64xbf16> to vector<8x64xbf16>
    %65 = vector.shape_cast %62 : vector<8x64xbf16> to vector<1x8x64xbf16>
    tpu.vector_store %arg11[%c0_41, %c0_42, %c0_43], %65 {strides = array<i32>} : memref<1x8x64xbf16, #tpu.memory_space<vmem>>, vector<1x8x64xbf16>,
    return
  }
  func.func @transform_0(%arg0: i32, %arg1: i32, %arg2: i32) -> (i32, i32, i32) {
    %c0_i32 = arith.constant 0 : i32
    %0 = arith.subi %c0_i32, %arg2 : i32
    %c0_i32_0 = arith.constant 0 : i32
    return %arg0, %0, %arg1 : i32, i32, i32
  }
  func.func @transform_1(%arg0: i32, %arg1: i32, %arg2: i32) -> (i32, i32, i32) {
    %c0_i32 = arith.constant 0 : i32
    %0 = arith.subi %c0_i32, %arg2 : i32
    %c0_i32_0 = arith.constant 0 : i32
    return %arg0, %0, %arg1 : i32, i32, i32
  }
  func.func @transform_2(%arg0: i32, %arg1: i32, %arg2: i32) -> (i32, i32, i32) {
    %c0_i32 = arith.constant 0 : i32
    %0 = arith.subi %c0_i32, %arg2 : i32
    %c0_i32_0 = arith.constant 0 : i32
    %c0_i32_1 = arith.constant 0 : i32
    return %arg0, %0, %c0_i32_0 : i32, i32, i32
  }
  func.func @transform_3(%arg0: i32, %arg1: i32, %arg2: i32) -> (i32, i32, i32) {
    %c0_i32 = arith.constant 0 : i32
    %0 = arith.subi %c0_i32, %arg2 : i32
    %c0_i32_0 = arith.constant 0 : i32
    %c0_i32_1 = arith.constant 0 : i32
    return %arg0, %0, %c0_i32_0 : i32, i32, i32
  }
  func.func @transform_4(%arg0: i32, %arg1: i32, %arg2: i32) -> (i32, i32, i32) {
    %c0_i32 = arith.constant 0 : i32
    %0 = arith.subi %c0_i32, %arg2 : i32
    %c0_i32_0 = arith.constant 0 : i32
    return %arg0, %0, %arg1 : i32, i32, i32
  }
  func.func @transform_5(%arg0: i32, %arg1: i32, %arg2: i32) -> (i32, i32) {
    %c0_i32 = arith.constant 0 : i32
    %c0_i32_0 = arith.constant 0 : i32
    return %c0_i32, %arg1 : i32, i32
  }
  func.func @transform_6(%arg0: i32, %arg1: i32, %arg2: i32) -> (i32, i32) {
    %c0_i32 = arith.constant 0 : i32
    %c0_i32_0 = arith.constant 0 : i32
    return %c0_i32, %arg1 : i32, i32
  }
  func.func @transform_7(%arg0: i32, %arg1: i32, %arg2: i32) -> (i32, i32) {
    %c0_i32 = arith.constant 0 : i32
    %c0_i32_0 = arith.constant 0 : i32
    return %c0_i32, %arg1 : i32, i32
  }
  func.func @transform_8(%arg0: i32, %arg1: i32, %arg2: i32) -> (i32, i32, i32) {
    %c0_i32 = arith.constant 0 : i32
    %0 = arith.subi %c0_i32, %arg2 : i32
    %c0_i32_0 = arith.constant 0 : i32
    return %arg0, %0, %arg1 : i32, i32, i32
  }
}

module attributes {stable_mosaic.version = 11 : i64} {
  func.func @_matmul_kernel(%arg0: i32, %arg1: i32, %arg2: i32, %arg3: memref<16x64xbf16, #tpu.memory_space<vmem>>, %arg4: memref<64x128xbf16, #tpu.memory_space<vmem>>, %arg5: memref<16x128xbf16, #tpu.memory_space<vmem>>, %arg6: memref<16x128xf32, #tpu.memory_space<vmem>>) attributes {dimension_semantics = [#tpu.dimension_semantics<parallel>, #tpu.dimension_semantics<parallel>, #tpu.dimension_semantics<arbitrary>], iteration_bounds = array<i64: 1, 1, 1>, scalar_prefetch = 0 : i64, scratch_operands = 1 : i64, tpu.core_type = #tpu.core_type<tc>, window_params = [{transform_indices = @transform_0, window_bounds = array<i64: 16, 64>}, {transform_indices = @transform_1, window_bounds = array<i64: 64, 128>}, {transform_indices = @transform_2, window_bounds = array<i64: 16, 128>}]} {
    %c0_i32 = arith.constant 0 : i32
    %0 = arith.cmpi eq, %arg2, %c0_i32 : i32
    %1 = arith.extui %0 : i1 to i32
    %c0_i32_0 = arith.constant 0 : i32
    %2 = arith.cmpi ne, %1, %c0_i32_0 : i32
    scf.if %2 {
      %cst_10 = arith.constant 0.000000e+00 : f32
      %12 = vector.broadcast %cst_10 : f32 to vector<16x128xf32>
      %c0_11 = arith.constant 0 : index
      %c0_12 = arith.constant 0 : index
      %13 = vector.load %arg6[%c0_11, %c0_12] : memref<16x128xf32, #tpu.memory_space<vmem>>, vector<16x128xf32>
      tpu.vector_store %arg6[%c0_11, %c0_12], %12 {strides = array<i32>} : memref<16x128xf32, #tpu.memory_space<vmem>>, vector<16x128xf32>,
    } else {
    }
    %c0 = arith.constant 0 : index
    %c0_1 = arith.constant 0 : index
    %3 = vector.load %arg6[%c0, %c0_1] : memref<16x128xf32, #tpu.memory_space<vmem>>, vector<16x128xf32>
    %c0_2 = arith.constant 0 : index
    %c0_3 = arith.constant 0 : index
    %4 = vector.load %arg3[%c0_2, %c0_3] : memref<16x64xbf16, #tpu.memory_space<vmem>>, vector<16x64xbf16>
    %c0_4 = arith.constant 0 : index
    %c0_5 = arith.constant 0 : index
    %5 = vector.load %arg4[%c0_4, %c0_5] : memref<64x128xbf16, #tpu.memory_space<vmem>>, vector<64x128xbf16>
    %cst = arith.constant dense<0.000000e+00> : vector<16x128xf32>
    %6 = tpu.matmul %4, %5, %cst {dimension_numbers = #tpu.dot_dimension_numbers<[1], [0], [0], [1], [0, 0, 1, 1], [], []>} : vector<16x64xbf16>, vector<64x128xbf16>, vector<16x128xf32> -> vector<16x128xf32>
    %7 = arith.addf %3, %6 : vector<16x128xf32>
    %c0_6 = arith.constant 0 : index
    %c0_7 = arith.constant 0 : index
    %8 = vector.load %arg6[%c0_6, %c0_7] : memref<16x128xf32, #tpu.memory_space<vmem>>, vector<16x128xf32>
    tpu.vector_store %arg6[%c0_6, %c0_7], %7 {strides = array<i32>} : memref<16x128xf32, #tpu.memory_space<vmem>>, vector<16x128xf32>,
    %c0_i32_8 = arith.constant 0 : i32
    %9 = arith.cmpi eq, %arg2, %c0_i32_8 : i32
    %10 = arith.extui %9 : i1 to i32
    %c0_i32_9 = arith.constant 0 : i32
    %11 = arith.cmpi ne, %10, %c0_i32_9 : i32
    scf.if %11 {
      %c0_10 = arith.constant 0 : index
      %c0_11 = arith.constant 0 : index
      %12 = vector.load %arg6[%c0_10, %c0_11] : memref<16x128xf32, #tpu.memory_space<vmem>>, vector<16x128xf32>
      %13 = arith.truncf %12 : vector<16x128xf32> to vector<16x128xbf16>
      %c0_12 = arith.constant 0 : index
      %c0_13 = arith.constant 0 : index
      %14 = vector.load %arg5[%c0_12, %c0_13] : memref<16x128xbf16, #tpu.memory_space<vmem>>, vector<16x128xbf16>
      tpu.vector_store %arg5[%c0_12, %c0_13], %13 {strides = array<i32>} : memref<16x128xbf16, #tpu.memory_space<vmem>>, vector<16x128xbf16>,
    } else {
    }
    return
  }
  func.func @transform_0(%arg0: i32, %arg1: i32, %arg2: i32) -> (i32, i32) {
    %c0_i32 = arith.constant 0 : i32
    return %arg0, %arg2 : i32, i32
  }
  func.func @transform_1(%arg0: i32, %arg1: i32, %arg2: i32) -> (i32, i32) {
    %c0_i32 = arith.constant 0 : i32
    return %arg2, %arg1 : i32, i32
  }
  func.func @transform_2(%arg0: i32, %arg1: i32, %arg2: i32) -> (i32, i32) {
    %c0_i32 = arith.constant 0 : i32
    return %arg0, %arg1 : i32, i32
  }
}

module attributes {stable_mosaic.version = 11 : i64} {
  func.func @_scan_kernel(%arg0: i32, %arg1: i32, %arg2: i32, %arg3: memref<1x8x64xbf16, #tpu.memory_space<vmem>>, %arg4: memref<1x8x64xbf16, #tpu.memory_space<vmem>>, %arg5: memref<1x8x16xbf16, #tpu.memory_space<vmem>>, %arg6: memref<1x8x16xbf16, #tpu.memory_space<vmem>>, %arg7: memref<1x8x64xbf16, #tpu.memory_space<vmem>>, %arg8: memref<16x64xf32, #tpu.memory_space<vmem>>, %arg9: memref<1x64xf32, #tpu.memory_space<vmem>>, %arg10: memref<1x64xf32, #tpu.memory_space<vmem>>, %arg11: memref<1x8x64xbf16, #tpu.memory_space<vmem>>, %arg12: memref<16x64xf32, #tpu.memory_space<vmem>>, %arg13: memref<8x64xf32, #tpu.memory_space<vmem>>, %arg14: memref<8x16x64xf32, #tpu.memory_space<vmem>>, %arg15: memref<8x16x64xf32, #tpu.memory_space<vmem>>, %arg16: memref<8x64xf32, #tpu.memory_space<vmem>>) attributes {dimension_semantics = [#tpu.dimension_semantics<parallel>, #tpu.dimension_semantics<parallel>, #tpu.dimension_semantics<arbitrary>], iteration_bounds = array<i64: 2, 1, 1>, scalar_prefetch = 0 : i64, scratch_operands = 5 : i64, tpu.core_type = #tpu.core_type<tc>, window_params = [{transform_indices = @transform_0, window_bounds = array<i64: 1, 8, 64>}, {transform_indices = @transform_1, window_bounds = array<i64: 1, 8, 64>}, {transform_indices = @transform_2, window_bounds = array<i64: 1, 8, 16>}, {transform_indices = @transform_3, window_bounds = array<i64: 1, 8, 16>}, {transform_indices = @transform_4, window_bounds = array<i64: 1, 8, 64>}, {transform_indices = @transform_5, window_bounds = array<i64: 16, 64>}, {transform_indices = @transform_6, window_bounds = array<i64: 1, 64>}, {transform_indices = @transform_7, window_bounds = array<i64: 1, 64>}, {transform_indices = @transform_8, window_bounds = array<i64: 1, 8, 64>}]} {
    %c0_i32 = arith.constant 0 : i32
    %0 = arith.cmpi eq, %arg2, %c0_i32 : i32
    %1 = arith.extui %0 : i1 to i32
    %c0_i32_0 = arith.constant 0 : i32
    %2 = arith.cmpi ne, %1, %c0_i32_0 : i32
    scf.if %2 {
      %cst_44 = arith.constant 0.000000e+00 : f32
      %66 = vector.broadcast %cst_44 : f32 to vector<16x64xf32>
      %c0_45 = arith.constant 0 : index
      %c0_46 = arith.constant 0 : index
      %67 = vector.load %arg12[%c0_45, %c0_46] : memref<16x64xf32, #tpu.memory_space<vmem>>, vector<16x64xf32>
      tpu.vector_store %arg12[%c0_45, %c0_46], %66 {strides = array<i32>} : memref<16x64xf32, #tpu.memory_space<vmem>>, vector<16x64xf32>,
    } else {
    }
    %c0 = arith.constant 0 : index
    %c0_1 = arith.constant 0 : index
    %c0_2 = arith.constant 0 : index
    %3 = vector.load %arg4[%c0, %c0_1, %c0_2] : memref<1x8x64xbf16, #tpu.memory_space<vmem>>, vector<1x8x64xbf16>
    %4 = vector.shape_cast %3 : vector<1x8x64xbf16> to vector<8x64xbf16>
    %5 = arith.extf %4 : vector<8x64xbf16> to vector<8x64xf32>
    %c0_3 = arith.constant 0 : index
    %c0_4 = arith.constant 0 : index
    %6 = vector.load %arg10[%c0_3, %c0_4] : memref<1x64xf32, #tpu.memory_space<vmem>>, vector<1x64xf32>
    %7 = vector.broadcast %6 : vector<1x64xf32> to vector<8x64xf32>
    %8 = arith.addf %5, %7 : vector<8x64xf32>
    %cst = arith.constant 0.000000e+00 : f32
    %9 = vector.broadcast %cst : f32 to vector<8x64xf32>
    %10 = arith.maximumf %8, %9 : vector<8x64xf32>
    %11 = math.absf %8 : vector<8x64xf32>
    %cst_5 = arith.constant 0.000000e+00 : f32
    %12 = vector.broadcast %cst_5 : f32 to vector<8x64xf32>
    %13 = arith.subf %12, %11 : vector<8x64xf32>
    %14 = math.exp %13 : vector<8x64xf32>
    %cst_6 = arith.constant 1.000000e+00 : f32
    %15 = vector.broadcast %cst_6 : f32 to vector<8x64xf32>
    %16 = arith.addf %15, %14 : vector<8x64xf32>
    %17 = math.log %16 : vector<8x64xf32>
    %18 = arith.addf %10, %17 : vector<8x64xf32>
    %c0_7 = arith.constant 0 : index
    %c0_8 = arith.constant 0 : index
    %19 = vector.load %arg13[%c0_7, %c0_8] : memref<8x64xf32, #tpu.memory_space<vmem>>, vector<8x64xf32>
    tpu.vector_store %arg13[%c0_7, %c0_8], %18 {strides = array<i32>} : memref<8x64xf32, #tpu.memory_space<vmem>>, vector<8x64xf32>,
    %c0_9 = arith.constant 0 : index
    %c0_10 = arith.constant 0 : index
    %c0_11 = arith.constant 0 : index
    %20 = vector.load %arg3[%c0_9, %c0_10, %c0_11] : memref<1x8x64xbf16, #tpu.memory_space<vmem>>, vector<1x8x64xbf16>
    %21 = vector.shape_cast %20 : vector<1x8x64xbf16> to vector<8x64xbf16>
    %22 = arith.extf %21 : vector<8x64xbf16> to vector<8x64xf32>
    %23 = arith.mulf %18, %22 : vector<8x64xf32>
    %c0_12 = arith.constant 0 : index
    %c0_13 = arith.constant 0 : index
    %c0_14 = arith.constant 0 : index
    %24 = vector.load %arg5[%c0_12, %c0_13, %c0_14] : memref<1x8x16xbf16, #tpu.memory_space<vmem>>, vector<1x8x16xbf16>
    %25 = vector.shape_cast %24 : vector<1x8x16xbf16> to vector<8x16xbf16>
    %26 = arith.extf %25 : vector<8x16xbf16> to vector<8x16xf32>
    %c0_15 = arith.constant 0 : index
    %c0_16 = arith.constant 0 : index
    %c0_17 = arith.constant 0 : index
    %27 = vector.load %arg6[%c0_15, %c0_16, %c0_17] : memref<1x8x16xbf16, #tpu.memory_space<vmem>>, vector<1x8x16xbf16>
    %28 = vector.shape_cast %27 : vector<1x8x16xbf16> to vector<8x16xbf16>
    %29 = arith.extf %28 : vector<8x16xbf16> to vector<8x16xf32>
    %30 = vector.shape_cast %26 : vector<8x16xf32> to vector<8x16x1xf32>
    %31 = vector.shape_cast %23 : vector<8x64xf32> to vector<8x1x64xf32>
    %32 = vector.broadcast %30 : vector<8x16x1xf32> to vector<8x16x64xf32>
    %33 = vector.broadcast %31 : vector<8x1x64xf32> to vector<8x16x64xf32>
    %34 = arith.mulf %32, %33 : vector<8x16x64xf32>
    %c0_18 = arith.constant 0 : index
    %c0_19 = arith.constant 0 : index
    %c0_20 = arith.constant 0 : index
    %35 = vector.load %arg14[%c0_18, %c0_19, %c0_20] : memref<8x16x64xf32, #tpu.memory_space<vmem>>, vector<8x16x64xf32>
    tpu.vector_store %arg14[%c0_18, %c0_19, %c0_20], %34 {strides = array<i32>} : memref<8x16x64xf32, #tpu.memory_space<vmem>>, vector<8x16x64xf32>,
    %36 = vector.shape_cast %29 : vector<8x16xf32> to vector<8x16x1xf32>
    %37 = vector.shape_cast %36 : vector<8x16x1xf32> to vector<8x16x1xf32>
    %38 = vector.broadcast %37 : vector<8x16x1xf32> to vector<8x16x64xf32>
    %c0_21 = arith.constant 0 : index
    %c0_22 = arith.constant 0 : index
    %c0_23 = arith.constant 0 : index
    %39 = vector.load %arg15[%c0_21, %c0_22, %c0_23] : memref<8x16x64xf32, #tpu.memory_space<vmem>>, vector<8x16x64xf32>
    tpu.vector_store %arg15[%c0_21, %c0_22, %c0_23], %38 {strides = array<i32>} : memref<8x16x64xf32, #tpu.memory_space<vmem>>, vector<8x16x64xf32>,
    %c0_24 = arith.constant 0 : index
    %c0_25 = arith.constant 0 : index
    %40 = vector.load %arg8[%c0_24, %c0_25] : memref<16x64xf32, #tpu.memory_space<vmem>>, vector<16x64xf32>
    %c0_i32_26 = arith.constant 0 : i32
    %c8_i32 = arith.constant 8 : i32
    %41 = arith.addi %c0_i32_26, %c8_i32 : i32
    %c1_i32 = arith.constant 1 : i32
    scf.for %arg17 = %c0_i32_26 to %41 step %c1_i32  : i32 {
      %c1_i32_44 = arith.constant 1 : i32
      %66 = arith.muli %arg17, %c1_i32_44 : i32
      %c0_i32_45 = arith.constant 0 : i32
      %67 = arith.addi %c0_i32_45, %66 : i32
      %68 = arith.index_cast %67 : i32 to index
      %c0_46 = arith.constant 0 : index
      %69 = vector.load %arg13[%68, %c0_46] : memref<8x64xf32, #tpu.memory_space<vmem>>, vector<1x64xf32>
      %70 = vector.broadcast %69 : vector<1x64xf32> to vector<16x64xf32>
      %71 = arith.mulf %70, %40 : vector<16x64xf32>
      %72 = math.exp %71 : vector<16x64xf32>
      %c0_47 = arith.constant 0 : index
      %c0_48 = arith.constant 0 : index
      %73 = vector.load %arg12[%c0_47, %c0_48] : memref<16x64xf32, #tpu.memory_space<vmem>>, vector<16x64xf32>
      %74 = arith.mulf %72, %73 : vector<16x64xf32>
      %75 = arith.index_cast %67 : i32 to index
      %c0_49 = arith.constant 0 : index
      %c0_50 = arith.constant 0 : index
      %76 = vector.load %arg14[%75, %c0_49, %c0_50] : memref<8x16x64xf32, #tpu.memory_space<vmem>>, vector<1x16x64xf32>
      %77 = vector.shape_cast %76 : vector<1x16x64xf32> to vector<16x64xf32>
      %78 = arith.addf %74, %77 : vector<16x64xf32>
      %c0_51 = arith.constant 0 : index
      %c0_52 = arith.constant 0 : index
      %79 = vector.load %arg12[%c0_51, %c0_52] : memref<16x64xf32, #tpu.memory_space<vmem>>, vector<16x64xf32>
      tpu.vector_store %arg12[%c0_51, %c0_52], %78 {strides = array<i32>} : memref<16x64xf32, #tpu.memory_space<vmem>>, vector<16x64xf32>,
      %80 = arith.index_cast %67 : i32 to index
      %c0_53 = arith.constant 0 : index
      %c0_54 = arith.constant 0 : index
      %81 = vector.load %arg15[%80, %c0_53, %c0_54] : memref<8x16x64xf32, #tpu.memory_space<vmem>>, vector<1x16x64xf32>
      %82 = vector.shape_cast %81 : vector<1x16x64xf32> to vector<16x64xf32>
      %83 = arith.mulf %82, %78 : vector<16x64xf32>
      %cst_55 = arith.constant dense<0.000000e+00> : vector<64xf32>
      %84 = vector.multi_reduction <add>, %83, %cst_55 [0] : vector<16x64xf32> to vector<64xf32>
      %85 = vector.shape_cast %84 : vector<64xf32> to vector<1x64xf32>
      %86 = arith.index_cast %67 : i32 to index
      %c0_56 = arith.constant 0 : index
      %87 = vector.load %arg16[%86, %c0_56] : memref<8x64xf32, #tpu.memory_space<vmem>>, vector<1x64xf32>
      tpu.vector_store %arg16[%86, %c0_56], %85 {strides = array<i32>} : memref<8x64xf32, #tpu.memory_space<vmem>>, vector<1x64xf32>,
    }
    %c8_i32_27 = arith.constant 8 : i32
    %c0_28 = arith.constant 0 : index
    %c0_29 = arith.constant 0 : index
    %c0_30 = arith.constant 0 : index
    %42 = vector.load %arg7[%c0_28, %c0_29, %c0_30] : memref<1x8x64xbf16, #tpu.memory_space<vmem>>, vector<1x8x64xbf16>
    %43 = vector.shape_cast %42 : vector<1x8x64xbf16> to vector<8x64xbf16>
    %44 = arith.extf %43 : vector<8x64xbf16> to vector<8x64xf32>
    %c0_31 = arith.constant 0 : index
    %c0_32 = arith.constant 0 : index
    %45 = vector.load %arg16[%c0_31, %c0_32] : memref<8x64xf32, #tpu.memory_space<vmem>>, vector<8x64xf32>
    %c0_33 = arith.constant 0 : index
    %c0_34 = arith.constant 0 : index
    %c0_35 = arith.constant 0 : index
    %46 = vector.load %arg3[%c0_33, %c0_34, %c0_35] : memref<1x8x64xbf16, #tpu.memory_space<vmem>>, vector<1x8x64xbf16>
    %47 = vector.shape_cast %46 : vector<1x8x64xbf16> to vector<8x64xbf16>
    %48 = arith.extf %47 : vector<8x64xbf16> to vector<8x64xf32>
    %c0_36 = arith.constant 0 : index
    %c0_37 = arith.constant 0 : index
    %49 = vector.load %arg9[%c0_36, %c0_37] : memref<1x64xf32, #tpu.memory_space<vmem>>, vector<1x64xf32>
    %50 = vector.broadcast %49 : vector<1x64xf32> to vector<8x64xf32>
    %51 = arith.mulf %48, %50 : vector<8x64xf32>
    %52 = arith.addf %45, %51 : vector<8x64xf32>
    %cst_38 = arith.constant 0.000000e+00 : f32
    %53 = vector.broadcast %cst_38 : f32 to vector<8x64xf32>
    %54 = arith.subf %53, %44 : vector<8x64xf32>
    %55 = math.exp %54 : vector<8x64xf32>
    %cst_39 = arith.constant 1.000000e+00 : f32
    %56 = vector.broadcast %cst_39 : f32 to vector<8x64xf32>
    %57 = arith.addf %56, %55 : vector<8x64xf32>
    %cst_40 = arith.constant 1.000000e+00 : f32
    %58 = vector.broadcast %cst_40 : f32 to vector<8x64xf32>
    %59 = arith.divf %58, %57 : vector<8x64xf32>
    %60 = arith.mulf %44, %59 : vector<8x64xf32>
    %61 = arith.mulf %52, %60 : vector<8x64xf32>
    %62 = arith.truncf %61 : vector<8x64xf32> to vector<8x64xbf16>
    %c0_41 = arith.constant 0 : index
    %c0_42 = arith.constant 0 : index
    %c0_43 = arith.constant 0 : index
    %63 = vector.load %arg11[%c0_41, %c0_42, %c0_43] : memref<1x8x64xbf16, #tpu.memory_space<vmem>>, vector<1x8x64xbf16>
    %64 = vector.shape_cast %63 : vector<1x8x64xbf16> to vector<8x64xbf16>
    %65 = vector.shape_cast %62 : vector<8x64xbf16> to vector<1x8x64xbf16>
    tpu.vector_store %arg11[%c0_41, %c0_42, %c0_43], %65 {strides = array<i32>} : memref<1x8x64xbf16, #tpu.memory_space<vmem>>, vector<1x8x64xbf16>,
    return
  }
  func.func @transform_0(%arg0: i32, %arg1: i32, %arg2: i32) -> (i32, i32, i32) {
    %c0_i32 = arith.constant 0 : i32
    return %arg0, %arg2, %arg1 : i32, i32, i32
  }
  func.func @transform_1(%arg0: i32, %arg1: i32, %arg2: i32) -> (i32, i32, i32) {
    %c0_i32 = arith.constant 0 : i32
    return %arg0, %arg2, %arg1 : i32, i32, i32
  }
  func.func @transform_2(%arg0: i32, %arg1: i32, %arg2: i32) -> (i32, i32, i32) {
    %c0_i32 = arith.constant 0 : i32
    %c0_i32_0 = arith.constant 0 : i32
    return %arg0, %arg2, %c0_i32 : i32, i32, i32
  }
  func.func @transform_3(%arg0: i32, %arg1: i32, %arg2: i32) -> (i32, i32, i32) {
    %c0_i32 = arith.constant 0 : i32
    %c0_i32_0 = arith.constant 0 : i32
    return %arg0, %arg2, %c0_i32 : i32, i32, i32
  }
  func.func @transform_4(%arg0: i32, %arg1: i32, %arg2: i32) -> (i32, i32, i32) {
    %c0_i32 = arith.constant 0 : i32
    return %arg0, %arg2, %arg1 : i32, i32, i32
  }
  func.func @transform_5(%arg0: i32, %arg1: i32, %arg2: i32) -> (i32, i32) {
    %c0_i32 = arith.constant 0 : i32
    %c0_i32_0 = arith.constant 0 : i32
    return %c0_i32, %arg1 : i32, i32
  }
  func.func @transform_6(%arg0: i32, %arg1: i32, %arg2: i32) -> (i32, i32) {
    %c0_i32 = arith.constant 0 : i32
    %c0_i32_0 = arith.constant 0 : i32
    return %c0_i32, %arg1 : i32, i32
  }
  func.func @transform_7(%arg0: i32, %arg1: i32, %arg2: i32) -> (i32, i32) {
    %c0_i32 = arith.constant 0 : i32
    %c0_i32_0 = arith.constant 0 : i32
    return %c0_i32, %arg1 : i32, i32
  }
  func.func @transform_8(%arg0: i32, %arg1: i32, %arg2: i32) -> (i32, i32, i32) {
    %c0_i32 = arith.constant 0 : i32
    return %arg0, %arg2, %arg1 : i32, i32, i32
  }
}

module attributes {stable_mosaic.version = 11 : i64} {
  func.func @_dual_out_gate_kernel(%arg0: i32, %arg1: i32, %arg2: memref<16x64xbf16, #tpu.memory_space<vmem>>, %arg3: memref<16x64xbf16, #tpu.memory_space<vmem>>, %arg4: memref<64x32xbf16, #tpu.memory_space<vmem>>, %arg5: memref<64x32xbf16, #tpu.memory_space<vmem>>, %arg6: memref<16x32xf32, #tpu.memory_space<vmem>>, %arg7: memref<16x32xf32, #tpu.memory_space<vmem>>, %arg8: memref<16x32xf32, #tpu.memory_space<vmem>>, %arg9: memref<16x32xf32, #tpu.memory_space<vmem>>, %arg10: memref<16x32xf32, #tpu.memory_space<vmem>>) attributes {dimension_semantics = [#tpu.dimension_semantics<parallel>, #tpu.dimension_semantics<arbitrary>], iteration_bounds = array<i64: 1, 1>, scalar_prefetch = 0 : i64, scratch_operands = 1 : i64, tpu.core_type = #tpu.core_type<tc>, window_params = [{transform_indices = @transform_0, window_bounds = array<i64: 16, 64>}, {transform_indices = @transform_1, window_bounds = array<i64: 16, 64>}, {transform_indices = @transform_2, window_bounds = array<i64: 64, 32>}, {transform_indices = @transform_3, window_bounds = array<i64: 64, 32>}, {transform_indices = @transform_4, window_bounds = array<i64: 16, 32>}, {transform_indices = @transform_5, window_bounds = array<i64: 16, 32>}, {transform_indices = @transform_6, window_bounds = array<i64: 16, 32>}, {transform_indices = @transform_7, window_bounds = array<i64: 16, 32>}]} {
    %c0_i32 = arith.constant 0 : i32
    %0 = arith.cmpi eq, %arg1, %c0_i32 : i32
    %1 = arith.extui %0 : i1 to i32
    %c0_i32_0 = arith.constant 0 : i32
    %2 = arith.cmpi ne, %1, %c0_i32_0 : i32
    scf.if %2 {
      %cst_15 = arith.constant 0.000000e+00 : f32
      %16 = vector.broadcast %cst_15 : f32 to vector<16x32xf32>
      %c0_16 = arith.constant 0 : index
      %c0_17 = arith.constant 0 : index
      %17 = vector.load %arg10[%c0_16, %c0_17] : memref<16x32xf32, #tpu.memory_space<vmem>>, vector<16x32xf32>
      tpu.vector_store %arg10[%c0_16, %c0_17], %16 {strides = array<i32>} : memref<16x32xf32, #tpu.memory_space<vmem>>, vector<16x32xf32>,
    } else {
    }
    %c0 = arith.constant 0 : index
    %c0_1 = arith.constant 0 : index
    %3 = vector.load %arg10[%c0, %c0_1] : memref<16x32xf32, #tpu.memory_space<vmem>>, vector<16x32xf32>
    %c0_2 = arith.constant 0 : index
    %c0_3 = arith.constant 0 : index
    %4 = vector.load %arg2[%c0_2, %c0_3] : memref<16x64xbf16, #tpu.memory_space<vmem>>, vector<16x64xbf16>
    %c0_4 = arith.constant 0 : index
    %c0_5 = arith.constant 0 : index
    %5 = vector.load %arg4[%c0_4, %c0_5] : memref<64x32xbf16, #tpu.memory_space<vmem>>, vector<64x32xbf16>
    %cst = arith.constant dense<0.000000e+00> : vector<16x32xf32>
    %6 = tpu.matmul %4, %5, %cst {dimension_numbers = #tpu.dot_dimension_numbers<[1], [0], [0], [1], [0, 0, 1, 1], [], []>} : vector<16x64xbf16>, vector<64x32xbf16>, vector<16x32xf32> -> vector<16x32xf32>
    %c0_6 = arith.constant 0 : index
    %c0_7 = arith.constant 0 : index
    %7 = vector.load %arg3[%c0_6, %c0_7] : memref<16x64xbf16, #tpu.memory_space<vmem>>, vector<16x64xbf16>
    %c0_8 = arith.constant 0 : index
    %c0_9 = arith.constant 0 : index
    %8 = vector.load %arg5[%c0_8, %c0_9] : memref<64x32xbf16, #tpu.memory_space<vmem>>, vector<64x32xbf16>
    %cst_10 = arith.constant dense<0.000000e+00> : vector<16x32xf32>
    %9 = tpu.matmul %7, %8, %cst_10 {dimension_numbers = #tpu.dot_dimension_numbers<[1], [0], [0], [1], [0, 0, 1, 1], [], []>} : vector<16x64xbf16>, vector<64x32xbf16>, vector<16x32xf32> -> vector<16x32xf32>
    %10 = arith.addf %6, %9 : vector<16x32xf32>
    %11 = arith.addf %3, %10 : vector<16x32xf32>
    %c0_11 = arith.constant 0 : index
    %c0_12 = arith.constant 0 : index
    %12 = vector.load %arg10[%c0_11, %c0_12] : memref<16x32xf32, #tpu.memory_space<vmem>>, vector<16x32xf32>
    tpu.vector_store %arg10[%c0_11, %c0_12], %11 {strides = array<i32>} : memref<16x32xf32, #tpu.memory_space<vmem>>, vector<16x32xf32>,
    %c0_i32_13 = arith.constant 0 : i32
    %13 = arith.cmpi eq, %arg1, %c0_i32_13 : i32
    %14 = arith.extui %13 : i1 to i32
    %c0_i32_14 = arith.constant 0 : i32
    %15 = arith.cmpi ne, %14, %c0_i32_14 : i32
    scf.if %15 {
      %c0_15 = arith.constant 0 : index
      %c0_16 = arith.constant 0 : index
      %16 = vector.load %arg10[%c0_15, %c0_16] : memref<16x32xf32, #tpu.memory_space<vmem>>, vector<16x32xf32>
      %cst_17 = arith.constant 5.000000e-01 : f32
      %17 = vector.broadcast %cst_17 : f32 to vector<16x32xf32>
      %18 = arith.mulf %16, %17 : vector<16x32xf32>
      %c0_18 = arith.constant 0 : index
      %c0_19 = arith.constant 0 : index
      %19 = vector.load %arg6[%c0_18, %c0_19] : memref<16x32xf32, #tpu.memory_space<vmem>>, vector<16x32xf32>
      %c0_20 = arith.constant 0 : index
      %c0_21 = arith.constant 0 : index
      %20 = vector.load %arg8[%c0_20, %c0_21] : memref<16x32xf32, #tpu.memory_space<vmem>>, vector<16x32xf32>
      tpu.vector_store %arg8[%c0_20, %c0_21], %18 {strides = array<i32>} : memref<16x32xf32, #tpu.memory_space<vmem>>, vector<16x32xf32>,
      %cst_22 = arith.constant 1.000000e+00 : f32
      %21 = vector.broadcast %cst_22 : f32 to vector<16x32xf32>
      %22 = arith.subf %21, %19 : vector<16x32xf32>
      %23 = arith.mulf %22, %18 : vector<16x32xf32>
      %c0_23 = arith.constant 0 : index
      %c0_24 = arith.constant 0 : index
      %24 = vector.load %arg7[%c0_23, %c0_24] : memref<16x32xf32, #tpu.memory_space<vmem>>, vector<16x32xf32>
      %25 = arith.mulf %19, %24 : vector<16x32xf32>
      %26 = arith.addf %23, %25 : vector<16x32xf32>
      %c0_25 = arith.constant 0 : index
      %c0_26 = arith.constant 0 : index
      %27 = vector.load %arg9[%c0_25, %c0_26] : memref<16x32xf32, #tpu.memory_space<vmem>>, vector<16x32xf32>
      tpu.vector_store %arg9[%c0_25, %c0_26], %26 {strides = array<i32>} : memref<16x32xf32, #tpu.memory_space<vmem>>, vector<16x32xf32>,
    } else {
    }
    return
  }
  func.func @transform_0(%arg0: i32, %arg1: i32) -> (i32, i32) {
    %c0_i32 = arith.constant 0 : i32
    return %arg0, %arg1 : i32, i32
  }
  func.func @transform_1(%arg0: i32, %arg1: i32) -> (i32, i32) {
    %c0_i32 = arith.constant 0 : i32
    return %arg0, %arg1 : i32, i32
  }
  func.func @transform_2(%arg0: i32, %arg1: i32) -> (i32, i32) {
    %c0_i32 = arith.constant 0 : i32
    %c0_i32_0 = arith.constant 0 : i32
    return %arg1, %c0_i32 : i32, i32
  }
  func.func @transform_3(%arg0: i32, %arg1: i32) -> (i32, i32) {
    %c0_i32 = arith.constant 0 : i32
    %c0_i32_0 = arith.constant 0 : i32
    return %arg1, %c0_i32 : i32, i32
  }
  func.func @transform_4(%arg0: i32, %arg1: i32) -> (i32, i32) {
    %c0_i32 = arith.constant 0 : i32
    %c0_i32_0 = arith.constant 0 : i32
    return %arg0, %c0_i32 : i32, i32
  }
  func.func @transform_5(%arg0: i32, %arg1: i32) -> (i32, i32) {
    %c0_i32 = arith.constant 0 : i32
    %c0_i32_0 = arith.constant 0 : i32
    return %arg0, %c0_i32 : i32, i32
  }
  func.func @transform_6(%arg0: i32, %arg1: i32) -> (i32, i32) {
    %c0_i32 = arith.constant 0 : i32
    %c0_i32_0 = arith.constant 0 : i32
    return %arg0, %c0_i32 : i32, i32
  }
  func.func @transform_7(%arg0: i32, %arg1: i32) -> (i32, i32) {
    %c0_i32 = arith.constant 0 : i32
    %c0_i32_0 = arith.constant 0 : i32
    return %arg0, %c0_i32 : i32, i32
  }
}

module attributes {stable_mosaic.version = 11 : i64} {
  func.func @_add_ln_kernel(%arg0: i32, %arg1: memref<16x32xf32, #tpu.memory_space<vmem>>, %arg2: memref<16x32xf32, #tpu.memory_space<vmem>>, %arg3: memref<1x32xf32, #tpu.memory_space<vmem>>, %arg4: memref<1x32xf32, #tpu.memory_space<vmem>>, %arg5: memref<16x32xf32, #tpu.memory_space<vmem>>) attributes {dimension_semantics = [#tpu.dimension_semantics<parallel>], iteration_bounds = array<i64: 1>, scalar_prefetch = 0 : i64, scratch_operands = 0 : i64, tpu.core_type = #tpu.core_type<tc>, window_params = [{transform_indices = @transform_0, window_bounds = array<i64: 16, 32>}, {transform_indices = @transform_1, window_bounds = array<i64: 16, 32>}, {pipeline_mode = #tpu.pipeline_mode<synchronous>, transform_indices = @transform_2, window_bounds = array<i64: 1, 32>}, {pipeline_mode = #tpu.pipeline_mode<synchronous>, transform_indices = @transform_3, window_bounds = array<i64: 1, 32>}, {transform_indices = @transform_4, window_bounds = array<i64: 16, 32>}]} {
    %c0 = arith.constant 0 : index
    %c0_0 = arith.constant 0 : index
    %0 = vector.load %arg1[%c0, %c0_0] : memref<16x32xf32, #tpu.memory_space<vmem>>, vector<16x32xf32>
    %c0_1 = arith.constant 0 : index
    %c0_2 = arith.constant 0 : index
    %1 = vector.load %arg2[%c0_1, %c0_2] : memref<16x32xf32, #tpu.memory_space<vmem>>, vector<16x32xf32>
    %2 = arith.addf %0, %1 : vector<16x32xf32>
    %c0_3 = arith.constant 0 : index
    %c0_4 = arith.constant 0 : index
    %3 = vector.load %arg3[%c0_3, %c0_4] : memref<1x32xf32, #tpu.memory_space<vmem>>, vector<1x32xf32>
    %c0_5 = arith.constant 0 : index
    %c0_6 = arith.constant 0 : index
    %4 = vector.load %arg4[%c0_5, %c0_6] : memref<1x32xf32, #tpu.memory_space<vmem>>, vector<1x32xf32>
    %cst = arith.constant dense<0.000000e+00> : vector<16xf32>
    %5 = vector.multi_reduction <add>, %2, %cst [1] : vector<16x32xf32> to vector<16xf32>
    %6 = vector.shape_cast %5 : vector<16xf32> to vector<16x1xf32>
    %cst_7 = arith.constant 3.200000e+01 : f32
    %7 = vector.broadcast %cst_7 : f32 to vector<16x1xf32>
    %8 = arith.divf %6, %7 : vector<16x1xf32>
    %9 = vector.broadcast %8 : vector<16x1xf32> to vector<16x32xf32>
    %10 = arith.subf %2, %9 : vector<16x32xf32>
    %11 = arith.mulf %10, %10 : vector<16x32xf32>
    %cst_8 = arith.constant dense<0.000000e+00> : vector<16xf32>
    %12 = vector.multi_reduction <add>, %11, %cst_8 [1] : vector<16x32xf32> to vector<16xf32>
    %13 = vector.shape_cast %12 : vector<16xf32> to vector<16x1xf32>
    %cst_9 = arith.constant 3.200000e+01 : f32
    %14 = vector.broadcast %cst_9 : f32 to vector<16x1xf32>
    %15 = arith.divf %13, %14 : vector<16x1xf32>
    %cst_10 = arith.constant 9.99999974E-6 : f32
    %16 = vector.broadcast %cst_10 : f32 to vector<16x1xf32>
    %17 = arith.addf %15, %16 : vector<16x1xf32>
    %18 = math.rsqrt %17 : vector<16x1xf32>
    %19 = vector.broadcast %18 : vector<16x1xf32> to vector<16x32xf32>
    %20 = arith.mulf %10, %19 : vector<16x32xf32>
    %21 = vector.broadcast %3 : vector<1x32xf32> to vector<16x32xf32>
    %22 = arith.mulf %20, %21 : vector<16x32xf32>
    %23 = vector.broadcast %4 : vector<1x32xf32> to vector<16x32xf32>
    %24 = arith.addf %22, %23 : vector<16x32xf32>
    %c0_11 = arith.constant 0 : index
    %c0_12 = arith.constant 0 : index
    %25 = vector.load %arg5[%c0_11, %c0_12] : memref<16x32xf32, #tpu.memory_space<vmem>>, vector<16x32xf32>
    tpu.vector_store %arg5[%c0_11, %c0_12], %24 {strides = array<i32>} : memref<16x32xf32, #tpu.memory_space<vmem>>, vector<16x32xf32>,
    return
  }
  func.func @transform_0(%arg0: i32) -> (i32, i32) {
    %c0_i32 = arith.constant 0 : i32
    %c0_i32_0 = arith.constant 0 : i32
    return %arg0, %c0_i32 : i32, i32
  }
  func.func @transform_1(%arg0: i32) -> (i32, i32) {
    %c0_i32 = arith.constant 0 : i32
    %c0_i32_0 = arith.constant 0 : i32
    return %arg0, %c0_i32 : i32, i32
  }
  func.func @transform_2(%arg0: i32) -> (i32, i32) {
    %c0_i32 = arith.constant 0 : i32
    %c0_i32_0 = arith.constant 0 : i32
    %c0_i32_1 = arith.constant 0 : i32
    return %c0_i32, %c0_i32_0 : i32, i32
  }
  func.func @transform_3(%arg0: i32) -> (i32, i32) {
    %c0_i32 = arith.constant 0 : i32
    %c0_i32_0 = arith.constant 0 : i32
    %c0_i32_1 = arith.constant 0 : i32
    return %c0_i32, %c0_i32_0 : i32, i32
  }
  func.func @transform_4(%arg0: i32) -> (i32, i32) {
    %c0_i32 = arith.constant 0 : i32
    %c0_i32_0 = arith.constant 0 : i32
    return %arg0, %c0_i32 : i32, i32
  }
}

</mosaic_0001>

<llo_original>
// kernel: mixer_model_forward.15
$region0: #{mixer_model_forward.15}
  #allocation0 [shape = 'u32[]', space=smem, size = 0x4, offset = 0x4, fixed_abs, tag = 'smem constant byte address 0x4 - core index']
  #allocation1 [shape = 'u32[144,128]{1,0:T(1,128)}', space=vmem, size = 0x12000, scoped, tag = 'internal scratch']
  %s0 = inlined_call_operand.vmem [shape: f32[16,32], index: 0, kind: input, shape index: {}]
  %s1 = inlined_call_operand.vmem [shape: f32[16,32], index: 1, kind: input, shape index: {}]
  %s2 = inlined_call_operand.vmem [shape: f32[1,32], index: 2, kind: input, shape index: {}, may-alias: {2,4}]
  %s3 = inlined_call_operand.vmem [shape: f32[1,32], index: 3, kind: input, shape index: {}, may-alias: {3,5}]
  %s4 = inlined_call_operand.vmem [shape: f32[1,32], index: 4, kind: input, shape index: {}, may-alias: {2,4}]
  %s5 = inlined_call_operand.vmem [shape: f32[1,32], index: 5, kind: input, shape index: {}, may-alias: {3,5}]
  %s6 = inlined_call_operand.vmem [shape: f32[16,32], index: 6, kind: output, shape index: {0}]
  %s7 = inlined_call_operand.vmem [shape: bf16[16,32], index: 7, kind: output, shape index: {1}]
  %s8 = inlined_call_operand.vmem [shape: bf16[16,32], index: 8, kind: output, shape index: {2}]
  %9 = xla_tuple %s6, %s7, %s8
  %s10 = sld [smem:[#allocation0]]
  $region50: #{mixer_model_forward.15} parent=0
    _
  %s12 = ssub.s32 1, %s10
  %s13 = scalar_select 0, %s12, %s10
  // Predicated region
  $region2: #{mixer_model_forward.15} parent=0 // pred_check
    _
  $region3: #{mixer_model_forward.15} parent=0 // pred_check_branch
    %15 = sbr.rel (0) target = $region5
  $region4: #{mixer_model_forward.15} parent=0 // pred_region
    _
  $region5: #{mixer_model_forward.15} parent=0 // pred_fallthru
    _
  // Predicated region
  $region6: #{mixer_model_forward.15} parent=0 // pred_check
    _
  $region7: #{mixer_model_forward.15} parent=0 // pred_check_branch
    %17 = sbr.rel (0) target = $region9
  $region8: #{mixer_model_forward.15} parent=0 // pred_region
    _
  $region9: #{mixer_model_forward.15} parent=0 // pred_fallthru
    _
  // Predicated region
  $region10: #{mixer_model_forward.15} parent=0 // pred_check
    _
  $region11: #{mixer_model_forward.15} parent=0 // pred_check_branch
    %19 = sbr.rel (0) target = $region13
  $region12: #{mixer_model_forward.15} parent=0 // pred_region
    _
  $region13: #{mixer_model_forward.15} parent=0 // pred_fallthru
    _
  // Predicated region
  $region14: #{mixer_model_forward.15} parent=0 // pred_check
    _
  $region15: #{mixer_model_forward.15} parent=0 // pred_check_branch
    %21 = sbr.rel (0) target = $region17
  $region16: #{mixer_model_forward.15} parent=0 // pred_region
    _
  $region17: #{mixer_model_forward.15} parent=0 // pred_fallthru
    _
  // Predicated region
  $region18: #{mixer_model_forward.15} parent=0 // pred_check
    _
  $region19: #{mixer_model_forward.15} parent=0 // pred_check_branch
    %23 = sbr.rel (0) target = $region21
  $region20: #{mixer_model_forward.15} parent=0 // pred_region
    _
  $region21: #{mixer_model_forward.15} parent=0 // pred_fallthru
    _
  // Predicated region
  $region22: #{mixer_model_forward.15} parent=0 // pred_check
    _
  $region23: #{mixer_model_forward.15} parent=0 // pred_check_branch
    %25 = sbr.rel (0) target = $region25
  $region24: #{mixer_model_forward.15} parent=0 // pred_region
    _
  $region25: #{mixer_model_forward.15} parent=0 // pred_fallthru
    _
  %v26 = vld [vmem:[%s0] sm:$0xff]
  %v27 = vld [vmem:[%s0 + $0x8] sm:$0xff]
  %v28 = vld [vmem:[%s1] sm:$0xff]
  %v29 = vld [vmem:[%s1 + $0x8] sm:$0xff]
  %v30 = vadd.f32 %v26, %v28
  %v31 = vadd.f32 %v27, %v29
  %vm32 = vcmask 261120
  %33 = vst.msk [vmem:[%s6] sm:$0xff] %vm32, %v30
  %34 = vst.msk [vmem:[%s6 + $0x8] sm:$0xff] %vm32, %v31
  %v35 = vsel %vm32, %v30, 0.0
  %36 = vadd.xlane.f32.xlu0 %v35
  %v37 = vpop.xlane.xlu0 %36
  %v38 = vsel %vm32, %v31, 0.0
  %39 = vadd.xlane.f32.xlu0 %v38
  %v40 = vpop.xlane.xlu0 %39
  %v41 = vrcp.pop 32.0
  %v42 = vmul.f32 %v37, %v41
  %v43 = vmul.f32 %v40, %v41
  %v44 = vsub.f32 %v30, %v42
  %v45 = vsub.f32 %v31, %v43
  %v46 = vmul.f32 %v44, %v44
  %v47 = vmul.f32 %v45, %v45
  %v48 = vsel %vm32, %v46, 0.0
  %49 = vadd.xlane.f32.xlu0 %v48
  %v50 = vpop.xlane.xlu0 %49
  %v51 = vsel %vm32, %v47, 0.0
  %52 = vadd.xlane.f32.xlu0 %v51
  %v53 = vpop.xlane.xlu0 %52
  %v54 = vmul.f32 %v50, %v41
  %v55 = vmul.f32 %v53, %v41
  %v56 = vadd.f32 %v54, 1e-05
  %v57 = vadd.f32 %v55, 1e-05
  %v58 = vrsqrt.pop %v56
  %v59 = vrsqrt.pop %v57
  %v60 = vmul.f32 %v44, %v58
  %v61 = vmul.f32 %v45, %v59
  %v62 = vld [vmem:[%s2] sm:$0x1]
  %v64 = vlaneseq
  %v65 = vshrl.u32 %v64, 7
  %v66 = vsub.s32 0, %v65
  %v67 = vrot.slane %v62, %v66
  %v69 = vmul.f32 %v60, %v67
  %v70 = vmul.f32 %v61, %v67
  %v71 = vld [vmem:[%s3] sm:$0x1]
  %v73 = vlaneseq
  %v74 = vshrl.u32 %v73, 7
  %v75 = vsub.s32 0, %v74
  %v76 = vrot.slane %v71, %v75
  %v78 = vadd.f32 %v69, %v76
  %v79 = vadd.f32 %v70, %v76
  %v80 = vpack.c.bf16 %v79, %v78
  %v82 = vunpack.c.l.b16 %v80
  %v83 = vunpack.c.h.b16 %v80
  %v84 = vpack.c.b16 %v82, %v82
  %v85 = vpack.c.b16 %v83, %v83
  %vm88 = vcmask 257024
  %89 = vst.msk [vmem:[%s7] sm:$0xf] %vm88, %v84
  %90 = vst.msk [vmem:[%s7 + $0x4] sm:$0xf] %vm88, %v85
  %v91 = vld [vmem:[%s4] sm:$0x1]
  %v93 = vlaneseq
  %v94 = vshrl.u32 %v93, 7
  %v95 = vsub.s32 0, %v94
  %v96 = vrot.slane %v91, %v95
  %v98 = vmul.f32 %v60, %v96
  %v99 = vmul.f32 %v61, %v96
  %v100 = vld [vmem:[%s5] sm:$0x1]
  %v102 = vlaneseq
  %v103 = vshrl.u32 %v102, 7
  %v104 = vsub.s32 0, %v103
  %v105 = vrot.slane %v100, %v104
  %v107 = vadd.f32 %v98, %v105
  %v108 = vadd.f32 %v99, %v105
  %v109 = vpack.c.bf16 %v108, %v107
  %v111 = vunpack.c.l.b16 %v109
  %v112 = vunpack.c.h.b16 %v109
  %v113 = vpack.c.b16 %v111, %v111
  %v114 = vpack.c.b16 %v112, %v112
  %117 = vst.msk [vmem:[%s8] sm:$0xf] %vm88, %v113
  %118 = vst.msk [vmem:[%s8 + $0x4] sm:$0xf] %vm88, %v114
  // Predicated region
  $region26: #{mixer_model_forward.15} parent=0 // pred_check
    _
  $region27: #{mixer_model_forward.15} parent=0 // pred_check_branch
    %120 = sbr.rel (0) target = $region29
  $region28: #{mixer_model_forward.15} parent=0 // pred_region
    _
  $region29: #{mixer_model_forward.15} parent=0 // pred_fallthru
    _
  // Predicated region
  $region30: #{mixer_model_forward.15} parent=0 // pred_check
    _
  $region31: #{mixer_model_forward.15} parent=0 // pred_check_branch
    %122 = sbr.rel (0) target = $region33
  $region32: #{mixer_model_forward.15} parent=0 // pred_region
    _
  $region33: #{mixer_model_forward.15} parent=0 // pred_fallthru
    _
  // Predicated region
  $region34: #{mixer_model_forward.15} parent=0 // pred_check
    _
  $region35: #{mixer_model_forward.15} parent=0 // pred_check_branch
    %124 = sbr.rel (0) target = $region37
  $region36: #{mixer_model_forward.15} parent=0 // pred_region
    _
  $region37: #{mixer_model_forward.15} parent=0 // pred_fallthru
    _
  // Predicated region
  $region38: #{mixer_model_forward.15} parent=0 // pred_check
    _
  $region39: #{mixer_model_forward.15} parent=0 // pred_check_branch
    %126 = sbr.rel (0) target = $region41
  $region40: #{mixer_model_forward.15} parent=0 // pred_region
    _
  $region41: #{mixer_model_forward.15} parent=0 // pred_fallthru
    _
  // Predicated region
  $region42: #{mixer_model_forward.15} parent=0 // pred_check
    _
  $region43: #{mixer_model_forward.15} parent=0 // pred_check_branch
    %128 = sbr.rel (0) target = $region45
  $region44: #{mixer_model_forward.15} parent=0 // pred_region
    _
  $region45: #{mixer_model_forward.15} parent=0 // pred_fallthru
    _
  // Predicated region
  $region46: #{mixer_model_forward.15} parent=0 // pred_check
    _
  $region47: #{mixer_model_forward.15} parent=0 // pred_check_branch
    %130 = sbr.rel (0) target = $region49
  $region48: #{mixer_model_forward.15} parent=0 // pred_region
    _
  $region49: #{mixer_model_forward.15} parent=0 // pred_fallthru
    _

// kernel: mixer_model_forward.21
$region0: #{mixer_model_forward.21}
  #allocation0 [shape = 'u32[]', space=smem, size = 0x4, offset = 0x4, fixed_abs, tag = 'smem constant byte address 0x4 - core index']
  #allocation1 [shape = 'u32[144,128]{1,0:T(1,128)}', space=vmem, size = 0x12000, scoped, tag = 'internal scratch']
  #allocation2 [shape = 'f32[16,128]{1,0:T(8,128)}', space=vmem, size = 0x2000, scoped, tag = 'scratch operand']
  %s0 = inlined_call_operand.vmem [shape: bf16[16,32], index: 0, kind: input, shape index: {}]
  %s1 = inlined_call_operand.vmem [shape: bf16[32,128], index: 1, kind: input, shape index: {}]
  %s2 = inlined_call_operand.vmem [shape: bf16[16,128], index: 2, kind: output, shape index: {}]
  %s3 = sld [smem:[#allocation0]]
  $region26: #{mixer_model_forward.21} parent=0
    _
  %s5 = ssub.s32 1, %s3
  %s6 = scalar_select 0, %s5, %s3
  // Predicated region
  $region2: #{mixer_model_forward.21} parent=0 // pred_check
    _
  $region3: #{mixer_model_forward.21} parent=0 // pred_check_branch
    %8 = sbr.rel (0) target = $region5
  $region4: #{mixer_model_forward.21} parent=0 // pred_region
    _
  $region5: #{mixer_model_forward.21} parent=0 // pred_fallthru
    _
  // Predicated region
  $region6: #{mixer_model_forward.21} parent=0 // pred_check
    _
  $region7: #{mixer_model_forward.21} parent=0 // pred_check_branch
    %10 = sbr.rel (0) target = $region9
  $region8: #{mixer_model_forward.21} parent=0 // pred_region
    _
  $region9: #{mixer_model_forward.21} parent=0 // pred_fallthru
    _
  %p12 = scmp.eq.s32.totalorder 0, 0
  // Predicated region
  $region10: #{mixer_model_forward.21} parent=0 // pred_check
    %p13 = pneg %p12
  $region11: #{mixer_model_forward.21} parent=0 // pred_check_branch
    %15 = sbr.rel (%p13) target = $region13
  $region12: #{mixer_model_forward.21} parent=0 // pred_region
    %16 = vst [vmem:[#allocation2] sm:$0xff] 0.0
    %17 = vst [vmem:[#allocation2 + $0x8] sm:$0xff] 0.0
  $region13: #{mixer_model_forward.21} parent=0 // pred_fallthru
    _
  %v18 = vld [vmem:[#allocation2] sm:$0xff]
  %v19 = vld [vmem:[#allocation2 + $0x8] sm:$0xff]
  %v20 = vld [vmem:[%s0] sm:$0xf]
  %v21 = vld [vmem:[%s0 + $0x4] sm:$0xf]
  %v22 = vld [vmem:[%s1] sm:$0xf]
  %v23 = vld [vmem:[%s1 + $0x4] sm:$0xf]
  %v24 = vld [vmem:[%s1 + $0x8] sm:$0xf]
  %v25 = vld [vmem:[%s1 + $0xc] sm:$0xf]
  %v28 = vunpack.c.l.b16 %v20
  %v29 = vunpack.c.l.b16 %v21
  %v30 = vpack.c.b16 %v29, %v28
  %v35 = vunpack.c.l.b16 %v22
  %v36 = vunpack.c.l.b16 %v23
  %v37 = vunpack.c.l.b16 %v24
  %v38 = vunpack.c.l.b16 %v25
  %v39 = vpack.c.b16 %v36, %v35
  %v40 = vpack.c.b16 %v38, %v37
  %vm43 = vcmask 261120
  %v45 = vsel %vm43, %v30, 0
  %47 = vmatprep.subr.bf16.mxu0 0
  %48 = vmatpush1.bf16.msra.mxu0 0
  %49 = vmatprep.subr.bf16.mxu0 0
  %50 = vmatpush1.bf16.msra.mxu0 0
  %51 = vmatprep.subr.bf16.mxu0 0
  %52 = vmatpush1.bf16.msra.mxu0 0
  %53 = vmatprep.subr.bf16.mxu0 0
  %54 = vmatpush1.bf16.msra.mxu0 0
  %55 = vmatprep.subr.bf16.mxu0 0
  %56 = vmatpush1.bf16.msra.mxu0 0
  %57 = vmatprep.subr.bf16.mxu0 0
  %58 = vmatpush1.bf16.msra.mxu0 0
  %59 = vmatprep.subr.bf16.mxu0 0
  %60 = vmatpush1.bf16.msra.mxu0 %v40
  %61 = vmatprep.subr.bf16.mxu0 0
  %62 = vmatpush1.bf16.msra.mxu0 %v39
  %63 = vmatprep.subr.bf16.mxu0 0
  %64 = vmatpush2.bf16.msra.mxu0 0
  %65 = vmatprep.subr.bf16.mxu0 0
  %66 = vmatpush2.bf16.msra.mxu0 0
  %67 = vmatprep.subr.bf16.mxu0 0
  %68 = vmatpush2.bf16.msra.mxu0 0
  %69 = vmatprep.subr.bf16.mxu0 0
  %70 = vmatpush2.bf16.msra.mxu0 0
  %71 = vmatprep.subr.bf16.mxu0 0
  %72 = vmatpush2.bf16.msra.mxu0 0
  %73 = vmatprep.subr.bf16.mxu0 0
  %74 = vmatpush2.bf16.msra.mxu0 0
  %75 = vmatprep.subr.bf16.mxu0 0
  %76 = vmatpush2.bf16.msra.mxu0 0
  %77 = vmatprep.subr.bf16.mxu0 0
  %78 = vmatpush2.bf16.msra.mxu0 0
  %79 = vmatprep.mubr.bf16.mxu0 0
  %80 = vmatmul.mubr.bf16.gmra.mxu0 %v45
  %v81 = vpop.f32.mrf.mxu0
  %v82 = vadd.f32 0.0, %v81
  %v83 = vpop.f32.mrf.mxu0
  %v84 = vpop.f32.mrf.mxu0
  %v85 = vadd.f32 0.0, %v84
  %v86 = vpop.f32.mrf.mxu0
  %87 = vdwg.mxu0
  %v88 = vadd.f32 %v18, %v82
  %v89 = vadd.f32 %v19, %v85
  %90 = vst [vmem:[#allocation2] sm:$0xff] %v88
  %91 = vst [vmem:[#allocation2 + $0x8] sm:$0xff] %v89
  // Predicated region
  $region14: #{mixer_model_forward.21} parent=0 // pred_check
    %p92 = pneg %p12
  $region15: #{mixer_model_forward.21} parent=0 // pred_check_branch
    %94 = sbr.rel (%p92) target = $region17
  $region16: #{mixer_model_forward.21} parent=0 // pred_region
    %v95 = vld [vmem:[#allocation2] sm:$0xff]
    %v96 = vld [vmem:[#allocation2 + $0x8] sm:$0xff]
    %v97 = vpack.c.bf16 %v96, %v95
    %v99 = vunpack.c.l.b16 %v97
    %v100 = vunpack.c.h.b16 %v97
    %v101 = vpack.c.b16 %v99, %v99
    %v102 = vpack.c.b16 %v100, %v100
    %105 = vst [vmem:[%s2] sm:$0xf] %v101
    %106 = vst [vmem:[%s2 + $0x4] sm:$0xf] %v102
  $region17: #{mixer_model_forward.21} parent=0 // pred_fallthru
    _
  // Predicated region
  $region18: #{mixer_model_forward.21} parent=0 // pred_check
    _
  $region19: #{mixer_model_forward.21} parent=0 // pred_check_branch
    %108 = sbr.rel (0) target = $region21
  $region20: #{mixer_model_forward.21} parent=0 // pred_region
    _
  $region21: #{mixer_model_forward.21} parent=0 // pred_fallthru
    _
  // Predicated region
  $region22: #{mixer_model_forward.21} parent=0 // pred_check
    _
  $region23: #{mixer_model_forward.21} parent=0 // pred_check_branch
    %110 = sbr.rel (0) target = $region25
  $region24: #{mixer_model_forward.21} parent=0 // pred_region
    _
  $region25: #{mixer_model_forward.21} parent=0 // pred_fallthru
    _

// kernel: mixer_model_forward.14
$region0: #{mixer_model_forward.14}
  #allocation0 [shape = 'u32[]', space=smem, size = 0x4, offset = 0x4, fixed_abs, tag = 'smem constant byte address 0x4 - core index']
  #allocation1 [shape = 'u32[144,128]{1,0:T(1,128)}', space=vmem, size = 0x12000, scoped, tag = 'internal scratch']
  %s0 = inlined_call_operand.vmem [shape: f32[16,32], index: 0, kind: input, shape index: {}]
  %s1 = inlined_call_operand.vmem [shape: f32[16,32], index: 1, kind: input, shape index: {}]
  %s2 = inlined_call_operand.vmem [shape: bf16[32,32], index: 2, kind: input, shape index: {}]
  %s3 = inlined_call_operand.vmem [shape: bf16[32,32], index: 3, kind: input, shape index: {}]
  %s4 = inlined_call_operand.hbm [shape: bf16[32,32], index: 4, kind: input, shape index: {}]
  %s5 = inlined_call_operand.hbm [shape: bf16[32,32], index: 5, kind: input, shape index: {}]
  %s6 = inlined_call_operand.hbm [shape: bf16[32,32], index: 6, kind: input, shape index: {}]
  %s7 = inlined_call_operand.hbm [shape: bf16[32,32], index: 7, kind: input, shape index: {}]
  %s8 = inlined_call_operand.vmem [shape: f32[1,32], index: 8, kind: input, shape index: {}, may-alias: {8,10,11,13,14}]
  %s9 = inlined_call_operand.vmem [shape: f32[1,32], index: 9, kind: input, shape index: {}, may-alias: {9,12}]
  %s10 = inlined_call_operand.vmem [shape: f32[1,32], index: 10, kind: input, shape index: {}, may-alias: {8,10,11,13,14}]
  %s11 = inlined_call_operand.vmem [shape: f32[1,32], index: 11, kind: input, shape index: {}, may-alias: {8,10,11,13,14}]
  %s12 = inlined_call_operand.vmem [shape: f32[1,32], index: 12, kind: input, shape index: {}, may-alias: {9,12}]
  %s13 = inlined_call_operand.vmem [shape: f32[1,32], index: 13, kind: input, shape index: {}, may-alias: {8,10,11,13,14}]
  %s14 = inlined_call_operand.vmem [shape: f32[1,32], index: 14, kind: input, shape index: {}, may-alias: {8,10,11,13,14}]
  %s15 = inlined_call_operand.vmem [shape: f32[16,32], index: 15, kind: output, shape index: {0}]
  %s16 = inlined_call_operand.vmem [shape: f32[16,32], index: 16, kind: output, shape index: {1}]
  %17 = xla_tuple %s15, %s16
  %s18 = sld [smem:[#allocation0]]
  $region94: #{mixer_model_forward.14} parent=0
    _
  %s20 = ssub.s32 1, %s18
  %s21 = scalar_select 0, %s20, %s18
  $region1: #{mixer_model_forward.14} parent=0
    #allocation2 [shape = 'u8[8192]{0}', space=vmem, size = 0x2000, scoped, tag = 'input window, operand 4, single buffered']
    #allocation3 [shape = 's32[1]{0}', space=sflag, size = 0x4, scoped, tag = 'scoped memory for mixer_model_forward.14']
    #allocation4 [shape = 'u8[8192]{0}', space=vmem, size = 0x2000, scoped, tag = 'input window, operand 5, single buffered']
    #allocation5 [shape = 's32[1]{0}', space=sflag, size = 0x4, scoped, tag = 'scoped memory for mixer_model_forward.14']
    #allocation6 [shape = 'u8[8192]{0}', space=vmem, size = 0x2000, scoped, tag = 'input window, operand 6, single buffered']
    #allocation7 [shape = 'u8[8192]{0}', space=vmem, size = 0x2000, scoped, tag = 'input window, operand 7, single buffered']
    #allocation8 [shape = 's32[1]{0}', space=sflag, size = 0x4, scoped, tag = 'scoped memory for mixer_model_forward.14']
    %22 = vsyncpa [#allocation3], 0
    %23 = vsyncpa [#allocation5], 0
    %24 = vsyncpa [#allocation8], 0
    // Predicated region
    $region2: #{mixer_model_forward.14} parent=1 // pred_check
      _
    $region3: #{mixer_model_forward.14} parent=1 // pred_check_branch
      %26 = sbr.rel (0) target = $region5
    $region4: #{mixer_model_forward.14} parent=1 // pred_region
      _
    $region5: #{mixer_model_forward.14} parent=1 // pred_fallthru
      _
    // Predicated region
    $region6: #{mixer_model_forward.14} parent=1 // pred_check
      _
    $region7: #{mixer_model_forward.14} parent=1 // pred_check_branch
      %28 = sbr.rel (0) target = $region9
    $region8: #{mixer_model_forward.14} parent=1 // pred_region
      _
    $region9: #{mixer_model_forward.14} parent=1 // pred_fallthru
      _
    // Predicated region
    $region10: #{mixer_model_forward.14} parent=1 // pred_check
      _
    $region11: #{mixer_model_forward.14} parent=1 // pred_check_branch
      %30 = sbr.rel (0) target = $region13
    $region12: #{mixer_model_forward.14} parent=1 // pred_region
      _
    $region13: #{mixer_model_forward.14} parent=1 // pred_fallthru
      _
    // Predicated region
    $region14: #{mixer_model_forward.14} parent=1 // pred_check
      _
    $region15: #{mixer_model_forward.14} parent=1 // pred_check_branch
      %32 = sbr.rel (0) target = $region17
    $region16: #{mixer_model_forward.14} parent=1 // pred_region
      _
    $region17: #{mixer_model_forward.14} parent=1 // pred_fallthru
      _
    // Predicated region
    $region18: #{mixer_model_forward.14} parent=1 // pred_check
      _
    $region19: #{mixer_model_forward.14} parent=1 // pred_check_branch
      %34 = sbr.rel (0) target = $region21
    $region20: #{mixer_model_forward.14} parent=1 // pred_region
      %s36 = ssub.s32 256, 256
      %37 = vsyncadd [#allocation3], %s36
      %s38 = sshll.u32 [#allocation2], 4
      %s39 = int_to_ptr.vmem [resolvable:$true] %s38
      %44 = dma.hbm_to_vmem [thread:$0]  %s4, 256, %s39, [#allocation3], 64, 64, 4
    $region21: #{mixer_model_forward.14} parent=1 // pred_fallthru
      _
    // Predicated region
    $region22: #{mixer_model_forward.14} parent=1 // pred_check
      _
    $region23: #{mixer_model_forward.14} parent=1 // pred_check_branch
      %46 = sbr.rel (0) target = $region25
    $region24: #{mixer_model_forward.14} parent=1 // pred_region
      %s48 = ssub.s32 256, 256
      %49 = vsyncadd [#allocation5], %s48
      %s50 = sshll.u32 [#allocation4], 4
      %s51 = int_to_ptr.vmem [resolvable:$true] %s50
      %56 = dma.hbm_to_vmem [thread:$0]  %s5, 256, %s51, [#allocation5], 64, 64, 4
    $region25: #{mixer_model_forward.14} parent=1 // pred_fallthru
      _
    // Predicated region
    $region26: #{mixer_model_forward.14} parent=1 // pred_check
      _
    $region27: #{mixer_model_forward.14} parent=1 // pred_check_branch
      %58 = sbr.rel (0) target = $region29
    $region28: #{mixer_model_forward.14} parent=1 // pred_region
      %s60 = ssub.s32 256, 256
      %61 = vsyncadd [#allocation5], %s60
      %s62 = sshll.u32 [#allocation6], 4
      %s63 = int_to_ptr.vmem [resolvable:$true] %s62
      %68 = dma.hbm_to_vmem [thread:$0]  %s6, 256, %s63, [#allocation5], 64, 64, 4
    $region29: #{mixer_model_forward.14} parent=1 // pred_fallthru
      _
    // Predicated region
    $region30: #{mixer_model_forward.14} parent=1 // pred_check
      _
    $region31: #{mixer_model_forward.14} parent=1 // pred_check_branch
      %70 = sbr.rel (0) target = $region33
    $region32: #{mixer_model_forward.14} parent=1 // pred_region
      %s72 = ssub.s32 256, 256
      %73 = vsyncadd [#allocation8], %s72
      %s74 = sshll.u32 [#allocation7], 4
      %s75 = int_to_ptr.vmem [resolvable:$true] %s74
      %80 = dma.hbm_to_vmem [thread:$0]  %s7, 256, %s75, [#allocation8], 64, 64, 4
    $region33: #{mixer_model_forward.14} parent=1 // pred_fallthru
      _
    // Predicated region
    $region34: #{mixer_model_forward.14} parent=1 // pred_check
      _
    $region35: #{mixer_model_forward.14} parent=1 // pred_check_branch
      %82 = sbr.rel (0) target = $region37
    $region36: #{mixer_model_forward.14} parent=1 // pred_region
      _
    $region37: #{mixer_model_forward.14} parent=1 // pred_fallthru
      _
    // Predicated region
    $region38: #{mixer_model_forward.14} parent=1 // pred_check
      _
    $region39: #{mixer_model_forward.14} parent=1 // pred_check_branch
      %84 = sbr.rel (0) target = $region41
    $region40: #{mixer_model_forward.14} parent=1 // pred_region
      _
    $region41: #{mixer_model_forward.14} parent=1 // pred_fallthru
      _
    // Predicated region
    $region42: #{mixer_model_forward.14} parent=1 // pred_check
      _
    $region43: #{mixer_model_forward.14} parent=1 // pred_check_branch
      %86 = sbr.rel (0) target = $region45
    $region44: #{mixer_model_forward.14} parent=1 // pred_region
      _
    $region45: #{mixer_model_forward.14} parent=1 // pred_fallthru
      _
    // Predicated region
    $region46: #{mixer_model_forward.14} parent=1 // pred_check
      _
    $region47: #{mixer_model_forward.14} parent=1 // pred_check_branch
      %88 = sbr.rel (0) target = $region49
    $region48: #{mixer_model_forward.14} parent=1 // pred_region
      _
    $region49: #{mixer_model_forward.14} parent=1 // pred_fallthru
      _
    // Predicated region
    $region50: #{mixer_model_forward.14} parent=1 // pred_check
      _
    $region51: #{mixer_model_forward.14} parent=1 // pred_check_branch
      %90 = sbr.rel (0) target = $region53
    $region52: #{mixer_model_forward.14} parent=1 // pred_region
      _
    $region53: #{mixer_model_forward.14} parent=1 // pred_fallthru
      _
    // Predicated region
    $region54: #{mixer_model_forward.14} parent=1 // pred_check
      _
    $region55: #{mixer_model_forward.14} parent=1 // pred_check_branch
      %92 = sbr.rel (0) target = $region57
    $region56: #{mixer_model_forward.14} parent=1 // pred_region
      _
    $region57: #{mixer_model_forward.14} parent=1 // pred_fallthru
      _
    // Predicated region
    $region58: #{mixer_model_forward.14} parent=1 // pred_check
      _
    $region59: #{mixer_model_forward.14} parent=1 // pred_check_branch
      %94 = sbr.rel (0) target = $region61
    $region60: #{mixer_model_forward.14} parent=1 // pred_region
      _
    $region61: #{mixer_model_forward.14} parent=1 // pred_fallthru
      _
    // Predicated region
    $region62: #{mixer_model_forward.14} parent=1 // pred_check
      _
    $region63: #{mixer_model_forward.14} parent=1 // pred_check_branch
      %96 = sbr.rel (0) target = $region65
    $region64: #{mixer_model_forward.14} parent=1 // pred_region
      %97 = dma.done [#allocation3], 256
    $region65: #{mixer_model_forward.14} parent=1 // pred_fallthru
      _
    // Predicated region
    $region66: #{mixer_model_forward.14} parent=1 // pred_check
      _
    $region67: #{mixer_model_forward.14} parent=1 // pred_check_branch
      %99 = sbr.rel (0) target = $region69
    $region68: #{mixer_model_forward.14} parent=1 // pred_region
      %100 = dma.done [#allocation5], 256
    $region69: #{mixer_model_forward.14} parent=1 // pred_fallthru
      _
    // Predicated region
    $region70: #{mixer_model_forward.14} parent=1 // pred_check
      _
    $region71: #{mixer_model_forward.14} parent=1 // pred_check_branch
      %102 = sbr.rel (0) target = $region73
    $region72: #{mixer_model_forward.14} parent=1 // pred_region
      %103 = dma.done [#allocation5], 256
    $region73: #{mixer_model_forward.14} parent=1 // pred_fallthru
      _
    // Predicated region
    $region74: #{mixer_model_forward.14} parent=1 // pred_check
      _
    $region75: #{mixer_model_forward.14} parent=1 // pred_check_branch
      %105 = sbr.rel (0) target = $region77
    $region76: #{mixer_model_forward.14} parent=1 // pred_region
      %106 = dma.done [#allocation8], 256
    $region77: #{mixer_model_forward.14} parent=1 // pred_fallthru
      _
    %v108 = vld [vmem:[%s0] sm:$0xff]
    %v109 = vld [vmem:[%s0 + $0x8] sm:$0xff]
    %v110 = vld [vmem:[%s1] sm:$0xff]
    %v111 = vld [vmem:[%s1 + $0x8] sm:$0xff]
    %v112 = vpack.c.bf16 %v109, %v108
    %v113 = vpack.c.bf16 %v111, %v110
    %v114 = vld [vmem:[%s2] sm:$0xf]
    %v115 = vld [vmem:[%s2 + $0x4] sm:$0xf]
    %v116 = vld [vmem:[%s2 + $0x8] sm:$0xf]
    %v117 = vld [vmem:[%s2 + $0xc] sm:$0xf]
    %v118 = vld [vmem:[%s3] sm:$0xf]
    %v119 = vld [vmem:[%s3 + $0x4] sm:$0xf]
    %v120 = vld [vmem:[%s3 + $0x8] sm:$0xf]
    %v121 = vld [vmem:[%s3 + $0xc] sm:$0xf]
    %v126 = vunpack.c.l.b16 %v118
    %v127 = vunpack.c.l.b16 %v119
    %v128 = vunpack.c.l.b16 %v120
    %v129 = vunpack.c.l.b16 %v121
    %v130 = vpack.c.b16 %v127, %v126
    %v131 = vpack.c.b16 %v129, %v128
    %vm134 = vcmask 261120
    %v136 = vsel %vm134, %v113, 0
    %138 = vmatprep.subr.bf16.mxu0 0
    %139 = vmatpush1.bf16.msra.mxu0 0
    %140 = vmatprep.subr.bf16.mxu0 0
    %141 = vmatpush1.bf16.msra.mxu0 0
    %142 = vmatprep.subr.bf16.mxu0 0
    %143 = vmatpush1.bf16.msra.mxu0 0
    %144 = vmatprep.subr.bf16.mxu0 0
    %145 = vmatpush1.bf16.msra.mxu0 0
    %146 = vmatprep.subr.bf16.mxu0 0
    %147 = vmatpush1.bf16.msra.mxu0 0
    %148 = vmatprep.subr.bf16.mxu0 0
    %149 = vmatpush1.bf16.msra.mxu0 0
    %150 = vmatprep.subr.bf16.mxu0 0
    %151 = vmatpush1.bf16.msra.mxu0 %v131
    %152 = vmatprep.subr.bf16.mxu0 0
    %153 = vmatpush1.bf16.msra.mxu0 %v130
    %154 = vmatprep.subr.bf16.mxu0 0
    %155 = vmatpush2.bf16.msra.mxu0 0
    %156 = vmatprep.subr.bf16.mxu0 0
    %157 = vmatpush2.bf16.msra.mxu0 0
    %158 = vmatprep.subr.bf16.mxu0 0
    %159 = vmatpush2.bf16.msra.mxu0 0
    %160 = vmatprep.subr.bf16.mxu0 0
    %161 = vmatpush2.bf16.msra.mxu0 0
    %162 = vmatprep.subr.bf16.mxu0 0
    %163 = vmatpush2.bf16.msra.mxu0 0
    %164 = vmatprep.subr.bf16.mxu0 0
    %165 = vmatpush2.bf16.msra.mxu0 0
    %166 = vmatprep.subr.bf16.mxu0 0
    %167 = vmatpush2.bf16.msra.mxu0 0
    %168 = vmatprep.subr.bf16.mxu0 0
    %169 = vmatpush2.bf16.msra.mxu0 0
    %170 = vmatprep.mubr.bf16.mxu0 0
    %171 = vmatmul.mubr.bf16.gmra.mxu0 %v136
    %v172 = vpop.f32.mrf.mxu0
    %v173 = vadd.f32 0.0, %v172
    %v174 = vpop.f32.mrf.mxu0
    %v175 = vpop.f32.mrf.mxu0
    %v176 = vadd.f32 0.0, %v175
    %v177 = vpop.f32.mrf.mxu0
    %178 = vdwg.mxu0
    %v183 = vunpack.c.l.b16 %v114
    %v184 = vunpack.c.l.b16 %v115
    %v185 = vunpack.c.l.b16 %v116
    %v186 = vunpack.c.l.b16 %v117
    %v187 = vpack.c.b16 %v184, %v183
    %v188 = vpack.c.b16 %v186, %v185
    %v192 = vsel %vm134, %v112, 0
    %194 = vmatprep.subr.bf16.mxu0 0
    %195 = vmatpush1.bf16.msra.mxu0 0
    %196 = vmatprep.subr.bf16.mxu0 0
    %197 = vmatpush1.bf16.msra.mxu0 0
    %198 = vmatprep.subr.bf16.mxu0 0
    %199 = vmatpush1.bf16.msra.mxu0 0
    %200 = vmatprep.subr.bf16.mxu0 0
    %201 = vmatpush1.bf16.msra.mxu0 0
    %202 = vmatprep.subr.bf16.mxu0 0
    %203 = vmatpush1.bf16.msra.mxu0 0
    %204 = vmatprep.subr.bf16.mxu0 0
    %205 = vmatpush1.bf16.msra.mxu0 0
    %206 = vmatprep.subr.bf16.mxu0 0
    %207 = vmatpush1.bf16.msra.mxu0 %v188
    %208 = vmatprep.subr.bf16.mxu0 0
    %209 = vmatpush1.bf16.msra.mxu0 %v187
    %210 = vmatprep.subr.bf16.mxu0 0
    %211 = vmatpush2.bf16.msra.mxu0 0
    %212 = vmatprep.subr.bf16.mxu0 0
    %213 = vmatpush2.bf16.msra.mxu0 0
    %214 = vmatprep.subr.bf16.mxu0 0
    %215 = vmatpush2.bf16.msra.mxu0 0
    %216 = vmatprep.subr.bf16.mxu0 0
    %217 = vmatpush2.bf16.msra.mxu0 0
    %218 = vmatprep.subr.bf16.mxu0 0
    %219 = vmatpush2.bf16.msra.mxu0 0
    %220 = vmatprep.subr.bf16.mxu0 0
    %221 = vmatpush2.bf16.msra.mxu0 0
    %222 = vmatprep.subr.bf16.mxu0 0
    %223 = vmatpush2.bf16.msra.mxu0 0
    %224 = vmatprep.subr.bf16.mxu0 0
    %225 = vmatpush2.bf16.msra.mxu0 0
    %226 = vmatprep.mubr.bf16.mxu0 0
    %227 = vmatmul.mubr.bf16.gmra.mxu0 %v192
    %v228 = vpop.f32.mrf.mxu0
    %v229 = vadd.f32 %v173, %v228
    %v230 = vpop.f32.mrf.mxu0
    %v231 = vpop.f32.mrf.mxu0
    %v232 = vadd.f32 %v176, %v231
    %v233 = vpop.f32.mrf.mxu0
    %234 = vdwg.mxu0
    %v235 = vld [vmem:[%s8] sm:$0x1]
    %v237 = vlaneseq
    %v238 = vshrl.u32 %v237, 7
    %v239 = vsub.s32 0, %v238
    %v240 = vrot.slane %v235, %v239
    %v242 = vadd.f32 %v229, %v240
    %v243 = vadd.f32 %v232, %v240
    %v244 = vld [vmem:[%s9] sm:$0x1]
    %v245 = vld [vmem:[%s10] sm:$0x1]
    %v246 = vsel %vm134, %v242, 0.0
    %247 = vadd.xlane.f32.xlu0 %v246
    %v248 = vpop.xlane.xlu0 %247
    %v249 = vsel %vm134, %v243, 0.0
    %250 = vadd.xlane.f32.xlu0 %v249
    %v251 = vpop.xlane.xlu0 %250
    %v252 = vrcp.pop 32.0
    %v253 = vmul.f32 %v248, %v252
    %v254 = vmul.f32 %v251, %v252
    %v255 = vsub.f32 %v242, %v253
    %v256 = vsub.f32 %v243, %v254
    %v257 = vmul.f32 %v255, %v255
    %v258 = vmul.f32 %v256, %v256
    %v259 = vsel %vm134, %v257, 0.0
    %260 = vadd.xlane.f32.xlu0 %v259
    %v261 = vpop.xlane.xlu0 %260
    %v262 = vsel %vm134, %v258, 0.0
    %263 = vadd.xlane.f32.xlu0 %v262
    %v264 = vpop.xlane.xlu0 %263
    %v265 = vmul.f32 %v261, %v252
    %v266 = vmul.f32 %v264, %v252
    %v267 = vadd.f32 %v265, 1e-05
    %v268 = vadd.f32 %v266, 1e-05
    %v269 = vrsqrt.pop %v267
    %v270 = vrsqrt.pop %v268
    %v271 = vmul.f32 %v255, %v269
    %v272 = vmul.f32 %v256, %v270
    %v274 = vlaneseq
    %v275 = vshrl.u32 %v274, 7
    %v276 = vsub.s32 0, %v275
    %v277 = vrot.slane %v244, %v276
    %v279 = vmul.f32 %v271, %v277
    %v280 = vmul.f32 %v272, %v277
    %v282 = vlaneseq
    %v283 = vshrl.u32 %v282, 7
    %v284 = vsub.s32 0, %v283
    %v285 = vrot.slane %v245, %v284
    %v287 = vadd.f32 %v279, %v285
    %v288 = vadd.f32 %v280, %v285
    %v289 = vsub.f32 0.0, %v287
    %v290 = vsub.f32 0.0, %v288
    %v291 = vmul.f32 %v289, 1.442695
    %v292 = vpow.pop %v291
    %v293 = vmul.f32 %v290, 1.442695
    %v294 = vpow.pop %v293
    %v295 = vadd.f32 %v292, 1.0
    %v296 = vadd.f32 %v294, 1.0
    %v297 = vrcp.pop %v295
    %v298 = vmul.f32 1.0, %v297
    %v299 = vrcp.pop %v296
    %v300 = vmul.f32 1.0, %v299
    %v301 = vld [vmem:[#allocation2] sm:$0xf]
    %v302 = vld [vmem:[#allocation2 + $0x4] sm:$0xf]
    %v303 = vld [vmem:[#allocation2 + $0x8] sm:$0xf]
    %v304 = vld [vmem:[#allocation2 + $0xc] sm:$0xf]
    %v305 = vld [vmem:[#allocation4] sm:$0xf]
    %v306 = vld [vmem:[#allocation4 + $0x4] sm:$0xf]
    %v307 = vld [vmem:[#allocation4 + $0x8] sm:$0xf]
    %v308 = vld [vmem:[#allocation4 + $0xc] sm:$0xf]
    %v313 = vunpack.c.l.b16 %v305
    %v314 = vunpack.c.l.b16 %v306
    %v315 = vunpack.c.l.b16 %v307
    %v316 = vunpack.c.l.b16 %v308
    %v317 = vpack.c.b16 %v314, %v313
    %v318 = vpack.c.b16 %v316, %v315
    %321 = vmatprep.subr.bf16.mxu0 0
    %322 = vmatpush1.bf16.msra.mxu0 0
    %323 = vmatprep.subr.bf16.mxu0 0
    %324 = vmatpush1.bf16.msra.mxu0 0
    %325 = vmatprep.subr.bf16.mxu0 0
    %326 = vmatpush1.bf16.msra.mxu0 0
    %327 = vmatprep.subr.bf16.mxu0 0
    %328 = vmatpush1.bf16.msra.mxu0 0
    %329 = vmatprep.subr.bf16.mxu0 0
    %330 = vmatpush1.bf16.msra.mxu0 0
    %331 = vmatprep.subr.bf16.mxu0 0
    %332 = vmatpush1.bf16.msra.mxu0 0
    %333 = vmatprep.subr.bf16.mxu0 0
    %334 = vmatpush1.bf16.msra.mxu0 %v318
    %335 = vmatprep.subr.bf16.mxu0 0
    %336 = vmatpush1.bf16.msra.mxu0 %v317
    %337 = vmatprep.subr.bf16.mxu0 0
    %338 = vmatpush2.bf16.msra.mxu0 0
    %339 = vmatprep.subr.bf16.mxu0 0
    %340 = vmatpush2.bf16.msra.mxu0 0
    %341 = vmatprep.subr.bf16.mxu0 0
    %342 = vmatpush2.bf16.msra.mxu0 0
    %343 = vmatprep.subr.bf16.mxu0 0
    %344 = vmatpush2.bf16.msra.mxu0 0
    %345 = vmatprep.subr.bf16.mxu0 0
    %346 = vmatpush2.bf16.msra.mxu0 0
    %347 = vmatprep.subr.bf16.mxu0 0
    %348 = vmatpush2.bf16.msra.mxu0 0
    %349 = vmatprep.subr.bf16.mxu0 0
    %350 = vmatpush2.bf16.msra.mxu0 0
    %351 = vmatprep.subr.bf16.mxu0 0
    %352 = vmatpush2.bf16.msra.mxu0 0
    %353 = vmatprep.mubr.bf16.mxu0 0
    %354 = vmatmul.mubr.bf16.gmra.mxu0 %v136
    %v355 = vpop.f32.mrf.mxu0
    %v356 = vadd.f32 0.0, %v355
    %v357 = vpop.f32.mrf.mxu0
    %v358 = vpop.f32.mrf.mxu0
    %v359 = vadd.f32 0.0, %v358
    %v360 = vpop.f32.mrf.mxu0
    %361 = vdwg.mxu0
    %v366 = vunpack.c.l.b16 %v301
    %v367 = vunpack.c.l.b16 %v302
    %v368 = vunpack.c.l.b16 %v303
    %v369 = vunpack.c.l.b16 %v304
    %v370 = vpack.c.b16 %v367, %v366
    %v371 = vpack.c.b16 %v369, %v368
    %374 = vmatprep.subr.bf16.mxu0 0
    %375 = vmatpush1.bf16.msra.mxu0 0
    %376 = vmatprep.subr.bf16.mxu0 0
    %377 = vmatpush1.bf16.msra.mxu0 0
    %378 = vmatprep.subr.bf16.mxu0 0
    %379 = vmatpush1.bf16.msra.mxu0 0
    %380 = vmatprep.subr.bf16.mxu0 0
    %381 = vmatpush1.bf16.msra.mxu0 0
    %382 = vmatprep.subr.bf16.mxu0 0
    %383 = vmatpush1.bf16.msra.mxu0 0
    %384 = vmatprep.subr.bf16.mxu0 0
    %385 = vmatpush1.bf16.msra.mxu0 0
    %386 = vmatprep.subr.bf16.mxu0 0
    %387 = vmatpush1.bf16.msra.mxu0 %v371
    %388 = vmatprep.subr.bf16.mxu0 0
    %389 = vmatpush1.bf16.msra.mxu0 %v370
    %390 = vmatprep.subr.bf16.mxu0 0
    %391 = vmatpush2.bf16.msra.mxu0 0
    %392 = vmatprep.subr.bf16.mxu0 0
    %393 = vmatpush2.bf16.msra.mxu0 0
    %394 = vmatprep.subr.bf16.mxu0 0
    %395 = vmatpush2.bf16.msra.mxu0 0
    %396 = vmatprep.subr.bf16.mxu0 0
    %397 = vmatpush2.bf16.msra.mxu0 0
    %398 = vmatprep.subr.bf16.mxu0 0
    %399 = vmatpush2.bf16.msra.mxu0 0
    %400 = vmatprep.subr.bf16.mxu0 0
    %401 = vmatpush2.bf16.msra.mxu0 0
    %402 = vmatprep.subr.bf16.mxu0 0
    %403 = vmatpush2.bf16.msra.mxu0 0
    %404 = vmatprep.subr.bf16.mxu0 0
    %405 = vmatpush2.bf16.msra.mxu0 0
    %406 = vmatprep.mubr.bf16.mxu0 0
    %407 = vmatmul.mubr.bf16.gmra.mxu0 %v192
    %v408 = vpop.f32.mrf.mxu0
    %v409 = vadd.f32 %v356, %v408
    %v410 = vpop.f32.mrf.mxu0
    %v411 = vpop.f32.mrf.mxu0
    %v412 = vadd.f32 %v359, %v411
    %v413 = vpop.f32.mrf.mxu0
    %414 = vdwg.mxu0
    %v415 = vld [vmem:[%s11] sm:$0x1]
    %v417 = vlaneseq
    %v418 = vshrl.u32 %v417, 7
    %v419 = vsub.s32 0, %v418
    %v420 = vrot.slane %v415, %v419
    %v422 = vadd.f32 %v409, %v420
    %v423 = vadd.f32 %v412, %v420
    %v424 = vld [vmem:[%s12] sm:$0x1]
    %v425 = vld [vmem:[%s13] sm:$0x1]
    %v426 = vsel %vm134, %v422, 0.0
    %427 = vadd.xlane.f32.xlu0 %v426
    %v428 = vpop.xlane.xlu0 %427
    %v429 = vsel %vm134, %v423, 0.0
    %430 = vadd.xlane.f32.xlu0 %v429
    %v431 = vpop.xlane.xlu0 %430
    %v432 = vmul.f32 %v428, %v252
    %v433 = vmul.f32 %v431, %v252
    %v434 = vsub.f32 %v422, %v432
    %v435 = vsub.f32 %v423, %v433
    %v436 = vmul.f32 %v434, %v434
    %v437 = vmul.f32 %v435, %v435
    %v438 = vsel %vm134, %v436, 0.0
    %439 = vadd.xlane.f32.xlu0 %v438
    %v440 = vpop.xlane.xlu0 %439
    %v441 = vsel %vm134, %v437, 0.0
    %442 = vadd.xlane.f32.xlu0 %v441
    %v443 = vpop.xlane.xlu0 %442
    %v444 = vmul.f32 %v440, %v252
    %v445 = vmul.f32 %v443, %v252
    %v446 = vadd.f32 %v444, 1e-05
    %v447 = vadd.f32 %v445, 1e-05
    %v448 = vrsqrt.pop %v446
    %v449 = vrsqrt.pop %v447
    %v450 = vmul.f32 %v434, %v448
    %v451 = vmul.f32 %v435, %v449
    %v453 = vlaneseq
    %v454 = vshrl.u32 %v453, 7
    %v455 = vsub.s32 0, %v454
    %v456 = vrot.slane %v424, %v455
    %v458 = vmul.f32 %v450, %v456
    %v459 = vmul.f32 %v451, %v456
    %v461 = vlaneseq
    %v462 = vshrl.u32 %v461, 7
    %v463 = vsub.s32 0, %v462
    %v464 = vrot.slane %v425, %v463
    %v466 = vadd.f32 %v458, %v464
    %v467 = vadd.f32 %v459, %v464
    %v468 = vsub.f32 0.0, %v466
    %v469 = vsub.f32 0.0, %v467
    %v470 = vmul.f32 %v468, 1.442695
    %v471 = vpow.pop %v470
    %v472 = vmul.f32 %v469, 1.442695
    %v473 = vpow.pop %v472
    %v474 = vadd.f32 %v471, 1.0
    %v475 = vadd.f32 %v473, 1.0
    %v476 = vrcp.pop %v474
    %v477 = vmul.f32 1.0, %v476
    %v478 = vrcp.pop %v475
    %v479 = vmul.f32 1.0, %v478
    %480 = vst.msk [vmem:[%s15] sm:$0xff] %vm134, %v298
    %481 = vst.msk [vmem:[%s15 + $0x8] sm:$0xff] %vm134, %v300
    %v482 = vmul.f32 %v477, %v110
    %v483 = vmul.f32 %v479, %v111
    %v484 = vpack.c.bf16 %v483, %v482
    %v485 = vld [vmem:[#allocation6] sm:$0xf]
    %v486 = vld [vmem:[#allocation6 + $0x4] sm:$0xf]
    %v487 = vld [vmem:[#allocation6 + $0x8] sm:$0xf]
    %v488 = vld [vmem:[#allocation6 + $0xc] sm:$0xf]
    %v489 = vld [vmem:[#allocation7] sm:$0xf]
    %v490 = vld [vmem:[#allocation7 + $0x4] sm:$0xf]
    %v491 = vld [vmem:[#allocation7 + $0x8] sm:$0xf]
    %v492 = vld [vmem:[#allocation7 + $0xc] sm:$0xf]
    %v497 = vunpack.c.l.b16 %v489
    %v498 = vunpack.c.l.b16 %v490
    %v499 = vunpack.c.l.b16 %v491
    %v500 = vunpack.c.l.b16 %v492
    %v501 = vpack.c.b16 %v498, %v497
    %v502 = vpack.c.b16 %v500, %v499
    %v506 = vsel %vm134, %v484, 0
    %508 = vmatprep.subr.bf16.mxu0 0
    %509 = vmatpush1.bf16.msra.mxu0 0
    %510 = vmatprep.subr.bf16.mxu0 0
    %511 = vmatpush1.bf16.msra.mxu0 0
    %512 = vmatprep.subr.bf16.mxu0 0
    %513 = vmatpush1.bf16.msra.mxu0 0
    %514 = vmatprep.subr.bf16.mxu0 0
    %515 = vmatpush1.bf16.msra.mxu0 0
    %516 = vmatprep.subr.bf16.mxu0 0
    %517 = vmatpush1.bf16.msra.mxu0 0
    %518 = vmatprep.subr.bf16.mxu0 0
    %519 = vmatpush1.bf16.msra.mxu0 0
    %520 = vmatprep.subr.bf16.mxu0 0
    %521 = vmatpush1.bf16.msra.mxu0 %v502
    %522 = vmatprep.subr.bf16.mxu0 0
    %523 = vmatpush1.bf16.msra.mxu0 %v501
    %524 = vmatprep.subr.bf16.mxu0 0
    %525 = vmatpush2.bf16.msra.mxu0 0
    %526 = vmatprep.subr.bf16.mxu0 0
    %527 = vmatpush2.bf16.msra.mxu0 0
    %528 = vmatprep.subr.bf16.mxu0 0
    %529 = vmatpush2.bf16.msra.mxu0 0
    %530 = vmatprep.subr.bf16.mxu0 0
    %531 = vmatpush2.bf16.msra.mxu0 0
    %532 = vmatprep.subr.bf16.mxu0 0
    %533 = vmatpush2.bf16.msra.mxu0 0
    %534 = vmatprep.subr.bf16.mxu0 0
    %535 = vmatpush2.bf16.msra.mxu0 0
    %536 = vmatprep.subr.bf16.mxu0 0
    %537 = vmatpush2.bf16.msra.mxu0 0
    %538 = vmatprep.subr.bf16.mxu0 0
    %539 = vmatpush2.bf16.msra.mxu0 0
    %540 = vmatprep.mubr.bf16.mxu0 0
    %541 = vmatmul.mubr.bf16.gmra.mxu0 %v506
    %v542 = vpop.f32.mrf.mxu0
    %v543 = vadd.f32 0.0, %v542
    %v544 = vpop.f32.mrf.mxu0
    %v545 = vpop.f32.mrf.mxu0
    %v546 = vadd.f32 0.0, %v545
    %v547 = vpop.f32.mrf.mxu0
    %548 = vdwg.mxu0
    %v553 = vunpack.c.l.b16 %v485
    %v554 = vunpack.c.l.b16 %v486
    %v555 = vunpack.c.l.b16 %v487
    %v556 = vunpack.c.l.b16 %v488
    %v557 = vpack.c.b16 %v554, %v553
    %v558 = vpack.c.b16 %v556, %v555
    %561 = vmatprep.subr.bf16.mxu0 0
    %562 = vmatpush1.bf16.msra.mxu0 0
    %563 = vmatprep.subr.bf16.mxu0 0
    %564 = vmatpush1.bf16.msra.mxu0 0
    %565 = vmatprep.subr.bf16.mxu0 0
    %566 = vmatpush1.bf16.msra.mxu0 0
    %567 = vmatprep.subr.bf16.mxu0 0
    %568 = vmatpush1.bf16.msra.mxu0 0
    %569 = vmatprep.subr.bf16.mxu0 0
    %570 = vmatpush1.bf16.msra.mxu0 0
    %571 = vmatprep.subr.bf16.mxu0 0
    %572 = vmatpush1.bf16.msra.mxu0 0
    %573 = vmatprep.subr.bf16.mxu0 0
    %574 = vmatpush1.bf16.msra.mxu0 %v558
    %575 = vmatprep.subr.bf16.mxu0 0
    %576 = vmatpush1.bf16.msra.mxu0 %v557
    %577 = vmatprep.subr.bf16.mxu0 0
    %578 = vmatpush2.bf16.msra.mxu0 0
    %579 = vmatprep.subr.bf16.mxu0 0
    %580 = vmatpush2.bf16.msra.mxu0 0
    %581 = vmatprep.subr.bf16.mxu0 0
    %582 = vmatpush2.bf16.msra.mxu0 0
    %583 = vmatprep.subr.bf16.mxu0 0
    %584 = vmatpush2.bf16.msra.mxu0 0
    %585 = vmatprep.subr.bf16.mxu0 0
    %586 = vmatpush2.bf16.msra.mxu0 0
    %587 = vmatprep.subr.bf16.mxu0 0
    %588 = vmatpush2.bf16.msra.mxu0 0
    %589 = vmatprep.subr.bf16.mxu0 0
    %590 = vmatpush2.bf16.msra.mxu0 0
    %591 = vmatprep.subr.bf16.mxu0 0
    %592 = vmatpush2.bf16.msra.mxu0 0
    %593 = vmatprep.mubr.bf16.mxu0 0
    %594 = vmatmul.mubr.bf16.gmra.mxu0 %v192
    %v595 = vpop.f32.mrf.mxu0
    %v596 = vadd.f32 %v543, %v595
    %v597 = vpop.f32.mrf.mxu0
    %v598 = vpop.f32.mrf.mxu0
    %v599 = vadd.f32 %v546, %v598
    %v600 = vpop.f32.mrf.mxu0
    %601 = vdwg.mxu0
    %v602 = vld [vmem:[%s14] sm:$0x1]
    %v604 = vlaneseq
    %v605 = vshrl.u32 %v604, 7
    %v606 = vsub.s32 0, %v605
    %v607 = vrot.slane %v602, %v606
    %v609 = vadd.f32 %v596, %v607
    %v610 = vadd.f32 %v599, %v607
    %611 = vst.msk [vmem:[%s16] sm:$0xff] %vm134, %v609
    %612 = vst.msk [vmem:[%s16 + $0x8] sm:$0xff] %vm134, %v610
    // Predicated region
    $region78: #{mixer_model_forward.14} parent=1 // pred_check
      _
    $region79: #{mixer_model_forward.14} parent=1 // pred_check_branch
      %614 = sbr.rel (0) target = $region81
    $region80: #{mixer_model_forward.14} parent=1 // pred_region
      _
    $region81: #{mixer_model_forward.14} parent=1 // pred_fallthru
      _
    // Predicated region
    $region82: #{mixer_model_forward.14} parent=1 // pred_check
      _
    $region83: #{mixer_model_forward.14} parent=1 // pred_check_branch
      %616 = sbr.rel (0) target = $region85
    $region84: #{mixer_model_forward.14} parent=1 // pred_region
      _
    $region85: #{mixer_model_forward.14} parent=1 // pred_fallthru
      _
    // Predicated region
    $region86: #{mixer_model_forward.14} parent=1 // pred_check
      _
    $region87: #{mixer_model_forward.14} parent=1 // pred_check_branch
      %618 = sbr.rel (0) target = $region89
    $region88: #{mixer_model_forward.14} parent=1 // pred_region
      _
    $region89: #{mixer_model_forward.14} parent=1 // pred_fallthru
      _
    // Predicated region
    $region90: #{mixer_model_forward.14} parent=1 // pred_check
      _
    $region91: #{mixer_model_forward.14} parent=1 // pred_check_branch
      %620 = sbr.rel (0) target = $region93
    $region92: #{mixer_model_forward.14} parent=1 // pred_region
      _
    $region93: #{mixer_model_forward.14} parent=1 // pred_fallthru
      _
    %621 = vsyncpa [#allocation3], 1
    %622 = vsyncpa [#allocation5], 1
    %623 = vsyncpa [#allocation8], 1

// kernel: mixer_model_forward.22
$region0: #{mixer_model_forward.22}
  #allocation0 [shape = 'u32[]', space=smem, size = 0x4, offset = 0x4, fixed_abs, tag = 'smem constant byte address 0x4 - core index']
  #allocation1 [shape = 'u32[144,128]{1,0:T(1,128)}', space=vmem, size = 0x12000, scoped, tag = 'internal scratch']
  %s0 = inlined_call_operand.vmem [shape: bf16[2,11,64], index: 0, kind: input, shape index: {}]
  %s1 = inlined_call_operand.vmem [shape: f32[4,64], index: 1, kind: input, shape index: {}]
  %s2 = inlined_call_operand.vmem [shape: f32[1,64], index: 2, kind: input, shape index: {}]
  %s3 = inlined_call_operand.vmem [shape: bf16[2,8,64], index: 3, kind: output, shape index: {}]
  %s4 = sld [smem:[#allocation0]]
  $region45: #{mixer_model_forward.22} parent=0
    _
  %s6 = ssub.s32 1, %s4
  %s7 = scalar_select 0, %s6, %s4
  loop: start=0, step=1, limit=4
  $region2: #{mixer_model_forward.22} parent=0 // loop_pre_header
    _
  $region3: #{mixer_model_forward.22} parent=0 // loop_header
    %s9 = sphi 0, %s13
    %p10 = scmp.ge.s32.totalorder %s9, 4
    %s16 = sphi 0, %s28
    %s17 = sphi 0, %s24
    %s18 = sphi 0, %s16
    %s19 = sphi 0, %s17
    %s20 = sphi 0, %s18
    %s21 = sphi 0, %s19
    %s33 = sphi 0, %s35
    %s36 = sphi 0, %s33
    %s37 = sphi 0, %s36
    %s53 = sphi 0, %s37
    %s59 = sphi 0, %s61
    %s62 = sphi 0, %s59
    %s63 = sphi 0, %s62
    %s79 = sphi 0, %s63
    %s85 = sphi 0, %s87
    %s88 = sphi 0, %s85
    %s89 = sphi 0, %s88
    %s105 = sphi 0, %s89
    %s113 = sphi 0, %s115
    %s116 = sphi 0, %s113
    %s117 = sphi 0, %s116
    %s133 = sphi 0, %s117
  $region4: #{mixer_model_forward.22} parent=0 // loop_header_branch
    %12 = sbr.rel (%p10) target = $region8
  $region5: #{mixer_model_forward.22} parent=0 // loop_body
    %s14 = ssub.s32 %s9, 1
    %s15 = ssub.s32 %s9, 2
    %s22 = sadd.s32 1, %s17
    %p23 = scmp.ge.s32.totalorder %s22, 1
    %s24 = scalar_select %p23, 0, %s22
    %s25 = sadd.s32 1, %s16
    %s26 = scalar_select %p23, %s25, %s16
    %p27 = scmp.ge.s32.totalorder %s26, 2
    %s28 = scalar_select %p27, 0, %s26
    %s29 = ssub.s32 %s16, %s28
    %s30 = ssub.s32 %s17, %s24
    %s31 = sor.u32 %s29, %s30
    %p32 = scmp.eq.s32.totalorder %s31, 0
    %s34 = sadd.s32 %s33, 1
    %s35 = scalar_select %p32, %s33, %s34
    %p38 = pneg %p32
    %p39 = scmp.eq.s32.totalorder %s9, 1
    %p40 = por %p38, %p39
    %p41 = scmp.ne.s32.totalorder %s33, %s36
    %p42 = scmp.eq.s32.totalorder %s9, 0
    %p43 = por %p41, %p42
    %p44 = scmp.ne.s32.totalorder %s33, %s36
    %p45 = scmp.eq.s32.totalorder %s14, 1
    %p46 = por %p44, %p45
    %p47 = scmp.ne.s32.totalorder %s36, %s37
    %p48 = scmp.eq.s32.totalorder %s14, 0
    %p49 = por %p47, %p48
    %p50 = scmp.ne.s32.totalorder %s36, %s37
    %p51 = scmp.eq.s32.totalorder %s15, 1
    %p52 = por %p50, %p51
    %p54 = scmp.ne.s32.totalorder %s37, %s53
    %p55 = scmp.eq.s32.totalorder %s15, 0
    %p56 = por %p54, %p55
    %s57 = ssub.s32 %s17, %s24
    %p58 = scmp.eq.s32.totalorder %s57, 0
    %s60 = sadd.s32 %s59, 1
    %s61 = scalar_select %p58, %s59, %s60
    %p64 = pneg %p58
    %p65 = scmp.eq.s32.totalorder %s9, 1
    %p66 = por %p64, %p65
    %p67 = scmp.ne.s32.totalorder %s59, %s62
    %p68 = scmp.eq.s32.totalorder %s9, 0
    %p69 = por %p67, %p68
    %p70 = scmp.ne.s32.totalorder %s59, %s62
    %p71 = scmp.eq.s32.totalorder %s14, 1
    %p72 = por %p70, %p71
    %p73 = scmp.ne.s32.totalorder %s62, %s63
    %p74 = scmp.eq.s32.totalorder %s14, 0
    %p75 = por %p73, %p74
    %p76 = scmp.ne.s32.totalorder %s62, %s63
    %p77 = scmp.eq.s32.totalorder %s15, 1
    %p78 = por %p76, %p77
    %p80 = scmp.ne.s32.totalorder %s63, %s79
    %p81 = scmp.eq.s32.totalorder %s15, 0
    %p82 = por %p80, %p81
    %s83 = ssub.s32 %s17, %s24
    %p84 = scmp.eq.s32.totalorder %s83, 0
    %s86 = sadd.s32 %s85, 1
    %s87 = scalar_select %p84, %s85, %s86
    %p90 = pneg %p84
    %p91 = scmp.eq.s32.totalorder %s9, 1
    %p92 = por %p90, %p91
    %p93 = scmp.ne.s32.totalorder %s85, %s88
    %p94 = scmp.eq.s32.totalorder %s9, 0
    %p95 = por %p93, %p94
    %p96 = scmp.ne.s32.totalorder %s85, %s88
    %p97 = scmp.eq.s32.totalorder %s14, 1
    %p98 = por %p96, %p97
    %p99 = scmp.ne.s32.totalorder %s88, %s89
    %p100 = scmp.eq.s32.totalorder %s14, 0
    %p101 = por %p99, %p100
    %p102 = scmp.ne.s32.totalorder %s88, %s89
    %p103 = scmp.eq.s32.totalorder %s15, 1
    %p104 = por %p102, %p103
    %p106 = scmp.ne.s32.totalorder %s89, %s105
    %p107 = scmp.eq.s32.totalorder %s15, 0
    %p108 = por %p106, %p107
    %s109 = ssub.s32 %s16, %s28
    %s110 = ssub.s32 %s17, %s24
    %s111 = sor.u32 %s109, %s110
    %p112 = scmp.eq.s32.totalorder %s111, 0
    %s114 = sadd.s32 %s113, 1
    %s115 = scalar_select %p112, %s113, %s114
    %p118 = pneg %p112
    %p119 = scmp.eq.s32.totalorder %s9, 1
    %p120 = por %p118, %p119
    %p121 = scmp.ne.s32.totalorder %s113, %s116
    %p122 = scmp.eq.s32.totalorder %s9, 0
    %p123 = por %p121, %p122
    %p124 = scmp.ne.s32.totalorder %s113, %s116
    %p125 = scmp.eq.s32.totalorder %s14, 1
    %p126 = por %p124, %p125
    %p127 = scmp.ne.s32.totalorder %s116, %s117
    %p128 = scmp.eq.s32.totalorder %s14, 0
    %p129 = por %p127, %p128
    %p130 = scmp.ne.s32.totalorder %s116, %s117
    %p131 = scmp.eq.s32.totalorder %s15, 1
    %p132 = por %p130, %p131
    %p134 = scmp.ne.s32.totalorder %s117, %s133
    %p135 = scmp.eq.s32.totalorder %s15, 0
    %p136 = por %p134, %p135
    %p137 = scmp.le.s32.totalorder 1, %s9
    %p138 = scmp.lt.s32.totalorder %s9, 3
    %p139 = pnand %p137, %p138
    %p140 = pneg %p139
    // Predicated region
    $region9: #{mixer_model_forward.22} parent=5 // pred_check
      _
    $region10: #{mixer_model_forward.22} parent=5 // pred_check_branch
      %142 = sbr.rel (%p139) target = $region12
    $region11: #{mixer_model_forward.22} parent=5 // pred_region
      %s143 = ssub.s32 %s9, 1
      // Predicated region
      $region13: #{mixer_model_forward.22} parent=11 // pred_check
        %p144 = pneg %p75
      $region14: #{mixer_model_forward.22} parent=11 // pred_check_branch
        %146 = sbr.rel (%p144) target = $region16
      $region15: #{mixer_model_forward.22} parent=11 // pred_region
        %p147 = scmp.lt.s32.totalorder %s19, 0
        %s148 = scalar_select %p147, %s19, 0
        %s149 = smul.addr %s148, 4
        %s150 = scalar_lea.vmem %s1, %s149
      $region16: #{mixer_model_forward.22} parent=11 // pred_fallthru
        _
      // Predicated region
      $region17: #{mixer_model_forward.22} parent=11 // pred_check
        %p151 = pneg %p101
      $region18: #{mixer_model_forward.22} parent=11 // pred_check_branch
        %153 = sbr.rel (%p151) target = $region20
      $region19: #{mixer_model_forward.22} parent=11 // pred_region
        %p154 = scmp.lt.s32.totalorder %s19, 0
        %s155 = scalar_select %p154, %s19, 0
        %s156 = scalar_lea.vmem %s2, %s155
      $region20: #{mixer_model_forward.22} parent=11 // pred_fallthru
        _
    $region12: #{mixer_model_forward.22} parent=5 // pred_fallthru
      _
    %p157 = scmp.lt.s32.totalorder %s9, 2
    // Predicated region
    $region21: #{mixer_model_forward.22} parent=5 // pred_check
      %p158 = pneg %p157
    $region22: #{mixer_model_forward.22} parent=5 // pred_check_branch
      %160 = sbr.rel (%p158) target = $region24
    $region23: #{mixer_model_forward.22} parent=5 // pred_region
      // Predicated region
      $region25: #{mixer_model_forward.22} parent=23 // pred_check
        %p161 = pneg %p43
      $region26: #{mixer_model_forward.22} parent=23 // pred_check_branch
        %163 = sbr.rel (%p161) target = $region28
      $region27: #{mixer_model_forward.22} parent=23 // pred_region
        %p164 = scmp.lt.s32.totalorder %s16, 1
        %s165 = scalar_select %p164, %s16, 1
        %p166 = scmp.lt.s32.totalorder %s17, 0
        %s167 = scalar_select %p166, %s17, 0
        %s168 = smul.addr %s165, 2
        %s169 = sadd.s32 %s167, %s168
        %s170 = smul.addr %s169, 4
        %s171 = scalar_lea.vmem %s0, %s170
      $region28: #{mixer_model_forward.22} parent=23 // pred_fallthru
        _
    $region24: #{mixer_model_forward.22} parent=5 // pred_fallthru
      _
    %p172 = scmp.le.s32.totalorder 1, %s9
    %p173 = scmp.lt.s32.totalorder %s9, 3
    %p174 = pnand %p172, %p173
    %p175 = pneg %p174
    // Predicated region
    $region29: #{mixer_model_forward.22} parent=5 // pred_check
      _
    $region30: #{mixer_model_forward.22} parent=5 // pred_check_branch
      %177 = sbr.rel (%p174) target = $region32
    $region31: #{mixer_model_forward.22} parent=5 // pred_region
      %s178 = ssub.s32 %s9, 1
      %p179 = scmp.lt.s32.totalorder %s18, 1
      %s180 = scalar_select %p179, %s18, 1
      %p181 = scmp.lt.s32.totalorder %s19, 0
      %s182 = scalar_select %p181, %s19, 0
      %s183 = smul.addr %s180, 2
      %s184 = sadd.s32 %s182, %s183
      %s185 = smul.addr %s184, 4
      %s186 = scalar_lea.vmem %s0, %s185
      %p187 = pneg %p49
      %p188 = pneg %p46
      %p189 = scmp.lt.s32.totalorder %s19, 0
      %s190 = scalar_select %p189, %s19, 0
      %s191 = smul.addr %s190, 4
      %s192 = scalar_lea.vmem %s1, %s191
      %p193 = pneg %p75
      %p194 = pneg %p72
      %p195 = scmp.lt.s32.totalorder %s19, 0
      %s196 = scalar_select %p195, %s19, 0
      %s197 = scalar_lea.vmem %s2, %s196
      %p198 = pneg %p101
      %p199 = pneg %p98
      %p200 = pneg %p129
      %p201 = pneg %p126
      %p202 = scmp.lt.s32.totalorder %s18, 1
      %s203 = scalar_select %p202, %s18, 1
      %p204 = scmp.lt.s32.totalorder %s19, 0
      %s205 = scalar_select %p204, %s19, 0
      %s206 = sadd.s32 %s205, %s203
      %s207 = smul.addr %s206, 4
      %s208 = scalar_lea.vmem %s3, %s207
      %p209 = scmp.lt.s32.totalorder %s18, 1
      %s210 = scalar_select %p209, %s18, 1
      %p211 = scmp.lt.s32.totalorder %s19, 0
      %s212 = scalar_select %p211, %s19, 0
      %s213 = smul.addr %s210, 2
      %s214 = sadd.s32 %s212, %s213
      %s215 = smul.addr %s214, 4
      %s216 = scalar_lea.vmem %s0, %s215
      %p217 = scmp.lt.s32.totalorder %s19, 0
      %s218 = scalar_select %p217, %s19, 0
      %s219 = smul.addr %s218, 4
      %s220 = scalar_lea.vmem %s1, %s219
      %p221 = scmp.lt.s32.totalorder %s19, 0
      %s222 = scalar_select %p221, %s19, 0
      %s223 = scalar_lea.vmem %s2, %s222
      %p224 = scmp.lt.s32.totalorder %s18, 1
      %s225 = scalar_select %p224, %s18, 1
      %p226 = scmp.lt.s32.totalorder %s19, 0
      %s227 = scalar_select %p226, %s19, 0
      %s228 = sadd.s32 %s227, %s225
      %s229 = smul.addr %s228, 4
      %s230 = scalar_lea.vmem %s3, %s229
      %v231 = vld [vmem:[%s220] sm:$0xf]
      %v232 = vld [vmem:[%s216] sm:$0xf]
      %v233 = vunpack.c.l.bf16 %v232
      %v234 = vlaneseq
      %v235 = vshrl.u32 %v234, 7
      %v236 = vsub.s32 0, %v235
      %v237 = vrot.slane %v231, %v236
      %v238 = vmul.f32 %v237, %v233
      %v239 = vld [vmem:[%s216 + $0x4] sm:$0x1]
      %v240 = vunpack.c.l.bf16 %v239
      %v241 = vlaneseq
      %v242 = vshrl.u32 %v241, 7
      %v243 = vsub.s32 1, %v242
      %v244 = vrot.slane %v231, %v243
      %v245 = vmul.f32 %v244, %v233
      %v246 = vmul.f32 %v244, %v240
      %vm249 = vcmask 1046528
      %v250 = vrot.slane %v245, 1
      %v251 = vrot.slane %v246, 1
      %v252 = vsel %vm249, %v250, %v251
      %v254 = vadd.f32 %v238, %v252
      %v255 = vld [vmem:[%s216] sm:$0xe]
      %v256 = vunpack.c.l.bf16 %v255
      %v257 = vlaneseq
      %v258 = vshrl.u32 %v257, 7
      %v259 = vsub.s32 2, %v258
      %v260 = vrot.slane %v231, %v259
      %v261 = vmul.f32 %v260, %v256
      %v262 = vmul.f32 %v260, %v240
      %vm265 = vcmask 1045504
      %v266 = vrot.slane %v261, 2
      %v267 = vrot.slane %v262, 2
      %v268 = vsel %vm265, %v266, %v267
      %v270 = vadd.f32 %v254, %v268
      %v271 = vld [vmem:[%s216 + $0x4] sm:$0x3]
      %v272 = vunpack.c.l.bf16 %v271
      %v273 = vlaneseq
      %v274 = vshrl.u32 %v273, 7
      %v275 = vsub.s32 3, %v274
      %v276 = vrot.slane %v231, %v275
      %v277 = vmul.f32 %v276, %v256
      %v278 = vmul.f32 %v276, %v272
      %vm281 = vcmask 1044480
      %v282 = vrot.slane %v277, 3
      %v283 = vrot.slane %v278, 3
      %v284 = vsel %vm281, %v282, %v283
      %v286 = vadd.f32 %v270, %v284
      %v287 = vld [vmem:[%s223] sm:$0x1]
      %v289 = vlaneseq
      %v290 = vshrl.u32 %v289, 7
      %v291 = vsub.s32 0, %v290
      %v292 = vrot.slane %v287, %v291
      %v294 = vadd.f32 %v286, %v292
      %v295 = vsub.f32 0.0, %v294
      %v296 = vmul.f32 %v295, 1.442695
      %v297 = vpow.pop %v296
      %v298 = vadd.f32 %v297, 1.0
      %v299 = vrcp.pop %v298
      %v300 = vmul.f32 1.0, %v299
      %v301 = vmul.f32 %v294, %v300
      %v302 = vpack.c.bf16 %v301, %v301
      %vm303 = vcmask 519168
      %304 = vst.msk [vmem:[%s230] sm:$0xf] %vm303, %v302
      %p305 = scmp.lt.s32.totalorder %s18, 1
      %s306 = scalar_select %p305, %s18, 1
      %p307 = scmp.lt.s32.totalorder %s19, 0
      %s308 = scalar_select %p307, %s19, 0
      %s309 = sadd.s32 %s308, %s306
      %s310 = smul.addr %s309, 4
      %s311 = scalar_lea.vmem %s3, %s310
      // Predicated region
      $region33: #{mixer_model_forward.22} parent=31 // pred_check
        %p312 = pneg %p126
      $region34: #{mixer_model_forward.22} parent=31 // pred_check_branch
        %314 = sbr.rel (%p312) target = $region36
      $region35: #{mixer_model_forward.22} parent=31 // pred_region
        _
      $region36: #{mixer_model_forward.22} parent=31 // pred_fallthru
        _
    $region32: #{mixer_model_forward.22} parent=5 // pred_fallthru
      _
    %p315 = scmp.le.s32.totalorder 2, %s9
    // Predicated region
    $region37: #{mixer_model_forward.22} parent=5 // pred_check
      %p316 = pneg %p315
    $region38: #{mixer_model_forward.22} parent=5 // pred_check_branch
      %318 = sbr.rel (%p316) target = $region40
    $region39: #{mixer_model_forward.22} parent=5 // pred_region
      %s319 = ssub.s32 %s9, 2
      // Predicated region
      $region41: #{mixer_model_forward.22} parent=39 // pred_check
        %p320 = pneg %p132
      $region42: #{mixer_model_forward.22} parent=39 // pred_check_branch
        %322 = sbr.rel (%p320) target = $region44
      $region43: #{mixer_model_forward.22} parent=39 // pred_region
        %p323 = scmp.lt.s32.totalorder %s20, 1
        %s324 = scalar_select %p323, %s20, 1
        %p325 = scmp.lt.s32.totalorder %s21, 0
        %s326 = scalar_select %p325, %s21, 0
        %s327 = sadd.s32 %s326, %s324
        %s328 = smul.addr %s327, 4
        %s329 = scalar_lea.vmem %s3, %s328
      $region44: #{mixer_model_forward.22} parent=39 // pred_fallthru
        _
    $region40: #{mixer_model_forward.22} parent=5 // pred_fallthru
      _
  $region6: #{mixer_model_forward.22} parent=0 // loop_footer
    %s13 = sadd.s32 1, %s9
  $region7: #{mixer_model_forward.22} parent=0 // loop_footer_branch
    %8 = sbr.rel target = $region3
  $region8: #{mixer_model_forward.22} parent=0 // loop_exit
    _

// kernel: mixer_model_forward.24
$region0: #{mixer_model_forward.24}
  #allocation0 [shape = 'u32[]', space=smem, size = 0x4, offset = 0x4, fixed_abs, tag = 'smem constant byte address 0x4 - core index']
  #allocation1 [shape = 'u32[144,128]{1,0:T(1,128)}', space=vmem, size = 0x12000, scoped, tag = 'internal scratch']
  #allocation2 [shape = 'f32[16,64]{1,0:T(8,128)}', space=vmem, size = 0x2000, scoped, tag = 'scratch operand']
  %s0 = inlined_call_operand.vmem [shape: bf16[16,2], index: 0, kind: input, shape index: {}]
  %s1 = inlined_call_operand.vmem [shape: bf16[2,64], index: 1, kind: input, shape index: {}]
  %s2 = inlined_call_operand.vmem [shape: bf16[16,64], index: 2, kind: output, shape index: {}]
  %s3 = sld [smem:[#allocation0]]
  $region26: #{mixer_model_forward.24} parent=0
    _
  %s5 = ssub.s32 1, %s3
  %s6 = scalar_select 0, %s5, %s3
  // Predicated region
  $region2: #{mixer_model_forward.24} parent=0 // pred_check
    _
  $region3: #{mixer_model_forward.24} parent=0 // pred_check_branch
    %8 = sbr.rel (0) target = $region5
  $region4: #{mixer_model_forward.24} parent=0 // pred_region
    _
  $region5: #{mixer_model_forward.24} parent=0 // pred_fallthru
    _
  // Predicated region
  $region6: #{mixer_model_forward.24} parent=0 // pred_check
    _
  $region7: #{mixer_model_forward.24} parent=0 // pred_check_branch
    %10 = sbr.rel (0) target = $region9
  $region8: #{mixer_model_forward.24} parent=0 // pred_region
    _
  $region9: #{mixer_model_forward.24} parent=0 // pred_fallthru
    _
  %p12 = scmp.eq.s32.totalorder 0, 0
  // Predicated region
  $region10: #{mixer_model_forward.24} parent=0 // pred_check
    %p13 = pneg %p12
  $region11: #{mixer_model_forward.24} parent=0 // pred_check_branch
    %15 = sbr.rel (%p13) target = $region13
  $region12: #{mixer_model_forward.24} parent=0 // pred_region
    %vm16 = vcmask 523264
    %17 = vst.msk [vmem:[#allocation2] sm:$0xff] %vm16, 0.0
    %18 = vst.msk [vmem:[#allocation2 + $0x8] sm:$0xff] %vm16, 0.0
  $region13: #{mixer_model_forward.24} parent=0 // pred_fallthru
    _
  %v19 = vld [vmem:[#allocation2] sm:$0xff]
  %v20 = vld [vmem:[#allocation2 + $0x8] sm:$0xff]
  %v21 = vld [vmem:[%s0] sm:$0xf]
  %v22 = vld [vmem:[%s0 + $0x4] sm:$0xf]
  %v23 = vld [vmem:[%s1] sm:$0x1]
  %v26 = vunpack.c.l.b16 %v21
  %v27 = vunpack.c.l.b16 %v22
  %v28 = vpack.c.b16 %v27, %v26
  %vm29 = vcmask 15360
  %v31 = vsel %vm29, %v28, 0
  %vm33 = vcmask 1040384
  %v35 = vsel %vm33, %v23, 0
  %37 = vmatprep.subr.bf16.mxu0 0
  %38 = vmatpush1.bf16.msra.mxu0 0
  %39 = vmatprep.subr.bf16.mxu0 0
  %40 = vmatpush1.bf16.msra.mxu0 0
  %41 = vmatprep.subr.bf16.mxu0 0
  %42 = vmatpush1.bf16.msra.mxu0 0
  %43 = vmatprep.subr.bf16.mxu0 0
  %44 = vmatpush1.bf16.msra.mxu0 0
  %45 = vmatprep.subr.bf16.mxu0 0
  %46 = vmatpush1.bf16.msra.mxu0 0
  %47 = vmatprep.subr.bf16.mxu0 0
  %48 = vmatpush1.bf16.msra.mxu0 0
  %49 = vmatprep.subr.bf16.mxu0 0
  %50 = vmatpush1.bf16.msra.mxu0 0
  %51 = vmatprep.subr.bf16.mxu0 0
  %52 = vmatpush1.bf16.msra.mxu0 %v35
  %53 = vmatprep.subr.bf16.mxu0 0
  %54 = vmatpush2.bf16.msra.mxu0 0
  %55 = vmatprep.subr.bf16.mxu0 0
  %56 = vmatpush2.bf16.msra.mxu0 0
  %57 = vmatprep.subr.bf16.mxu0 0
  %58 = vmatpush2.bf16.msra.mxu0 0
  %59 = vmatprep.subr.bf16.mxu0 0
  %60 = vmatpush2.bf16.msra.mxu0 0
  %61 = vmatprep.subr.bf16.mxu0 0
  %62 = vmatpush2.bf16.msra.mxu0 0
  %63 = vmatprep.subr.bf16.mxu0 0
  %64 = vmatpush2.bf16.msra.mxu0 0
  %65 = vmatprep.subr.bf16.mxu0 0
  %66 = vmatpush2.bf16.msra.mxu0 0
  %67 = vmatprep.subr.bf16.mxu0 0
  %68 = vmatpush2.bf16.msra.mxu0 0
  %69 = vmatprep.mubr.bf16.mxu0 0
  %70 = vmatmul.mubr.bf16.gmra.mxu0 %v31
  %v71 = vpop.f32.mrf.mxu0
  %v72 = vadd.f32 0.0, %v71
  %v73 = vpop.f32.mrf.mxu0
  %v74 = vpop.f32.mrf.mxu0
  %v75 = vadd.f32 0.0, %v74
  %v76 = vpop.f32.mrf.mxu0
  %77 = vdwg.mxu0
  %v78 = vadd.f32 %v19, %v72
  %v79 = vadd.f32 %v20, %v75
  %vm80 = vcmask 523264
  %81 = vst.msk [vmem:[#allocation2] sm:$0xff] %vm80, %v78
  %82 = vst.msk [vmem:[#allocation2 + $0x8] sm:$0xff] %vm80, %v79
  // Predicated region
  $region14: #{mixer_model_forward.24} parent=0 // pred_check
    %p83 = pneg %p12
  $region15: #{mixer_model_forward.24} parent=0 // pred_check_branch
    %85 = sbr.rel (%p83) target = $region17
  $region16: #{mixer_model_forward.24} parent=0 // pred_region
    %v86 = vld [vmem:[#allocation2] sm:$0xff]
    %v87 = vld [vmem:[#allocation2 + $0x8] sm:$0xff]
    %v88 = vpack.c.bf16 %v87, %v86
    %v90 = vunpack.c.l.b16 %v88
    %v91 = vunpack.c.h.b16 %v88
    %v92 = vpack.c.b16 %v90, %v90
    %v93 = vpack.c.b16 %v91, %v91
    %vm96 = vcmask 519168
    %97 = vst.msk [vmem:[%s2] sm:$0xf] %vm96, %v92
    %98 = vst.msk [vmem:[%s2 + $0x4] sm:$0xf] %vm96, %v93
  $region17: #{mixer_model_forward.24} parent=0 // pred_fallthru
    _
  // Predicated region
  $region18: #{mixer_model_forward.24} parent=0 // pred_check
    _
  $region19: #{mixer_model_forward.24} parent=0 // pred_check_branch
    %100 = sbr.rel (0) target = $region21
  $region20: #{mixer_model_forward.24} parent=0 // pred_region
    _
  $region21: #{mixer_model_forward.24} parent=0 // pred_fallthru
    _
  // Predicated region
  $region22: #{mixer_model_forward.24} parent=0 // pred_check
    _
  $region23: #{mixer_model_forward.24} parent=0 // pred_check_branch
    %102 = sbr.rel (0) target = $region25
  $region24: #{mixer_model_forward.24} parent=0 // pred_region
    _
  $region25: #{mixer_model_forward.24} parent=0 // pred_fallthru
    _

// kernel: mixer_model_forward.23
$region0: #{mixer_model_forward.23}
  #allocation0 [shape = 'u32[]', space=smem, size = 0x4, offset = 0x4, fixed_abs, tag = 'smem constant byte address 0x4 - core index']
  #allocation1 [shape = 'u32[144,128]{1,0:T(1,128)}', space=vmem, size = 0x12000, scoped, tag = 'internal scratch']
  #allocation2 [shape = 'f32[16,128]{1,0:T(8,128)}', space=vmem, size = 0x2000, scoped, tag = 'scratch operand']
  %s0 = inlined_call_operand.vmem [shape: bf16[16,64], index: 0, kind: input, shape index: {}]
  %s1 = inlined_call_operand.vmem [shape: bf16[64,128], index: 1, kind: input, shape index: {}]
  %s2 = inlined_call_operand.vmem [shape: bf16[16,128], index: 2, kind: output, shape index: {}]
  %s3 = sld [smem:[#allocation0]]
  $region26: #{mixer_model_forward.23} parent=0
    _
  %s5 = ssub.s32 1, %s3
  %s6 = scalar_select 0, %s5, %s3
  // Predicated region
  $region2: #{mixer_model_forward.23} parent=0 // pred_check
    _
  $region3: #{mixer_model_forward.23} parent=0 // pred_check_branch
    %8 = sbr.rel (0) target = $region5
  $region4: #{mixer_model_forward.23} parent=0 // pred_region
    _
  $region5: #{mixer_model_forward.23} parent=0 // pred_fallthru
    _
  // Predicated region
  $region6: #{mixer_model_forward.23} parent=0 // pred_check
    _
  $region7: #{mixer_model_forward.23} parent=0 // pred_check_branch
    %10 = sbr.rel (0) target = $region9
  $region8: #{mixer_model_forward.23} parent=0 // pred_region
    _
  $region9: #{mixer_model_forward.23} parent=0 // pred_fallthru
    _
  %p12 = scmp.eq.s32.totalorder 0, 0
  // Predicated region
  $region10: #{mixer_model_forward.23} parent=0 // pred_check
    %p13 = pneg %p12
  $region11: #{mixer_model_forward.23} parent=0 // pred_check_branch
    %15 = sbr.rel (%p13) target = $region13
  $region12: #{mixer_model_forward.23} parent=0 // pred_region
    %16 = vst [vmem:[#allocation2] sm:$0xff] 0.0
    %17 = vst [vmem:[#allocation2 + $0x8] sm:$0xff] 0.0
  $region13: #{mixer_model_forward.23} parent=0 // pred_fallthru
    _
  %v18 = vld [vmem:[#allocation2] sm:$0xff]
  %v19 = vld [vmem:[#allocation2 + $0x8] sm:$0xff]
  %v20 = vld [vmem:[%s0] sm:$0xf]
  %v21 = vld [vmem:[%s0 + $0x4] sm:$0xf]
  %v22 = vld [vmem:[%s1] sm:$0xf]
  %v23 = vld [vmem:[%s1 + $0x4] sm:$0xf]
  %v24 = vld [vmem:[%s1 + $0x8] sm:$0xf]
  %v25 = vld [vmem:[%s1 + $0xc] sm:$0xf]
  %v26 = vld [vmem:[%s1 + $0x10] sm:$0xf]
  %v27 = vld [vmem:[%s1 + $0x14] sm:$0xf]
  %v28 = vld [vmem:[%s1 + $0x18] sm:$0xf]
  %v29 = vld [vmem:[%s1 + $0x1c] sm:$0xf]
  %v32 = vunpack.c.l.b16 %v20
  %v33 = vunpack.c.l.b16 %v21
  %v34 = vpack.c.b16 %v33, %v32
  %v43 = vunpack.c.l.b16 %v22
  %v44 = vunpack.c.l.b16 %v23
  %v45 = vunpack.c.l.b16 %v24
  %v46 = vunpack.c.l.b16 %v25
  %v47 = vunpack.c.l.b16 %v26
  %v48 = vunpack.c.l.b16 %v27
  %v49 = vunpack.c.l.b16 %v28
  %v50 = vunpack.c.l.b16 %v29
  %v51 = vpack.c.b16 %v44, %v43
  %v52 = vpack.c.b16 %v46, %v45
  %v53 = vpack.c.b16 %v48, %v47
  %v54 = vpack.c.b16 %v50, %v49
  %vm59 = vcmask 523264
  %v61 = vsel %vm59, %v34, 0
  %63 = vmatprep.subr.bf16.mxu0 0
  %64 = vmatpush1.bf16.msra.mxu0 0
  %65 = vmatprep.subr.bf16.mxu0 0
  %66 = vmatpush1.bf16.msra.mxu0 0
  %67 = vmatprep.subr.bf16.mxu0 0
  %68 = vmatpush1.bf16.msra.mxu0 0
  %69 = vmatprep.subr.bf16.mxu0 0
  %70 = vmatpush1.bf16.msra.mxu0 0
  %71 = vmatprep.subr.bf16.mxu0 0
  %72 = vmatpush1.bf16.msra.mxu0 %v54
  %73 = vmatprep.subr.bf16.mxu0 0
  %74 = vmatpush1.bf16.msra.mxu0 %v53
  %75 = vmatprep.subr.bf16.mxu0 0
  %76 = vmatpush1.bf16.msra.mxu0 %v52
  %77 = vmatprep.subr.bf16.mxu0 0
  %78 = vmatpush1.bf16.msra.mxu0 %v51
  %79 = vmatprep.subr.bf16.mxu0 0
  %80 = vmatpush2.bf16.msra.mxu0 0
  %81 = vmatprep.subr.bf16.mxu0 0
  %82 = vmatpush2.bf16.msra.mxu0 0
  %83 = vmatprep.subr.bf16.mxu0 0
  %84 = vmatpush2.bf16.msra.mxu0 0
  %85 = vmatprep.subr.bf16.mxu0 0
  %86 = vmatpush2.bf16.msra.mxu0 0
  %87 = vmatprep.subr.bf16.mxu0 0
  %88 = vmatpush2.bf16.msra.mxu0 0
  %89 = vmatprep.subr.bf16.mxu0 0
  %90 = vmatpush2.bf16.msra.mxu0 0
  %91 = vmatprep.subr.bf16.mxu0 0
  %92 = vmatpush2.bf16.msra.mxu0 0
  %93 = vmatprep.subr.bf16.mxu0 0
  %94 = vmatpush2.bf16.msra.mxu0 0
  %95 = vmatprep.mubr.bf16.mxu0 0
  %96 = vmatmul.mubr.bf16.gmra.mxu0 %v61
  %v97 = vpop.f32.mrf.mxu0
  %v98 = vadd.f32 0.0, %v97
  %v99 = vpop.f32.mrf.mxu0
  %v100 = vpop.f32.mrf.mxu0
  %v101 = vadd.f32 0.0, %v100
  %v102 = vpop.f32.mrf.mxu0
  %103 = vdwg.mxu0
  %v104 = vadd.f32 %v18, %v98
  %v105 = vadd.f32 %v19, %v101
  %106 = vst [vmem:[#allocation2] sm:$0xff] %v104
  %107 = vst [vmem:[#allocation2 + $0x8] sm:$0xff] %v105
  // Predicated region
  $region14: #{mixer_model_forward.23} parent=0 // pred_check
    %p108 = pneg %p12
  $region15: #{mixer_model_forward.23} parent=0 // pred_check_branch
    %110 = sbr.rel (%p108) target = $region17
  $region16: #{mixer_model_forward.23} parent=0 // pred_region
    %v111 = vld [vmem:[#allocation2] sm:$0xff]
    %v112 = vld [vmem:[#allocation2 + $0x8] sm:$0xff]
    %v113 = vpack.c.bf16 %v112, %v111
    %v115 = vunpack.c.l.b16 %v113
    %v116 = vunpack.c.h.b16 %v113
    %v117 = vpack.c.b16 %v115, %v115
    %v118 = vpack.c.b16 %v116, %v116
    %121 = vst [vmem:[%s2] sm:$0xf] %v117
    %122 = vst [vmem:[%s2 + $0x4] sm:$0xf] %v118
  $region17: #{mixer_model_forward.23} parent=0 // pred_fallthru
    _
  // Predicated region
  $region18: #{mixer_model_forward.23} parent=0 // pred_check
    _
  $region19: #{mixer_model_forward.23} parent=0 // pred_check_branch
    %124 = sbr.rel (0) target = $region21
  $region20: #{mixer_model_forward.23} parent=0 // pred_region
    _
  $region21: #{mixer_model_forward.23} parent=0 // pred_fallthru
    _
  // Predicated region
  $region22: #{mixer_model_forward.23} parent=0 // pred_check
    _
  $region23: #{mixer_model_forward.23} parent=0 // pred_check_branch
    %126 = sbr.rel (0) target = $region25
  $region24: #{mixer_model_forward.23} parent=0 // pred_region
    _
  $region25: #{mixer_model_forward.23} parent=0 // pred_fallthru
    _

// kernel: mixer_model_forward.25
$region0: #{mixer_model_forward.25}
  #allocation0 [shape = 'u32[]', space=smem, size = 0x4, offset = 0x4, fixed_abs, tag = 'smem constant byte address 0x4 - core index']
  #allocation1 [shape = 'u32[144,128]{1,0:T(1,128)}', space=vmem, size = 0x12000, scoped, tag = 'internal scratch']
  #allocation2 [shape = 'f32[16,64]{1,0:T(8,128)}', space=vmem, size = 0x2000, scoped, tag = 'scratch operand']
  #allocation3 [shape = 'f32[8,64]{1,0:T(8,128)}', space=vmem, size = 0x1000, scoped, tag = 'scratch operand']
  #allocation4 [shape = 'f32[8,16,64]{2,1,0:T(8,128)}', space=vmem, size = 0x10000, scoped, tag = 'scratch operand']
  #allocation5 [shape = 'f32[8,16,64]{2,1,0:T(8,128)}', space=vmem, size = 0x10000, scoped, tag = 'scratch operand']
  #allocation6 [shape = 'f32[8,64]{1,0:T(8,128)}', space=vmem, size = 0x1000, scoped, tag = 'scratch operand']
  %s0 = inlined_call_operand.vmem [shape: bf16[2,8,64], index: 0, kind: input, shape index: {}]
  %s1 = inlined_call_operand.vmem [shape: bf16[2,8,64], index: 1, kind: input, shape index: {}]
  %s2 = inlined_call_operand.vmem [shape: bf16[2,8,16], index: 2, kind: input, shape index: {}]
  %s3 = inlined_call_operand.vmem [shape: bf16[2,8,16], index: 3, kind: input, shape index: {}]
  %s4 = inlined_call_operand.vmem [shape: bf16[2,8,64], index: 4, kind: input, shape index: {}]
  %s5 = inlined_call_operand.vmem [shape: f32[16,64], index: 5, kind: input, shape index: {}]
  %s6 = inlined_call_operand.vmem [shape: f32[1,64], index: 6, kind: input, shape index: {}]
  %s7 = inlined_call_operand.vmem [shape: f32[1,64], index: 7, kind: input, shape index: {}]
  %s8 = inlined_call_operand.vmem [shape: bf16[2,8,64], index: 8, kind: output, shape index: {}]
  %s9 = sld [smem:[#allocation0]]
  $region76: #{mixer_model_forward.25} parent=0
    _
  %s11 = ssub.s32 1, %s9
  %s12 = scalar_select 0, %s11, %s9
  loop: start=0, step=1, limit=4
  $region2: #{mixer_model_forward.25} parent=0 // loop_pre_header
    _
  $region3: #{mixer_model_forward.25} parent=0 // loop_header
    %s14 = sphi 0, %s18
    %p15 = scmp.ge.s32.totalorder %s14, 4
    %s21 = sphi 0, %s40
    %s22 = sphi 0, %s36
    %s23 = sphi 0, %s32
    %s24 = sphi 0, %s21
    %s25 = sphi 0, %s22
    %s26 = sphi 0, %s23
    %s27 = sphi 0, %s24
    %s28 = sphi 0, %s25
    %s29 = sphi 0, %s26
    %s49 = sphi 0, %s51
    %s52 = sphi 0, %s49
    %s53 = sphi 0, %s52
    %s69 = sphi 0, %s53
    %s81 = sphi 0, %s83
    %s84 = sphi 0, %s81
    %s85 = sphi 0, %s84
    %s101 = sphi 0, %s85
    %s111 = sphi 0, %s113
    %s114 = sphi 0, %s111
    %s115 = sphi 0, %s114
    %s131 = sphi 0, %s115
    %s141 = sphi 0, %s143
    %s144 = sphi 0, %s141
    %s145 = sphi 0, %s144
    %s161 = sphi 0, %s145
    %s173 = sphi 0, %s175
    %s176 = sphi 0, %s173
    %s177 = sphi 0, %s176
    %s193 = sphi 0, %s177
    %s199 = sphi 0, %s201
    %s202 = sphi 0, %s199
    %s203 = sphi 0, %s202
    %s219 = sphi 0, %s203
    %s225 = sphi 0, %s227
    %s228 = sphi 0, %s225
    %s229 = sphi 0, %s228
    %s245 = sphi 0, %s229
    %s251 = sphi 0, %s253
    %s254 = sphi 0, %s251
    %s255 = sphi 0, %s254
    %s271 = sphi 0, %s255
    %s283 = sphi 0, %s285
    %s286 = sphi 0, %s283
    %s287 = sphi 0, %s286
    %s303 = sphi 0, %s287
  $region4: #{mixer_model_forward.25} parent=0 // loop_header_branch
    %17 = sbr.rel (%p15) target = $region8
  $region5: #{mixer_model_forward.25} parent=0 // loop_body
    %s19 = ssub.s32 %s14, 1
    %s20 = ssub.s32 %s14, 2
    %s30 = sadd.s32 1, %s23
    %p31 = scmp.ge.s32.totalorder %s30, 1
    %s32 = scalar_select %p31, 0, %s30
    %s33 = sadd.s32 1, %s22
    %s34 = scalar_select %p31, %s33, %s22
    %p35 = scmp.ge.s32.totalorder %s34, 1
    %s36 = scalar_select %p35, 0, %s34
    %s37 = sadd.s32 1, %s21
    %s38 = scalar_select %p35, %s37, %s21
    %p39 = scmp.ge.s32.totalorder %s38, 2
    %s40 = scalar_select %p39, 0, %s38
    %s41 = ssub.s32 0, %s23
    %s42 = ssub.s32 0, %s32
    %s43 = ssub.s32 %s21, %s40
    %s44 = ssub.s32 %s41, %s42
    %s45 = sor.u32 %s43, %s44
    %s46 = ssub.s32 %s22, %s36
    %s47 = sor.u32 %s45, %s46
    %p48 = scmp.eq.s32.totalorder %s47, 0
    %s50 = sadd.s32 %s49, 1
    %s51 = scalar_select %p48, %s49, %s50
    %p54 = pneg %p48
    %p55 = scmp.eq.s32.totalorder %s14, 1
    %p56 = por %p54, %p55
    %p57 = scmp.ne.s32.totalorder %s49, %s52
    %p58 = scmp.eq.s32.totalorder %s14, 0
    %p59 = por %p57, %p58
    %p60 = scmp.ne.s32.totalorder %s49, %s52
    %p61 = scmp.eq.s32.totalorder %s19, 1
    %p62 = por %p60, %p61
    %p63 = scmp.ne.s32.totalorder %s52, %s53
    %p64 = scmp.eq.s32.totalorder %s19, 0
    %p65 = por %p63, %p64
    %p66 = scmp.ne.s32.totalorder %s52, %s53
    %p67 = scmp.eq.s32.totalorder %s20, 1
    %p68 = por %p66, %p67
    %p70 = scmp.ne.s32.totalorder %s53, %s69
    %p71 = scmp.eq.s32.totalorder %s20, 0
    %p72 = por %p70, %p71
    %s73 = ssub.s32 0, %s23
    %s74 = ssub.s32 0, %s32
    %s75 = ssub.s32 %s21, %s40
    %s76 = ssub.s32 %s73, %s74
    %s77 = sor.u32 %s75, %s76
    %s78 = ssub.s32 %s22, %s36
    %s79 = sor.u32 %s77, %s78
    %p80 = scmp.eq.s32.totalorder %s79, 0
    %s82 = sadd.s32 %s81, 1
    %s83 = scalar_select %p80, %s81, %s82
    %p86 = pneg %p80
    %p87 = scmp.eq.s32.totalorder %s14, 1
    %p88 = por %p86, %p87
    %p89 = scmp.ne.s32.totalorder %s81, %s84
    %p90 = scmp.eq.s32.totalorder %s14, 0
    %p91 = por %p89, %p90
    %p92 = scmp.ne.s32.totalorder %s81, %s84
    %p93 = scmp.eq.s32.totalorder %s19, 1
    %p94 = por %p92, %p93
    %p95 = scmp.ne.s32.totalorder %s84, %s85
    %p96 = scmp.eq.s32.totalorder %s19, 0
    %p97 = por %p95, %p96
    %p98 = scmp.ne.s32.totalorder %s84, %s85
    %p99 = scmp.eq.s32.totalorder %s20, 1
    %p100 = por %p98, %p99
    %p102 = scmp.ne.s32.totalorder %s85, %s101
    %p103 = scmp.eq.s32.totalorder %s20, 0
    %p104 = por %p102, %p103
    %s105 = ssub.s32 0, %s23
    %s106 = ssub.s32 0, %s32
    %s107 = ssub.s32 %s21, %s40
    %s108 = ssub.s32 %s105, %s106
    %s109 = sor.u32 %s107, %s108
    %p110 = scmp.eq.s32.totalorder %s109, 0
    %s112 = sadd.s32 %s111, 1
    %s113 = scalar_select %p110, %s111, %s112
    %p116 = pneg %p110
    %p117 = scmp.eq.s32.totalorder %s14, 1
    %p118 = por %p116, %p117
    %p119 = scmp.ne.s32.totalorder %s111, %s114
    %p120 = scmp.eq.s32.totalorder %s14, 0
    %p121 = por %p119, %p120
    %p122 = scmp.ne.s32.totalorder %s111, %s114
    %p123 = scmp.eq.s32.totalorder %s19, 1
    %p124 = por %p122, %p123
    %p125 = scmp.ne.s32.totalorder %s114, %s115
    %p126 = scmp.eq.s32.totalorder %s19, 0
    %p127 = por %p125, %p126
    %p128 = scmp.ne.s32.totalorder %s114, %s115
    %p129 = scmp.eq.s32.totalorder %s20, 1
    %p130 = por %p128, %p129
    %p132 = scmp.ne.s32.totalorder %s115, %s131
    %p133 = scmp.eq.s32.totalorder %s20, 0
    %p134 = por %p132, %p133
    %s135 = ssub.s32 0, %s23
    %s136 = ssub.s32 0, %s32
    %s137 = ssub.s32 %s21, %s40
    %s138 = ssub.s32 %s135, %s136
    %s139 = sor.u32 %s137, %s138
    %p140 = scmp.eq.s32.totalorder %s139, 0
    %s142 = sadd.s32 %s141, 1
    %s143 = scalar_select %p140, %s141, %s142
    %p146 = pneg %p140
    %p147 = scmp.eq.s32.totalorder %s14, 1
    %p148 = por %p146, %p147
    %p149 = scmp.ne.s32.totalorder %s141, %s144
    %p150 = scmp.eq.s32.totalorder %s14, 0
    %p151 = por %p149, %p150
    %p152 = scmp.ne.s32.totalorder %s141, %s144
    %p153 = scmp.eq.s32.totalorder %s19, 1
    %p154 = por %p152, %p153
    %p155 = scmp.ne.s32.totalorder %s144, %s145
    %p156 = scmp.eq.s32.totalorder %s19, 0
    %p157 = por %p155, %p156
    %p158 = scmp.ne.s32.totalorder %s144, %s145
    %p159 = scmp.eq.s32.totalorder %s20, 1
    %p160 = por %p158, %p159
    %p162 = scmp.ne.s32.totalorder %s145, %s161
    %p163 = scmp.eq.s32.totalorder %s20, 0
    %p164 = por %p162, %p163
    %s165 = ssub.s32 0, %s23
    %s166 = ssub.s32 0, %s32
    %s167 = ssub.s32 %s21, %s40
    %s168 = ssub.s32 %s165, %s166
    %s169 = sor.u32 %s167, %s168
    %s170 = ssub.s32 %s22, %s36
    %s171 = sor.u32 %s169, %s170
    %p172 = scmp.eq.s32.totalorder %s171, 0
    %s174 = sadd.s32 %s173, 1
    %s175 = scalar_select %p172, %s173, %s174
    %p178 = pneg %p172
    %p179 = scmp.eq.s32.totalorder %s14, 1
    %p180 = por %p178, %p179
    %p181 = scmp.ne.s32.totalorder %s173, %s176
    %p182 = scmp.eq.s32.totalorder %s14, 0
    %p183 = por %p181, %p182
    %p184 = scmp.ne.s32.totalorder %s173, %s176
    %p185 = scmp.eq.s32.totalorder %s19, 1
    %p186 = por %p184, %p185
    %p187 = scmp.ne.s32.totalorder %s176, %s177
    %p188 = scmp.eq.s32.totalorder %s19, 0
    %p189 = por %p187, %p188
    %p190 = scmp.ne.s32.totalorder %s176, %s177
    %p191 = scmp.eq.s32.totalorder %s20, 1
    %p192 = por %p190, %p191
    %p194 = scmp.ne.s32.totalorder %s177, %s193
    %p195 = scmp.eq.s32.totalorder %s20, 0
    %p196 = por %p194, %p195
    %s197 = ssub.s32 %s22, %s36
    %p198 = scmp.eq.s32.totalorder %s197, 0
    %s200 = sadd.s32 %s199, 1
    %s201 = scalar_select %p198, %s199, %s200
    %p204 = pneg %p198
    %p205 = scmp.eq.s32.totalorder %s14, 1
    %p206 = por %p204, %p205
    %p207 = scmp.ne.s32.totalorder %s199, %s202
    %p208 = scmp.eq.s32.totalorder %s14, 0
    %p209 = por %p207, %p208
    %p210 = scmp.ne.s32.totalorder %s199, %s202
    %p211 = scmp.eq.s32.totalorder %s19, 1
    %p212 = por %p210, %p211
    %p213 = scmp.ne.s32.totalorder %s202, %s203
    %p214 = scmp.eq.s32.totalorder %s19, 0
    %p215 = por %p213, %p214
    %p216 = scmp.ne.s32.totalorder %s202, %s203
    %p217 = scmp.eq.s32.totalorder %s20, 1
    %p218 = por %p216, %p217
    %p220 = scmp.ne.s32.totalorder %s203, %s219
    %p221 = scmp.eq.s32.totalorder %s20, 0
    %p222 = por %p220, %p221
    %s223 = ssub.s32 %s22, %s36
    %p224 = scmp.eq.s32.totalorder %s223, 0
    %s226 = sadd.s32 %s225, 1
    %s227 = scalar_select %p224, %s225, %s226
    %p230 = pneg %p224
    %p231 = scmp.eq.s32.totalorder %s14, 1
    %p232 = por %p230, %p231
    %p233 = scmp.ne.s32.totalorder %s225, %s228
    %p234 = scmp.eq.s32.totalorder %s14, 0
    %p235 = por %p233, %p234
    %p236 = scmp.ne.s32.totalorder %s225, %s228
    %p237 = scmp.eq.s32.totalorder %s19, 1
    %p238 = por %p236, %p237
    %p239 = scmp.ne.s32.totalorder %s228, %s229
    %p240 = scmp.eq.s32.totalorder %s19, 0
    %p241 = por %p239, %p240
    %p242 = scmp.ne.s32.totalorder %s228, %s229
    %p243 = scmp.eq.s32.totalorder %s20, 1
    %p244 = por %p242, %p243
    %p246 = scmp.ne.s32.totalorder %s229, %s245
    %p247 = scmp.eq.s32.totalorder %s20, 0
    %p248 = por %p246, %p247
    %s249 = ssub.s32 %s22, %s36
    %p250 = scmp.eq.s32.totalorder %s249, 0
    %s252 = sadd.s32 %s251, 1
    %s253 = scalar_select %p250, %s251, %s252
    %p256 = pneg %p250
    %p257 = scmp.eq.s32.totalorder %s14, 1
    %p258 = por %p256, %p257
    %p259 = scmp.ne.s32.totalorder %s251, %s254
    %p260 = scmp.eq.s32.totalorder %s14, 0
    %p261 = por %p259, %p260
    %p262 = scmp.ne.s32.totalorder %s251, %s254
    %p263 = scmp.eq.s32.totalorder %s19, 1
    %p264 = por %p262, %p263
    %p265 = scmp.ne.s32.totalorder %s254, %s255
    %p266 = scmp.eq.s32.totalorder %s19, 0
    %p267 = por %p265, %p266
    %p268 = scmp.ne.s32.totalorder %s254, %s255
    %p269 = scmp.eq.s32.totalorder %s20, 1
    %p270 = por %p268, %p269
    %p272 = scmp.ne.s32.totalorder %s255, %s271
    %p273 = scmp.eq.s32.totalorder %s20, 0
    %p274 = por %p272, %p273
    %s275 = ssub.s32 0, %s23
    %s276 = ssub.s32 0, %s32
    %s277 = ssub.s32 %s21, %s40
    %s278 = ssub.s32 %s275, %s276
    %s279 = sor.u32 %s277, %s278
    %s280 = ssub.s32 %s22, %s36
    %s281 = sor.u32 %s279, %s280
    %p282 = scmp.eq.s32.totalorder %s281, 0
    %s284 = sadd.s32 %s283, 1
    %s285 = scalar_select %p282, %s283, %s284
    %p288 = pneg %p282
    %p289 = scmp.eq.s32.totalorder %s14, 1
    %p290 = por %p288, %p289
    %p291 = scmp.ne.s32.totalorder %s283, %s286
    %p292 = scmp.eq.s32.totalorder %s14, 0
    %p293 = por %p291, %p292
    %p294 = scmp.ne.s32.totalorder %s283, %s286
    %p295 = scmp.eq.s32.totalorder %s19, 1
    %p296 = por %p294, %p295
    %p297 = scmp.ne.s32.totalorder %s286, %s287
    %p298 = scmp.eq.s32.totalorder %s19, 0
    %p299 = por %p297, %p298
    %p300 = scmp.ne.s32.totalorder %s286, %s287
    %p301 = scmp.eq.s32.totalorder %s20, 1
    %p302 = por %p300, %p301
    %p304 = scmp.ne.s32.totalorder %s287, %s303
    %p305 = scmp.eq.s32.totalorder %s20, 0
    %p306 = por %p304, %p305
    %p307 = scmp.le.s32.totalorder 1, %s14
    %p308 = scmp.lt.s32.totalorder %s14, 3
    %p309 = pnand %p307, %p308
    %p310 = pneg %p309
    // Predicated region
    $region9: #{mixer_model_forward.25} parent=5 // pred_check
      _
    $region10: #{mixer_model_forward.25} parent=5 // pred_check_branch
      %312 = sbr.rel (%p309) target = $region12
    $region11: #{mixer_model_forward.25} parent=5 // pred_region
      %s313 = ssub.s32 %s14, 1
      // Predicated region
      $region13: #{mixer_model_forward.25} parent=11 // pred_check
        %p314 = pneg %p215
      $region14: #{mixer_model_forward.25} parent=11 // pred_check_branch
        %316 = sbr.rel (%p314) target = $region16
      $region15: #{mixer_model_forward.25} parent=11 // pred_region
        %p317 = scmp.lt.s32.totalorder %s25, 0
        %s318 = scalar_select %p317, %s25, 0
        %s319 = smul.addr %s318, 8
        %s320 = scalar_lea.vmem %s5, %s319
      $region16: #{mixer_model_forward.25} parent=11 // pred_fallthru
        _
      // Predicated region
      $region17: #{mixer_model_forward.25} parent=11 // pred_check
        %p321 = pneg %p241
      $region18: #{mixer_model_forward.25} parent=11 // pred_check_branch
        %323 = sbr.rel (%p321) target = $region20
      $region19: #{mixer_model_forward.25} parent=11 // pred_region
        %p324 = scmp.lt.s32.totalorder %s25, 0
        %s325 = scalar_select %p324, %s25, 0
        %s326 = scalar_lea.vmem %s6, %s325
      $region20: #{mixer_model_forward.25} parent=11 // pred_fallthru
        _
      // Predicated region
      $region21: #{mixer_model_forward.25} parent=11 // pred_check
        %p327 = pneg %p267
      $region22: #{mixer_model_forward.25} parent=11 // pred_check_branch
        %329 = sbr.rel (%p327) target = $region24
      $region23: #{mixer_model_forward.25} parent=11 // pred_region
        %p330 = scmp.lt.s32.totalorder %s25, 0
        %s331 = scalar_select %p330, %s25, 0
        %s332 = scalar_lea.vmem %s7, %s331
      $region24: #{mixer_model_forward.25} parent=11 // pred_fallthru
        _
    $region12: #{mixer_model_forward.25} parent=5 // pred_fallthru
      _
    %p333 = scmp.lt.s32.totalorder %s14, 2
    // Predicated region
    $region25: #{mixer_model_forward.25} parent=5 // pred_check
      %p334 = pneg %p333
    $region26: #{mixer_model_forward.25} parent=5 // pred_check_branch
      %336 = sbr.rel (%p334) target = $region28
    $region27: #{mixer_model_forward.25} parent=5 // pred_region
      // Predicated region
      $region29: #{mixer_model_forward.25} parent=27 // pred_check
        %p337 = pneg %p59
      $region30: #{mixer_model_forward.25} parent=27 // pred_check_branch
        %339 = sbr.rel (%p337) target = $region32
      $region31: #{mixer_model_forward.25} parent=27 // pred_region
        %s340 = ssub.s32 0, %s23
        %p341 = scmp.lt.s32.totalorder %s21, 1
        %s342 = scalar_select %p341, %s21, 1
        %p343 = scmp.lt.s32.totalorder %s340, 0
        %s344 = scalar_select %p343, %s340, 0
        %p345 = scmp.lt.s32.totalorder %s22, 0
        %s346 = scalar_select %p345, %s22, 0
        %s347 = sadd.s32 %s346, %s344
        %s348 = sadd.s32 %s347, %s342
        %s349 = smul.addr %s348, 4
        %s350 = scalar_lea.vmem %s0, %s349
        %s351 = ssub.s32 0, %s23
      $region32: #{mixer_model_forward.25} parent=27 // pred_fallthru
        _
      // Predicated region
      $region33: #{mixer_model_forward.25} parent=27 // pred_check
        %p352 = pneg %p91
      $region34: #{mixer_model_forward.25} parent=27 // pred_check_branch
        %354 = sbr.rel (%p352) target = $region36
      $region35: #{mixer_model_forward.25} parent=27 // pred_region
        %s355 = ssub.s32 0, %s23
        %p356 = scmp.lt.s32.totalorder %s21, 1
        %s357 = scalar_select %p356, %s21, 1
        %p358 = scmp.lt.s32.totalorder %s355, 0
        %s359 = scalar_select %p358, %s355, 0
        %p360 = scmp.lt.s32.totalorder %s22, 0
        %s361 = scalar_select %p360, %s22, 0
        %s362 = sadd.s32 %s361, %s359
        %s363 = sadd.s32 %s362, %s357
        %s364 = smul.addr %s363, 4
        %s365 = scalar_lea.vmem %s1, %s364
        %s366 = ssub.s32 0, %s23
      $region36: #{mixer_model_forward.25} parent=27 // pred_fallthru
        _
      // Predicated region
      $region37: #{mixer_model_forward.25} parent=27 // pred_check
        %p367 = pneg %p121
      $region38: #{mixer_model_forward.25} parent=27 // pred_check_branch
        %369 = sbr.rel (%p367) target = $region40
      $region39: #{mixer_model_forward.25} parent=27 // pred_region
        %s370 = ssub.s32 0, %s23
        %p371 = scmp.lt.s32.totalorder %s21, 1
        %s372 = scalar_select %p371, %s21, 1
        %p373 = scmp.lt.s32.totalorder %s370, 0
        %s374 = scalar_select %p373, %s370, 0
        %s375 = sadd.s32 %s374, %s372
        %s376 = smul.addr %s375, 4
        %s377 = scalar_lea.vmem %s2, %s376
        %s378 = ssub.s32 0, %s23
      $region40: #{mixer_model_forward.25} parent=27 // pred_fallthru
        _
      // Predicated region
      $region41: #{mixer_model_forward.25} parent=27 // pred_check
        %p379 = pneg %p151
      $region42: #{mixer_model_forward.25} parent=27 // pred_check_branch
        %381 = sbr.rel (%p379) target = $region44
      $region43: #{mixer_model_forward.25} parent=27 // pred_region
        %s382 = ssub.s32 0, %s23
        %p383 = scmp.lt.s32.totalorder %s21, 1
        %s384 = scalar_select %p383, %s21, 1
        %p385 = scmp.lt.s32.totalorder %s382, 0
        %s386 = scalar_select %p385, %s382, 0
        %s387 = sadd.s32 %s386, %s384
        %s388 = smul.addr %s387, 4
        %s389 = scalar_lea.vmem %s3, %s388
        %s390 = ssub.s32 0, %s23
      $region44: #{mixer_model_forward.25} parent=27 // pred_fallthru
        _
      // Predicated region
      $region45: #{mixer_model_forward.25} parent=27 // pred_check
        %p391 = pneg %p183
      $region46: #{mixer_model_forward.25} parent=27 // pred_check_branch
        %393 = sbr.rel (%p391) target = $region48
      $region47: #{mixer_model_forward.25} parent=27 // pred_region
        %s394 = ssub.s32 0, %s23
        %p395 = scmp.lt.s32.totalorder %s21, 1
        %s396 = scalar_select %p395, %s21, 1
        %p397 = scmp.lt.s32.totalorder %s394, 0
        %s398 = scalar_select %p397, %s394, 0
        %p399 = scmp.lt.s32.totalorder %s22, 0
        %s400 = scalar_select %p399, %s22, 0
        %s401 = sadd.s32 %s400, %s398
        %s402 = sadd.s32 %s401, %s396
        %s403 = smul.addr %s402, 4
        %s404 = scalar_lea.vmem %s4, %s403
        %s405 = ssub.s32 0, %s23
      $region48: #{mixer_model_forward.25} parent=27 // pred_fallthru
        _
    $region28: #{mixer_model_forward.25} parent=5 // pred_fallthru
      _
    %p406 = scmp.le.s32.totalorder 1, %s14
    %p407 = scmp.lt.s32.totalorder %s14, 3
    %p408 = pnand %p406, %p407
    %p409 = pneg %p408
    // Predicated region
    $region49: #{mixer_model_forward.25} parent=5 // pred_check
      _
    $region50: #{mixer_model_forward.25} parent=5 // pred_check_branch
      %411 = sbr.rel (%p408) target = $region52
    $region51: #{mixer_model_forward.25} parent=5 // pred_region
      %s412 = ssub.s32 %s14, 1
      %s413 = ssub.s32 0, %s26
      %p414 = scmp.lt.s32.totalorder %s24, 1
      %s415 = scalar_select %p414, %s24, 1
      %p416 = scmp.lt.s32.totalorder %s413, 0
      %s417 = scalar_select %p416, %s413, 0
      %p418 = scmp.lt.s32.totalorder %s25, 0
      %s419 = scalar_select %p418, %s25, 0
      %s420 = sadd.s32 %s419, %s417
      %s421 = sadd.s32 %s420, %s415
      %s422 = smul.addr %s421, 4
      %s423 = scalar_lea.vmem %s0, %s422
      %p424 = pneg %p65
      %p425 = pneg %p62
      %s426 = ssub.s32 0, %s26
      %p427 = scmp.lt.s32.totalorder %s24, 1
      %s428 = scalar_select %p427, %s24, 1
      %p429 = scmp.lt.s32.totalorder %s426, 0
      %s430 = scalar_select %p429, %s426, 0
      %p431 = scmp.lt.s32.totalorder %s25, 0
      %s432 = scalar_select %p431, %s25, 0
      %s433 = sadd.s32 %s432, %s430
      %s434 = sadd.s32 %s433, %s428
      %s435 = smul.addr %s434, 4
      %s436 = scalar_lea.vmem %s1, %s435
      %p437 = pneg %p97
      %p438 = pneg %p94
      %s439 = ssub.s32 0, %s26
      %p440 = scmp.lt.s32.totalorder %s24, 1
      %s441 = scalar_select %p440, %s24, 1
      %p442 = scmp.lt.s32.totalorder %s439, 0
      %s443 = scalar_select %p442, %s439, 0
      %s444 = sadd.s32 %s443, %s441
      %s445 = smul.addr %s444, 4
      %s446 = scalar_lea.vmem %s2, %s445
      %p447 = pneg %p127
      %p448 = pneg %p124
      %s449 = ssub.s32 0, %s26
      %p450 = scmp.lt.s32.totalorder %s24, 1
      %s451 = scalar_select %p450, %s24, 1
      %p452 = scmp.lt.s32.totalorder %s449, 0
      %s453 = scalar_select %p452, %s449, 0
      %s454 = sadd.s32 %s453, %s451
      %s455 = smul.addr %s454, 4
      %s456 = scalar_lea.vmem %s3, %s455
      %p457 = pneg %p157
      %p458 = pneg %p154
      %s459 = ssub.s32 0, %s26
      %p460 = scmp.lt.s32.totalorder %s24, 1
      %s461 = scalar_select %p460, %s24, 1
      %p462 = scmp.lt.s32.totalorder %s459, 0
      %s463 = scalar_select %p462, %s459, 0
      %p464 = scmp.lt.s32.totalorder %s25, 0
      %s465 = scalar_select %p464, %s25, 0
      %s466 = sadd.s32 %s465, %s463
      %s467 = sadd.s32 %s466, %s461
      %s468 = smul.addr %s467, 4
      %s469 = scalar_lea.vmem %s4, %s468
      %p470 = pneg %p189
      %p471 = pneg %p186
      %p472 = scmp.lt.s32.totalorder %s25, 0
      %s473 = scalar_select %p472, %s25, 0
      %s474 = smul.addr %s473, 8
      %s475 = scalar_lea.vmem %s5, %s474
      %p476 = pneg %p215
      %p477 = pneg %p212
      %p478 = scmp.lt.s32.totalorder %s25, 0
      %s479 = scalar_select %p478, %s25, 0
      %s480 = scalar_lea.vmem %s6, %s479
      %p481 = pneg %p241
      %p482 = pneg %p238
      %p483 = scmp.lt.s32.totalorder %s25, 0
      %s484 = scalar_select %p483, %s25, 0
      %s485 = scalar_lea.vmem %s7, %s484
      %p486 = pneg %p267
      %p487 = pneg %p264
      %p488 = pneg %p299
      %p489 = pneg %p296
      %s490 = ssub.s32 0, %s26
      %p491 = scmp.lt.s32.totalorder %s24, 1
      %s492 = scalar_select %p491, %s24, 1
      %p493 = scmp.lt.s32.totalorder %s490, 0
      %s494 = scalar_select %p493, %s490, 0
      %p495 = scmp.lt.s32.totalorder %s25, 0
      %s496 = scalar_select %p495, %s25, 0
      %s497 = sadd.s32 %s496, %s494
      %s498 = sadd.s32 %s497, %s492
      %s499 = smul.addr %s498, 4
      %s500 = scalar_lea.vmem %s8, %s499
      %s501 = ssub.s32 0, %s26
      %p502 = scmp.lt.s32.totalorder %s24, 1
      %s503 = scalar_select %p502, %s24, 1
      %p504 = scmp.lt.s32.totalorder %s501, 0
      %s505 = scalar_select %p504, %s501, 0
      %p506 = scmp.lt.s32.totalorder %s25, 0
      %s507 = scalar_select %p506, %s25, 0
      %s508 = sadd.s32 %s507, %s505
      %s509 = sadd.s32 %s508, %s503
      %s510 = smul.addr %s509, 4
      %s511 = scalar_lea.vmem %s0, %s510
      %s512 = ssub.s32 0, %s26
      %s513 = ssub.s32 0, %s26
      %p514 = scmp.lt.s32.totalorder %s24, 1
      %s515 = scalar_select %p514, %s24, 1
      %p516 = scmp.lt.s32.totalorder %s513, 0
      %s517 = scalar_select %p516, %s513, 0
      %p518 = scmp.lt.s32.totalorder %s25, 0
      %s519 = scalar_select %p518, %s25, 0
      %s520 = sadd.s32 %s519, %s517
      %s521 = sadd.s32 %s520, %s515
      %s522 = smul.addr %s521, 4
      %s523 = scalar_lea.vmem %s1, %s522
      %s524 = ssub.s32 0, %s26
      %s525 = ssub.s32 0, %s26
      %p526 = scmp.lt.s32.totalorder %s24, 1
      %s527 = scalar_select %p526, %s24, 1
      %p528 = scmp.lt.s32.totalorder %s525, 0
      %s529 = scalar_select %p528, %s525, 0
      %s530 = sadd.s32 %s529, %s527
      %s531 = smul.addr %s530, 4
      %s532 = scalar_lea.vmem %s2, %s531
      %s533 = ssub.s32 0, %s26
      %s534 = ssub.s32 0, %s26
      %p535 = scmp.lt.s32.totalorder %s24, 1
      %s536 = scalar_select %p535, %s24, 1
      %p537 = scmp.lt.s32.totalorder %s534, 0
      %s538 = scalar_select %p537, %s534, 0
      %s539 = sadd.s32 %s538, %s536
      %s540 = smul.addr %s539, 4
      %s541 = scalar_lea.vmem %s3, %s540
      %s542 = ssub.s32 0, %s26
      %s543 = ssub.s32 0, %s26
      %p544 = scmp.lt.s32.totalorder %s24, 1
      %s545 = scalar_select %p544, %s24, 1
      %p546 = scmp.lt.s32.totalorder %s543, 0
      %s547 = scalar_select %p546, %s543, 0
      %p548 = scmp.lt.s32.totalorder %s25, 0
      %s549 = scalar_select %p548, %s25, 0
      %s550 = sadd.s32 %s549, %s547
      %s551 = sadd.s32 %s550, %s545
      %s552 = smul.addr %s551, 4
      %s553 = scalar_lea.vmem %s4, %s552
      %s554 = ssub.s32 0, %s26
      %p555 = scmp.lt.s32.totalorder %s25, 0
      %s556 = scalar_select %p555, %s25, 0
      %s557 = smul.addr %s556, 8
      %s558 = scalar_lea.vmem %s5, %s557
      %p559 = scmp.lt.s32.totalorder %s25, 0
      %s560 = scalar_select %p559, %s25, 0
      %s561 = scalar_lea.vmem %s6, %s560
      %p562 = scmp.lt.s32.totalorder %s25, 0
      %s563 = scalar_select %p562, %s25, 0
      %s564 = scalar_lea.vmem %s7, %s563
      %s565 = ssub.s32 0, %s26
      %p566 = scmp.lt.s32.totalorder %s24, 1
      %s567 = scalar_select %p566, %s24, 1
      %p568 = scmp.lt.s32.totalorder %s565, 0
      %s569 = scalar_select %p568, %s565, 0
      %p570 = scmp.lt.s32.totalorder %s25, 0
      %s571 = scalar_select %p570, %s25, 0
      %s572 = sadd.s32 %s571, %s569
      %s573 = sadd.s32 %s572, %s567
      %s574 = smul.addr %s573, 4
      %s575 = scalar_lea.vmem %s8, %s574
      %s576 = ssub.s32 0, %s26
      %p577 = scmp.eq.s32.totalorder %s26, 0
      // Predicated region
      $region53: #{mixer_model_forward.25} parent=51 // pred_check
        %p578 = pneg %p577
      $region54: #{mixer_model_forward.25} parent=51 // pred_check_branch
        %580 = sbr.rel (%p578) target = $region56
      $region55: #{mixer_model_forward.25} parent=51 // pred_region
        %vm581 = vcmask 523264
        %582 = vst.msk [vmem:[#allocation2] sm:$0xff] %vm581, 0.0
        %583 = vst.msk [vmem:[#allocation2 + $0x8] sm:$0xff] %vm581, 0.0
      $region56: #{mixer_model_forward.25} parent=51 // pred_fallthru
        _
      %v584 = vld [vmem:[%s523] sm:$0xf]
      %v585 = vunpack.c.l.bf16 %v584
      %v586 = vld [vmem:[%s564] sm:$0x1]
      %v588 = vlaneseq
      %v589 = vshrl.u32 %v588, 7
      %v590 = vsub.s32 0, %v589
      %v591 = vrot.slane %v586, %v590
      %v593 = vadd.f32 %v585, %v591
      %v594 = vmax.f32 %v593, 0.0
      %v595 = vand.u32 2147483647, %v593
      %v596 = vsub.f32 0.0, %v595
      %v597 = vmul.f32 %v596, 1.442695
      %v598 = vpow.pop %v597
      %v599 = vadd.f32 %v598, 1.0
      %v600 = vlog2.pop %v599
      %v601 = vmul.f32 %v600, 0.6931472
      %v602 = vadd.f32 %v594, %v601
      %vm603 = vcmask 523264
      %604 = vst.msk [vmem:[#allocation3] sm:$0xff] %vm603, %v602
      %v605 = vld [vmem:[%s511] sm:$0xf]
      %v606 = vunpack.c.l.bf16 %v605
      %v607 = vmul.f32 %v602, %v606
      %v608 = vld [vmem:[%s532] sm:$0xf]
      %v609 = vunpack.c.l.bf16 %v608
      %v610 = vld [vmem:[%s541] sm:$0xf]
      %v611 = vunpack.c.l.bf16 %v610
      %v612 = vlaneseq
      %v613 = vshrl.u32 %v612, 7
      %v614 = vsub.s32 0, %v613
      %v615 = vrot.slane %v609, %v614
      %617 = vbcast.lane.b32.xlu0 %v615, 256
      %v618 = vpop.permute.xlu0 %617
      %s620 = sor.u32 256, 8
      %621 = vbcast.lane.b32.xlu0 %v615, %s620
      %v622 = vpop.permute.xlu0 %621
      %v623 = vlaneseq
      %v624 = vshrl.u32 %v623, 7
      %v625 = vsub.s32 1, %v624
      %v626 = vrot.slane %v609, %v625
      %628 = vbcast.lane.b32.xlu0 %v626, 256
      %v629 = vpop.permute.xlu0 %628
      %s631 = sor.u32 256, 8
      %632 = vbcast.lane.b32.xlu0 %v626, %s631
      %v633 = vpop.permute.xlu0 %632
      %v634 = vlaneseq
      %v635 = vshrl.u32 %v634, 7
      %v636 = vsub.s32 2, %v635
      %v637 = vrot.slane %v609, %v636
      %639 = vbcast.lane.b32.xlu0 %v637, 256
      %v640 = vpop.permute.xlu0 %639
      %s642 = sor.u32 256, 8
      %643 = vbcast.lane.b32.xlu0 %v637, %s642
      %v644 = vpop.permute.xlu0 %643
      %v645 = vlaneseq
      %v646 = vshrl.u32 %v645, 7
      %v647 = vsub.s32 3, %v646
      %v648 = vrot.slane %v609, %v647
      %650 = vbcast.lane.b32.xlu0 %v648, 256
      %v651 = vpop.permute.xlu0 %650
      %s653 = sor.u32 256, 8
      %654 = vbcast.lane.b32.xlu0 %v648, %s653
      %v655 = vpop.permute.xlu0 %654
      %v656 = vlaneseq
      %v657 = vshrl.u32 %v656, 7
      %v658 = vsub.s32 4, %v657
      %v659 = vrot.slane %v609, %v658
      %661 = vbcast.lane.b32.xlu0 %v659, 256
      %v662 = vpop.permute.xlu0 %661
      %s664 = sor.u32 256, 8
      %665 = vbcast.lane.b32.xlu0 %v659, %s664
      %v666 = vpop.permute.xlu0 %665
      %v667 = vlaneseq
      %v668 = vshrl.u32 %v667, 7
      %v669 = vsub.s32 5, %v668
      %v670 = vrot.slane %v609, %v669
      %672 = vbcast.lane.b32.xlu0 %v670, 256
      %v673 = vpop.permute.xlu0 %672
      %s675 = sor.u32 256, 8
      %676 = vbcast.lane.b32.xlu0 %v670, %s675
      %v677 = vpop.permute.xlu0 %676
      %v678 = vlaneseq
      %v679 = vshrl.u32 %v678, 7
      %v680 = vsub.s32 6, %v679
      %v681 = vrot.slane %v609, %v680
      %683 = vbcast.lane.b32.xlu0 %v681, 256
      %v684 = vpop.permute.xlu0 %683
      %s686 = sor.u32 256, 8
      %687 = vbcast.lane.b32.xlu0 %v681, %s686
      %v688 = vpop.permute.xlu0 %687
      %v689 = vlaneseq
      %v690 = vshrl.u32 %v689, 7
      %v691 = vsub.s32 7, %v690
      %v692 = vrot.slane %v609, %v691
      %694 = vbcast.lane.b32.xlu0 %v692, 256
      %v695 = vpop.permute.xlu0 %694
      %s697 = sor.u32 256, 8
      %698 = vbcast.lane.b32.xlu0 %v692, %s697
      %v699 = vpop.permute.xlu0 %698
      %v701 = vcombine.high %v607, %v607
      %v703 = vunpack.c.l.s4 1966171168
      %v704 = vunpack.c.0.s8 %v703
      %v705 = vlaneseq
      %v706 = vshrl.u32 %v705, 7
      %v707 = vsub.s32 %v704, %v706
      %v708 = vrot.slane %v607, %v707
      %v710 = vunpack.c.l.s4 1966171168
      %v711 = vunpack.c.0.s8 %v710
      %v712 = vlaneseq
      %v713 = vshrl.u32 %v712, 7
      %v714 = vsub.s32 %v711, %v713
      %v715 = vrot.slane %v701, %v714
      %v716 = vcombine.high %v708, %v708
      %v717 = vcombine.high %v715, %v715
      %v719 = vunpack.c.l.s4 1966171168
      %v720 = vunpack.c.0.s8 %v719
      %v721 = vlaneseq
      %v722 = vshrl.u32 %v721, 7
      %v723 = vsub.s32 %v720, %v722
      %v724 = vrot.slane %v708, %v723
      %v726 = vunpack.c.l.s4 1966171168
      %v727 = vunpack.c.0.s8 %v726
      %v728 = vlaneseq
      %v729 = vshrl.u32 %v728, 7
      %v730 = vsub.s32 %v727, %v729
      %v731 = vrot.slane %v715, %v730
      %v733 = vunpack.c.l.s4 1966171168
      %v734 = vunpack.c.0.s8 %v733
      %v735 = vlaneseq
      %v736 = vshrl.u32 %v735, 7
      %v737 = vsub.s32 %v734, %v736
      %v738 = vrot.slane %v716, %v737
      %v740 = vunpack.c.l.s4 1966171168
      %v741 = vunpack.c.0.s8 %v740
      %v742 = vlaneseq
      %v743 = vshrl.u32 %v742, 7
      %v744 = vsub.s32 %v741, %v743
      %v745 = vrot.slane %v717, %v744
      %v746 = vcombine.high %v724, %v724
      %v747 = vcombine.high %v731, %v731
      %v748 = vcombine.high %v738, %v738
      %v749 = vcombine.high %v745, %v745
      %v750 = vlaneseq
      %v751 = vshrl.u32 %v750, 7
      %v752 = vsub.s32 0, %v751
      %v753 = vrot.slane %v724, %v752
      %v754 = vlaneseq
      %v755 = vshrl.u32 %v754, 7
      %v756 = vsub.s32 0, %v755
      %v757 = vrot.slane %v738, %v756
      %v758 = vlaneseq
      %v759 = vshrl.u32 %v758, 7
      %v760 = vsub.s32 0, %v759
      %v761 = vrot.slane %v746, %v760
      %v762 = vlaneseq
      %v763 = vshrl.u32 %v762, 7
      %v764 = vsub.s32 0, %v763
      %v765 = vrot.slane %v748, %v764
      %v766 = vlaneseq
      %v767 = vshrl.u32 %v766, 7
      %v768 = vsub.s32 0, %v767
      %v769 = vrot.slane %v731, %v768
      %v770 = vlaneseq
      %v771 = vshrl.u32 %v770, 7
      %v772 = vsub.s32 0, %v771
      %v773 = vrot.slane %v745, %v772
      %v774 = vlaneseq
      %v775 = vshrl.u32 %v774, 7
      %v776 = vsub.s32 0, %v775
      %v777 = vrot.slane %v747, %v776
      %v778 = vlaneseq
      %v779 = vshrl.u32 %v778, 7
      %v780 = vsub.s32 0, %v779
      %v781 = vrot.slane %v749, %v780
      %v790 = vmul.f32 %v618, %v753
      %v791 = vmul.f32 %v622, %v753
      %v792 = vmul.f32 %v629, %v757
      %v793 = vmul.f32 %v633, %v757
      %v794 = vmul.f32 %v640, %v761
      %v795 = vmul.f32 %v644, %v761
      %v796 = vmul.f32 %v651, %v765
      %v797 = vmul.f32 %v655, %v765
      %v798 = vmul.f32 %v662, %v769
      %v799 = vmul.f32 %v666, %v769
      %v800 = vmul.f32 %v673, %v773
      %v801 = vmul.f32 %v677, %v773
      %v802 = vmul.f32 %v684, %v777
      %v803 = vmul.f32 %v688, %v777
      %v804 = vmul.f32 %v695, %v781
      %v805 = vmul.f32 %v699, %v781
      %806 = vst.msk [vmem:[#allocation4] sm:$0xff] %vm603, %v790
      %807 = vst.msk [vmem:[#allocation4 + $0x8] sm:$0xff] %vm603, %v791
      %808 = vst.msk [vmem:[#allocation4 + $0x10] sm:$0xff] %vm603, %v792
      %809 = vst.msk [vmem:[#allocation4 + $0x18] sm:$0xff] %vm603, %v793
      %810 = vst.msk [vmem:[#allocation4 + $0x20] sm:$0xff] %vm603, %v794
      %811 = vst.msk [vmem:[#allocation4 + $0x28] sm:$0xff] %vm603, %v795
      %812 = vst.msk [vmem:[#allocation4 + $0x30] sm:$0xff] %vm603, %v796
      %813 = vst.msk [vmem:[#allocation4 + $0x38] sm:$0xff] %vm603, %v797
      %814 = vst.msk [vmem:[#allocation4 + $0x40] sm:$0xff] %vm603, %v798
      %815 = vst.msk [vmem:[#allocation4 + $0x48] sm:$0xff] %vm603, %v799
      %816 = vst.msk [vmem:[#allocation4 + $0x50] sm:$0xff] %vm603, %v800
      %817 = vst.msk [vmem:[#allocation4 + $0x58] sm:$0xff] %vm603, %v801
      %818 = vst.msk [vmem:[#allocation4 + $0x60] sm:$0xff] %vm603, %v802
      %819 = vst.msk [vmem:[#allocation4 + $0x68] sm:$0xff] %vm603, %v803
      %820 = vst.msk [vmem:[#allocation4 + $0x70] sm:$0xff] %vm603, %v804
      %821 = vst.msk [vmem:[#allocation4 + $0x78] sm:$0xff] %vm603, %v805
      %v822 = vlaneseq
      %v823 = vshrl.u32 %v822, 7
      %v824 = vsub.s32 0, %v823
      %v825 = vrot.slane %v611, %v824
      %827 = vbcast.lane.b32.xlu0 %v825, 256
      %v828 = vpop.permute.xlu0 %827
      %s830 = sor.u32 256, 8
      %831 = vbcast.lane.b32.xlu0 %v825, %s830
      %v832 = vpop.permute.xlu0 %831
      %v833 = vlaneseq
      %v834 = vshrl.u32 %v833, 7
      %v835 = vsub.s32 1, %v834
      %v836 = vrot.slane %v611, %v835
      %838 = vbcast.lane.b32.xlu0 %v836, 256
      %v839 = vpop.permute.xlu0 %838
      %s841 = sor.u32 256, 8
      %842 = vbcast.lane.b32.xlu0 %v836, %s841
      %v843 = vpop.permute.xlu0 %842
      %v844 = vlaneseq
      %v845 = vshrl.u32 %v844, 7
      %v846 = vsub.s32 2, %v845
      %v847 = vrot.slane %v611, %v846
      %849 = vbcast.lane.b32.xlu0 %v847, 256
      %v850 = vpop.permute.xlu0 %849
      %s852 = sor.u32 256, 8
      %853 = vbcast.lane.b32.xlu0 %v847, %s852
      %v854 = vpop.permute.xlu0 %853
      %v855 = vlaneseq
      %v856 = vshrl.u32 %v855, 7
      %v857 = vsub.s32 3, %v856
      %v858 = vrot.slane %v611, %v857
      %860 = vbcast.lane.b32.xlu0 %v858, 256
      %v861 = vpop.permute.xlu0 %860
      %s863 = sor.u32 256, 8
      %864 = vbcast.lane.b32.xlu0 %v858, %s863
      %v865 = vpop.permute.xlu0 %864
      %v866 = vlaneseq
      %v867 = vshrl.u32 %v866, 7
      %v868 = vsub.s32 4, %v867
      %v869 = vrot.slane %v611, %v868
      %871 = vbcast.lane.b32.xlu0 %v869, 256
      %v872 = vpop.permute.xlu0 %871
      %s874 = sor.u32 256, 8
      %875 = vbcast.lane.b32.xlu0 %v869, %s874
      %v876 = vpop.permute.xlu0 %875
      %v877 = vlaneseq
      %v878 = vshrl.u32 %v877, 7
      %v879 = vsub.s32 5, %v878
      %v880 = vrot.slane %v611, %v879
      %882 = vbcast.lane.b32.xlu0 %v880, 256
      %v883 = vpop.permute.xlu0 %882
      %s885 = sor.u32 256, 8
      %886 = vbcast.lane.b32.xlu0 %v880, %s885
      %v887 = vpop.permute.xlu0 %886
      %v888 = vlaneseq
      %v889 = vshrl.u32 %v888, 7
      %v890 = vsub.s32 6, %v889
      %v891 = vrot.slane %v611, %v890
      %893 = vbcast.lane.b32.xlu0 %v891, 256
      %v894 = vpop.permute.xlu0 %893
      %s896 = sor.u32 256, 8
      %897 = vbcast.lane.b32.xlu0 %v891, %s896
      %v898 = vpop.permute.xlu0 %897
      %v899 = vlaneseq
      %v900 = vshrl.u32 %v899, 7
      %v901 = vsub.s32 7, %v900
      %v902 = vrot.slane %v611, %v901
      %904 = vbcast.lane.b32.xlu0 %v902, 256
      %v905 = vpop.permute.xlu0 %904
      %s907 = sor.u32 256, 8
      %908 = vbcast.lane.b32.xlu0 %v902, %s907
      %v909 = vpop.permute.xlu0 %908
      %910 = vst.msk [vmem:[#allocation5] sm:$0xff] %vm603, %v828
      %911 = vst.msk [vmem:[#allocation5 + $0x8] sm:$0xff] %vm603, %v832
      %912 = vst.msk [vmem:[#allocation5 + $0x10] sm:$0xff] %vm603, %v839
      %913 = vst.msk [vmem:[#allocation5 + $0x18] sm:$0xff] %vm603, %v843
      %914 = vst.msk [vmem:[#allocation5 + $0x20] sm:$0xff] %vm603, %v850
      %915 = vst.msk [vmem:[#allocation5 + $0x28] sm:$0xff] %vm603, %v854
      %916 = vst.msk [vmem:[#allocation5 + $0x30] sm:$0xff] %vm603, %v861
      %917 = vst.msk [vmem:[#allocation5 + $0x38] sm:$0xff] %vm603, %v865
      %918 = vst.msk [vmem:[#allocation5 + $0x40] sm:$0xff] %vm603, %v872
      %919 = vst.msk [vmem:[#allocation5 + $0x48] sm:$0xff] %vm603, %v876
      %920 = vst.msk [vmem:[#allocation5 + $0x50] sm:$0xff] %vm603, %v883
      %921 = vst.msk [vmem:[#allocation5 + $0x58] sm:$0xff] %vm603, %v887
      %922 = vst.msk [vmem:[#allocation5 + $0x60] sm:$0xff] %vm603, %v894
      %923 = vst.msk [vmem:[#allocation5 + $0x68] sm:$0xff] %vm603, %v898
      %924 = vst.msk [vmem:[#allocation5 + $0x70] sm:$0xff] %vm603, %v905
      %925 = vst.msk [vmem:[#allocation5 + $0x78] sm:$0xff] %vm603, %v909
      %v926 = vld [vmem:[%s558] sm:$0xff]
      %v927 = vld [vmem:[%s558 + $0x8] sm:$0xff]
      loop: start=0, step=1, limit=8
      $region57: #{mixer_model_forward.25} parent=51 // loop_pre_header
        _
      $region58: #{mixer_model_forward.25} parent=51 // loop_header
        %s929 = sphi 0, %s933
        %p930 = scmp.ge.s32.totalorder %s929, 8
      $region59: #{mixer_model_forward.25} parent=51 // loop_header_branch
        %932 = sbr.rel (%p930) target = $region63
      $region60: #{mixer_model_forward.25} parent=51 // loop_body
        %s934 = ssub.s32 7, %s929
        %s935 = scalar_lea.vmem [#allocation3], %s934
        %v936 = vld [vmem:[%s935] sm:$0x1]
        %v937 = vlaneseq
        %v938 = vshrl.u32 %v937, 7
        %v939 = vsub.s32 0, %v938
        %v940 = vrot.slane %v936, %v939
        %v941 = vmul.f32 %v940, %v926
        %v942 = vmul.f32 %v940, %v927
        %v943 = vmul.f32 %v941, 1.442695
        %v944 = vpow.pop %v943
        %v945 = vmul.f32 %v942, 1.442695
        %v946 = vpow.pop %v945
        %v947 = vld [vmem:[#allocation2] sm:$0xff]
        %v948 = vld [vmem:[#allocation2 + $0x8] sm:$0xff]
        %v949 = vmul.f32 %v944, %v947
        %v950 = vmul.f32 %v946, %v948
        %s951 = smul.u32 %s934, 16
        %s952 = scalar_lea.vmem [#allocation4], %s951
        %v953 = vld [vmem:[%s952] sm:$0xff]
        %v954 = vld [vmem:[%s952 + $0x8] sm:$0xff]
        %v955 = vadd.f32 %v949, %v953
        %v956 = vadd.f32 %v950, %v954
        %957 = vst.msk [vmem:[#allocation2] sm:$0xff] %vm603, %v955
        %958 = vst.msk [vmem:[#allocation2 + $0x8] sm:$0xff] %vm603, %v956
        %s959 = scalar_lea.vmem [#allocation5], %s951
        %v960 = vld [vmem:[%s959] sm:$0xff]
        %v961 = vld [vmem:[%s959 + $0x8] sm:$0xff]
        %v962 = vmul.f32 %v960, %v955
        %v963 = vmul.f32 %v961, %v956
        %v964 = vsel %vm603, %v962, 0.0
        %v965 = vsel %vm603, %v963, 0.0
        %v966 = vadd.f32 %v964, %v965
        %v967 = vrot.slane %v966, 4
        %v968 = vadd.f32 %v966, %v967
        %v969 = vrot.slane %v968, 2
        %v970 = vadd.f32 %v968, %v969
        %v971 = vrot.slane %v970, 1
        %v972 = vadd.f32 %v970, %v971
        %s973 = scalar_lea.vmem [#allocation6], %s934
        %vm974 = vcmask 516096
        %975 = vst.msk [vmem:[%s973] sm:$0x1] %vm974, %v972
      $region61: #{mixer_model_forward.25} parent=51 // loop_footer
        %s933 = sadd.s32 1, %s929
      $region62: #{mixer_model_forward.25} parent=51 // loop_footer_branch
        %928 = sbr.rel target = $region58
      $region63: #{mixer_model_forward.25} parent=51 // loop_exit
        _
      %v976 = vld [vmem:[%s553] sm:$0xf]
      %v977 = vunpack.c.l.bf16 %v976
      %v978 = vld [vmem:[#allocation6] sm:$0xff]
      %v979 = vld [vmem:[%s511] sm:$0xf]
      %v980 = vunpack.c.l.bf16 %v979
      %v981 = vld [vmem:[%s561] sm:$0x1]
      %v983 = vlaneseq
      %v984 = vshrl.u32 %v983, 7
      %v985 = vsub.s32 0, %v984
      %v986 = vrot.slane %v981, %v985
      %v988 = vmul.f32 %v980, %v986
      %v989 = vadd.f32 %v978, %v988
      %v990 = vsub.f32 0.0, %v977
      %v991 = vmul.f32 %v990, 1.442695
      %v992 = vpow.pop %v991
      %v993 = vadd.f32 %v992, 1.0
      %v994 = vrcp.pop %v993
      %v995 = vmul.f32 1.0, %v994
      %v996 = vmul.f32 %v977, %v995
      %v997 = vmul.f32 %v989, %v996
      %v998 = vpack.c.bf16 %v997, %v997
      %vm999 = vcmask 519168
      %1000 = vst.msk [vmem:[%s575] sm:$0xf] %vm999, %v998
      %s1001 = ssub.s32 0, %s26
      %p1002 = scmp.lt.s32.totalorder %s24, 1
      %s1003 = scalar_select %p1002, %s24, 1
      %p1004 = scmp.lt.s32.totalorder %s1001, 0
      %s1005 = scalar_select %p1004, %s1001, 0
      %p1006 = scmp.lt.s32.totalorder %s25, 0
      %s1007 = scalar_select %p1006, %s25, 0
      %s1008 = sadd.s32 %s1007, %s1005
      %s1009 = sadd.s32 %s1008, %s1003
      %s1010 = smul.addr %s1009, 4
      %s1011 = scalar_lea.vmem %s8, %s1010
      // Predicated region
      $region64: #{mixer_model_forward.25} parent=51 // pred_check
        %p1012 = pneg %p296
      $region65: #{mixer_model_forward.25} parent=51 // pred_check_branch
        %1014 = sbr.rel (%p1012) target = $region67
      $region66: #{mixer_model_forward.25} parent=51 // pred_region
        %s1015 = ssub.s32 0, %s26
      $region67: #{mixer_model_forward.25} parent=51 // pred_fallthru
        _
    $region52: #{mixer_model_forward.25} parent=5 // pred_fallthru
      _
    %p1016 = scmp.le.s32.totalorder 2, %s14
    // Predicated region
    $region68: #{mixer_model_forward.25} parent=5 // pred_check
      %p1017 = pneg %p1016
    $region69: #{mixer_model_forward.25} parent=5 // pred_check_branch
      %1019 = sbr.rel (%p1017) target = $region71
    $region70: #{mixer_model_forward.25} parent=5 // pred_region
      %s1020 = ssub.s32 %s14, 2
      // Predicated region
      $region72: #{mixer_model_forward.25} parent=70 // pred_check
        %p1021 = pneg %p302
      $region73: #{mixer_model_forward.25} parent=70 // pred_check_branch
        %1023 = sbr.rel (%p1021) target = $region75
      $region74: #{mixer_model_forward.25} parent=70 // pred_region
        %s1024 = ssub.s32 0, %s29
        %p1025 = scmp.lt.s32.totalorder %s27, 1
        %s1026 = scalar_select %p1025, %s27, 1
        %p1027 = scmp.lt.s32.totalorder %s1024, 0
        %s1028 = scalar_select %p1027, %s1024, 0
        %p1029 = scmp.lt.s32.totalorder %s28, 0
        %s1030 = scalar_select %p1029, %s28, 0
        %s1031 = sadd.s32 %s1030, %s1028
        %s1032 = sadd.s32 %s1031, %s1026
        %s1033 = smul.addr %s1032, 4
        %s1034 = scalar_lea.vmem %s8, %s1033
      $region75: #{mixer_model_forward.25} parent=70 // pred_fallthru
        _
    $region71: #{mixer_model_forward.25} parent=5 // pred_fallthru
      _
  $region6: #{mixer_model_forward.25} parent=0 // loop_footer
    %s18 = sadd.s32 1, %s14
  $region7: #{mixer_model_forward.25} parent=0 // loop_footer_branch
    %13 = sbr.rel target = $region3
  $region8: #{mixer_model_forward.25} parent=0 // loop_exit
    _

// kernel: mixer_model_forward.20
$region0: #{mixer_model_forward.20}
  #allocation0 [shape = 'u32[]', space=smem, size = 0x4, offset = 0x4, fixed_abs, tag = 'smem constant byte address 0x4 - core index']
  #allocation1 [shape = 'u32[144,128]{1,0:T(1,128)}', space=vmem, size = 0x12000, scoped, tag = 'internal scratch']
  #allocation2 [shape = 'f32[16,64]{1,0:T(8,128)}', space=vmem, size = 0x2000, scoped, tag = 'scratch operand']
  #allocation3 [shape = 'f32[8,64]{1,0:T(8,128)}', space=vmem, size = 0x1000, scoped, tag = 'scratch operand']
  #allocation4 [shape = 'f32[8,16,64]{2,1,0:T(8,128)}', space=vmem, size = 0x10000, scoped, tag = 'scratch operand']
  #allocation5 [shape = 'f32[8,16,64]{2,1,0:T(8,128)}', space=vmem, size = 0x10000, scoped, tag = 'scratch operand']
  #allocation6 [shape = 'f32[8,64]{1,0:T(8,128)}', space=vmem, size = 0x1000, scoped, tag = 'scratch operand']
  %s0 = inlined_call_operand.vmem [shape: bf16[2,8,64], index: 0, kind: input, shape index: {}]
  %s1 = inlined_call_operand.vmem [shape: bf16[2,8,64], index: 1, kind: input, shape index: {}]
  %s2 = inlined_call_operand.vmem [shape: bf16[2,8,16], index: 2, kind: input, shape index: {}]
  %s3 = inlined_call_operand.vmem [shape: bf16[2,8,16], index: 3, kind: input, shape index: {}]
  %s4 = inlined_call_operand.vmem [shape: bf16[2,8,64], index: 4, kind: input, shape index: {}]
  %s5 = inlined_call_operand.vmem [shape: f32[16,64], index: 5, kind: input, shape index: {}]
  %s6 = inlined_call_operand.vmem [shape: f32[1,64], index: 6, kind: input, shape index: {}]
  %s7 = inlined_call_operand.vmem [shape: f32[1,64], index: 7, kind: input, shape index: {}]
  %s8 = inlined_call_operand.vmem [shape: bf16[2,8,64], index: 8, kind: output, shape index: {}]
  %s9 = sld [smem:[#allocation0]]
  $region76: #{mixer_model_forward.20} parent=0
    _
  %s11 = ssub.s32 1, %s9
  %s12 = scalar_select 0, %s11, %s9
  loop: start=0, step=1, limit=4
  $region2: #{mixer_model_forward.20} parent=0 // loop_pre_header
    _
  $region3: #{mixer_model_forward.20} parent=0 // loop_header
    %s14 = sphi 0, %s18
    %p15 = scmp.ge.s32.totalorder %s14, 4
    %s21 = sphi 0, %s40
    %s22 = sphi 0, %s36
    %s23 = sphi 0, %s32
    %s24 = sphi 0, %s21
    %s25 = sphi 0, %s22
    %s26 = sphi 0, %s23
    %s27 = sphi 0, %s24
    %s28 = sphi 0, %s25
    %s29 = sphi 0, %s26
    %s47 = sphi 0, %s49
    %s50 = sphi 0, %s47
    %s51 = sphi 0, %s50
    %s67 = sphi 0, %s51
    %s77 = sphi 0, %s79
    %s80 = sphi 0, %s77
    %s81 = sphi 0, %s80
    %s97 = sphi 0, %s81
    %s105 = sphi 0, %s107
    %s108 = sphi 0, %s105
    %s109 = sphi 0, %s108
    %s125 = sphi 0, %s109
    %s133 = sphi 0, %s135
    %s136 = sphi 0, %s133
    %s137 = sphi 0, %s136
    %s153 = sphi 0, %s137
    %s163 = sphi 0, %s165
    %s166 = sphi 0, %s163
    %s167 = sphi 0, %s166
    %s183 = sphi 0, %s167
    %s189 = sphi 0, %s191
    %s192 = sphi 0, %s189
    %s193 = sphi 0, %s192
    %s209 = sphi 0, %s193
    %s215 = sphi 0, %s217
    %s218 = sphi 0, %s215
    %s219 = sphi 0, %s218
    %s235 = sphi 0, %s219
    %s241 = sphi 0, %s243
    %s244 = sphi 0, %s241
    %s245 = sphi 0, %s244
    %s261 = sphi 0, %s245
    %s271 = sphi 0, %s273
    %s274 = sphi 0, %s271
    %s275 = sphi 0, %s274
    %s291 = sphi 0, %s275
  $region4: #{mixer_model_forward.20} parent=0 // loop_header_branch
    %17 = sbr.rel (%p15) target = $region8
  $region5: #{mixer_model_forward.20} parent=0 // loop_body
    %s19 = ssub.s32 %s14, 1
    %s20 = ssub.s32 %s14, 2
    %s30 = sadd.s32 1, %s23
    %p31 = scmp.ge.s32.totalorder %s30, 1
    %s32 = scalar_select %p31, 0, %s30
    %s33 = sadd.s32 1, %s22
    %s34 = scalar_select %p31, %s33, %s22
    %p35 = scmp.ge.s32.totalorder %s34, 1
    %s36 = scalar_select %p35, 0, %s34
    %s37 = sadd.s32 1, %s21
    %s38 = scalar_select %p35, %s37, %s21
    %p39 = scmp.ge.s32.totalorder %s38, 2
    %s40 = scalar_select %p39, 0, %s38
    %s41 = ssub.s32 %s21, %s40
    %s42 = ssub.s32 %s23, %s32
    %s43 = sor.u32 %s41, %s42
    %s44 = ssub.s32 %s22, %s36
    %s45 = sor.u32 %s43, %s44
    %p46 = scmp.eq.s32.totalorder %s45, 0
    %s48 = sadd.s32 %s47, 1
    %s49 = scalar_select %p46, %s47, %s48
    %p52 = pneg %p46
    %p53 = scmp.eq.s32.totalorder %s14, 1
    %p54 = por %p52, %p53
    %p55 = scmp.ne.s32.totalorder %s47, %s50
    %p56 = scmp.eq.s32.totalorder %s14, 0
    %p57 = por %p55, %p56
    %p58 = scmp.ne.s32.totalorder %s47, %s50
    %p59 = scmp.eq.s32.totalorder %s19, 1
    %p60 = por %p58, %p59
    %p61 = scmp.ne.s32.totalorder %s50, %s51
    %p62 = scmp.eq.s32.totalorder %s19, 0
    %p63 = por %p61, %p62
    %p64 = scmp.ne.s32.totalorder %s50, %s51
    %p65 = scmp.eq.s32.totalorder %s20, 1
    %p66 = por %p64, %p65
    %p68 = scmp.ne.s32.totalorder %s51, %s67
    %p69 = scmp.eq.s32.totalorder %s20, 0
    %p70 = por %p68, %p69
    %s71 = ssub.s32 %s21, %s40
    %s72 = ssub.s32 %s23, %s32
    %s73 = sor.u32 %s71, %s72
    %s74 = ssub.s32 %s22, %s36
    %s75 = sor.u32 %s73, %s74
    %p76 = scmp.eq.s32.totalorder %s75, 0
    %s78 = sadd.s32 %s77, 1
    %s79 = scalar_select %p76, %s77, %s78
    %p82 = pneg %p76
    %p83 = scmp.eq.s32.totalorder %s14, 1
    %p84 = por %p82, %p83
    %p85 = scmp.ne.s32.totalorder %s77, %s80
    %p86 = scmp.eq.s32.totalorder %s14, 0
    %p87 = por %p85, %p86
    %p88 = scmp.ne.s32.totalorder %s77, %s80
    %p89 = scmp.eq.s32.totalorder %s19, 1
    %p90 = por %p88, %p89
    %p91 = scmp.ne.s32.totalorder %s80, %s81
    %p92 = scmp.eq.s32.totalorder %s19, 0
    %p93 = por %p91, %p92
    %p94 = scmp.ne.s32.totalorder %s80, %s81
    %p95 = scmp.eq.s32.totalorder %s20, 1
    %p96 = por %p94, %p95
    %p98 = scmp.ne.s32.totalorder %s81, %s97
    %p99 = scmp.eq.s32.totalorder %s20, 0
    %p100 = por %p98, %p99
    %s101 = ssub.s32 %s21, %s40
    %s102 = ssub.s32 %s23, %s32
    %s103 = sor.u32 %s101, %s102
    %p104 = scmp.eq.s32.totalorder %s103, 0
    %s106 = sadd.s32 %s105, 1
    %s107 = scalar_select %p104, %s105, %s106
    %p110 = pneg %p104
    %p111 = scmp.eq.s32.totalorder %s14, 1
    %p112 = por %p110, %p111
    %p113 = scmp.ne.s32.totalorder %s105, %s108
    %p114 = scmp.eq.s32.totalorder %s14, 0
    %p115 = por %p113, %p114
    %p116 = scmp.ne.s32.totalorder %s105, %s108
    %p117 = scmp.eq.s32.totalorder %s19, 1
    %p118 = por %p116, %p117
    %p119 = scmp.ne.s32.totalorder %s108, %s109
    %p120 = scmp.eq.s32.totalorder %s19, 0
    %p121 = por %p119, %p120
    %p122 = scmp.ne.s32.totalorder %s108, %s109
    %p123 = scmp.eq.s32.totalorder %s20, 1
    %p124 = por %p122, %p123
    %p126 = scmp.ne.s32.totalorder %s109, %s125
    %p127 = scmp.eq.s32.totalorder %s20, 0
    %p128 = por %p126, %p127
    %s129 = ssub.s32 %s21, %s40
    %s130 = ssub.s32 %s23, %s32
    %s131 = sor.u32 %s129, %s130
    %p132 = scmp.eq.s32.totalorder %s131, 0
    %s134 = sadd.s32 %s133, 1
    %s135 = scalar_select %p132, %s133, %s134
    %p138 = pneg %p132
    %p139 = scmp.eq.s32.totalorder %s14, 1
    %p140 = por %p138, %p139
    %p141 = scmp.ne.s32.totalorder %s133, %s136
    %p142 = scmp.eq.s32.totalorder %s14, 0
    %p143 = por %p141, %p142
    %p144 = scmp.ne.s32.totalorder %s133, %s136
    %p145 = scmp.eq.s32.totalorder %s19, 1
    %p146 = por %p144, %p145
    %p147 = scmp.ne.s32.totalorder %s136, %s137
    %p148 = scmp.eq.s32.totalorder %s19, 0
    %p149 = por %p147, %p148
    %p150 = scmp.ne.s32.totalorder %s136, %s137
    %p151 = scmp.eq.s32.totalorder %s20, 1
    %p152 = por %p150, %p151
    %p154 = scmp.ne.s32.totalorder %s137, %s153
    %p155 = scmp.eq.s32.totalorder %s20, 0
    %p156 = por %p154, %p155
    %s157 = ssub.s32 %s21, %s40
    %s158 = ssub.s32 %s23, %s32
    %s159 = sor.u32 %s157, %s158
    %s160 = ssub.s32 %s22, %s36
    %s161 = sor.u32 %s159, %s160
    %p162 = scmp.eq.s32.totalorder %s161, 0
    %s164 = sadd.s32 %s163, 1
    %s165 = scalar_select %p162, %s163, %s164
    %p168 = pneg %p162
    %p169 = scmp.eq.s32.totalorder %s14, 1
    %p170 = por %p168, %p169
    %p171 = scmp.ne.s32.totalorder %s163, %s166
    %p172 = scmp.eq.s32.totalorder %s14, 0
    %p173 = por %p171, %p172
    %p174 = scmp.ne.s32.totalorder %s163, %s166
    %p175 = scmp.eq.s32.totalorder %s19, 1
    %p176 = por %p174, %p175
    %p177 = scmp.ne.s32.totalorder %s166, %s167
    %p178 = scmp.eq.s32.totalorder %s19, 0
    %p179 = por %p177, %p178
    %p180 = scmp.ne.s32.totalorder %s166, %s167
    %p181 = scmp.eq.s32.totalorder %s20, 1
    %p182 = por %p180, %p181
    %p184 = scmp.ne.s32.totalorder %s167, %s183
    %p185 = scmp.eq.s32.totalorder %s20, 0
    %p186 = por %p184, %p185
    %s187 = ssub.s32 %s22, %s36
    %p188 = scmp.eq.s32.totalorder %s187, 0
    %s190 = sadd.s32 %s189, 1
    %s191 = scalar_select %p188, %s189, %s190
    %p194 = pneg %p188
    %p195 = scmp.eq.s32.totalorder %s14, 1
    %p196 = por %p194, %p195
    %p197 = scmp.ne.s32.totalorder %s189, %s192
    %p198 = scmp.eq.s32.totalorder %s14, 0
    %p199 = por %p197, %p198
    %p200 = scmp.ne.s32.totalorder %s189, %s192
    %p201 = scmp.eq.s32.totalorder %s19, 1
    %p202 = por %p200, %p201
    %p203 = scmp.ne.s32.totalorder %s192, %s193
    %p204 = scmp.eq.s32.totalorder %s19, 0
    %p205 = por %p203, %p204
    %p206 = scmp.ne.s32.totalorder %s192, %s193
    %p207 = scmp.eq.s32.totalorder %s20, 1
    %p208 = por %p206, %p207
    %p210 = scmp.ne.s32.totalorder %s193, %s209
    %p211 = scmp.eq.s32.totalorder %s20, 0
    %p212 = por %p210, %p211
    %s213 = ssub.s32 %s22, %s36
    %p214 = scmp.eq.s32.totalorder %s213, 0
    %s216 = sadd.s32 %s215, 1
    %s217 = scalar_select %p214, %s215, %s216
    %p220 = pneg %p214
    %p221 = scmp.eq.s32.totalorder %s14, 1
    %p222 = por %p220, %p221
    %p223 = scmp.ne.s32.totalorder %s215, %s218
    %p224 = scmp.eq.s32.totalorder %s14, 0
    %p225 = por %p223, %p224
    %p226 = scmp.ne.s32.totalorder %s215, %s218
    %p227 = scmp.eq.s32.totalorder %s19, 1
    %p228 = por %p226, %p227
    %p229 = scmp.ne.s32.totalorder %s218, %s219
    %p230 = scmp.eq.s32.totalorder %s19, 0
    %p231 = por %p229, %p230
    %p232 = scmp.ne.s32.totalorder %s218, %s219
    %p233 = scmp.eq.s32.totalorder %s20, 1
    %p234 = por %p232, %p233
    %p236 = scmp.ne.s32.totalorder %s219, %s235
    %p237 = scmp.eq.s32.totalorder %s20, 0
    %p238 = por %p236, %p237
    %s239 = ssub.s32 %s22, %s36
    %p240 = scmp.eq.s32.totalorder %s239, 0
    %s242 = sadd.s32 %s241, 1
    %s243 = scalar_select %p240, %s241, %s242
    %p246 = pneg %p240
    %p247 = scmp.eq.s32.totalorder %s14, 1
    %p248 = por %p246, %p247
    %p249 = scmp.ne.s32.totalorder %s241, %s244
    %p250 = scmp.eq.s32.totalorder %s14, 0
    %p251 = por %p249, %p250
    %p252 = scmp.ne.s32.totalorder %s241, %s244
    %p253 = scmp.eq.s32.totalorder %s19, 1
    %p254 = por %p252, %p253
    %p255 = scmp.ne.s32.totalorder %s244, %s245
    %p256 = scmp.eq.s32.totalorder %s19, 0
    %p257 = por %p255, %p256
    %p258 = scmp.ne.s32.totalorder %s244, %s245
    %p259 = scmp.eq.s32.totalorder %s20, 1
    %p260 = por %p258, %p259
    %p262 = scmp.ne.s32.totalorder %s245, %s261
    %p263 = scmp.eq.s32.totalorder %s20, 0
    %p264 = por %p262, %p263
    %s265 = ssub.s32 %s21, %s40
    %s266 = ssub.s32 %s23, %s32
    %s267 = sor.u32 %s265, %s266
    %s268 = ssub.s32 %s22, %s36
    %s269 = sor.u32 %s267, %s268
    %p270 = scmp.eq.s32.totalorder %s269, 0
    %s272 = sadd.s32 %s271, 1
    %s273 = scalar_select %p270, %s271, %s272
    %p276 = pneg %p270
    %p277 = scmp.eq.s32.totalorder %s14, 1
    %p278 = por %p276, %p277
    %p279 = scmp.ne.s32.totalorder %s271, %s274
    %p280 = scmp.eq.s32.totalorder %s14, 0
    %p281 = por %p279, %p280
    %p282 = scmp.ne.s32.totalorder %s271, %s274
    %p283 = scmp.eq.s32.totalorder %s19, 1
    %p284 = por %p282, %p283
    %p285 = scmp.ne.s32.totalorder %s274, %s275
    %p286 = scmp.eq.s32.totalorder %s19, 0
    %p287 = por %p285, %p286
    %p288 = scmp.ne.s32.totalorder %s274, %s275
    %p289 = scmp.eq.s32.totalorder %s20, 1
    %p290 = por %p288, %p289
    %p292 = scmp.ne.s32.totalorder %s275, %s291
    %p293 = scmp.eq.s32.totalorder %s20, 0
    %p294 = por %p292, %p293
    %p295 = scmp.le.s32.totalorder 1, %s14
    %p296 = scmp.lt.s32.totalorder %s14, 3
    %p297 = pnand %p295, %p296
    %p298 = pneg %p297
    // Predicated region
    $region9: #{mixer_model_forward.20} parent=5 // pred_check
      _
    $region10: #{mixer_model_forward.20} parent=5 // pred_check_branch
      %300 = sbr.rel (%p297) target = $region12
    $region11: #{mixer_model_forward.20} parent=5 // pred_region
      %s301 = ssub.s32 %s14, 1
      // Predicated region
      $region13: #{mixer_model_forward.20} parent=11 // pred_check
        %p302 = pneg %p205
      $region14: #{mixer_model_forward.20} parent=11 // pred_check_branch
        %304 = sbr.rel (%p302) target = $region16
      $region15: #{mixer_model_forward.20} parent=11 // pred_region
        %p305 = scmp.lt.s32.totalorder %s25, 0
        %s306 = scalar_select %p305, %s25, 0
        %s307 = smul.addr %s306, 8
        %s308 = scalar_lea.vmem %s5, %s307
      $region16: #{mixer_model_forward.20} parent=11 // pred_fallthru
        _
      // Predicated region
      $region17: #{mixer_model_forward.20} parent=11 // pred_check
        %p309 = pneg %p231
      $region18: #{mixer_model_forward.20} parent=11 // pred_check_branch
        %311 = sbr.rel (%p309) target = $region20
      $region19: #{mixer_model_forward.20} parent=11 // pred_region
        %p312 = scmp.lt.s32.totalorder %s25, 0
        %s313 = scalar_select %p312, %s25, 0
        %s314 = scalar_lea.vmem %s6, %s313
      $region20: #{mixer_model_forward.20} parent=11 // pred_fallthru
        _
      // Predicated region
      $region21: #{mixer_model_forward.20} parent=11 // pred_check
        %p315 = pneg %p257
      $region22: #{mixer_model_forward.20} parent=11 // pred_check_branch
        %317 = sbr.rel (%p315) target = $region24
      $region23: #{mixer_model_forward.20} parent=11 // pred_region
        %p318 = scmp.lt.s32.totalorder %s25, 0
        %s319 = scalar_select %p318, %s25, 0
        %s320 = scalar_lea.vmem %s7, %s319
      $region24: #{mixer_model_forward.20} parent=11 // pred_fallthru
        _
    $region12: #{mixer_model_forward.20} parent=5 // pred_fallthru
      _
    %p321 = scmp.lt.s32.totalorder %s14, 2
    // Predicated region
    $region25: #{mixer_model_forward.20} parent=5 // pred_check
      %p322 = pneg %p321
    $region26: #{mixer_model_forward.20} parent=5 // pred_check_branch
      %324 = sbr.rel (%p322) target = $region28
    $region27: #{mixer_model_forward.20} parent=5 // pred_region
      // Predicated region
      $region29: #{mixer_model_forward.20} parent=27 // pred_check
        %p325 = pneg %p57
      $region30: #{mixer_model_forward.20} parent=27 // pred_check_branch
        %327 = sbr.rel (%p325) target = $region32
      $region31: #{mixer_model_forward.20} parent=27 // pred_region
        %p328 = scmp.lt.s32.totalorder %s21, 1
        %s329 = scalar_select %p328, %s21, 1
        %p330 = scmp.lt.s32.totalorder %s23, 0
        %s331 = scalar_select %p330, %s23, 0
        %p332 = scmp.lt.s32.totalorder %s22, 0
        %s333 = scalar_select %p332, %s22, 0
        %s334 = sadd.s32 %s333, %s331
        %s335 = sadd.s32 %s334, %s329
        %s336 = smul.addr %s335, 4
        %s337 = scalar_lea.vmem %s0, %s336
      $region32: #{mixer_model_forward.20} parent=27 // pred_fallthru
        _
      // Predicated region
      $region33: #{mixer_model_forward.20} parent=27 // pred_check
        %p338 = pneg %p87
      $region34: #{mixer_model_forward.20} parent=27 // pred_check_branch
        %340 = sbr.rel (%p338) target = $region36
      $region35: #{mixer_model_forward.20} parent=27 // pred_region
        %p341 = scmp.lt.s32.totalorder %s21, 1
        %s342 = scalar_select %p341, %s21, 1
        %p343 = scmp.lt.s32.totalorder %s23, 0
        %s344 = scalar_select %p343, %s23, 0
        %p345 = scmp.lt.s32.totalorder %s22, 0
        %s346 = scalar_select %p345, %s22, 0
        %s347 = sadd.s32 %s346, %s344
        %s348 = sadd.s32 %s347, %s342
        %s349 = smul.addr %s348, 4
        %s350 = scalar_lea.vmem %s1, %s349
      $region36: #{mixer_model_forward.20} parent=27 // pred_fallthru
        _
      // Predicated region
      $region37: #{mixer_model_forward.20} parent=27 // pred_check
        %p351 = pneg %p115
      $region38: #{mixer_model_forward.20} parent=27 // pred_check_branch
        %353 = sbr.rel (%p351) target = $region40
      $region39: #{mixer_model_forward.20} parent=27 // pred_region
        %p354 = scmp.lt.s32.totalorder %s21, 1
        %s355 = scalar_select %p354, %s21, 1
        %p356 = scmp.lt.s32.totalorder %s23, 0
        %s357 = scalar_select %p356, %s23, 0
        %s358 = sadd.s32 %s357, %s355
        %s359 = smul.addr %s358, 4
        %s360 = scalar_lea.vmem %s2, %s359
      $region40: #{mixer_model_forward.20} parent=27 // pred_fallthru
        _
      // Predicated region
      $region41: #{mixer_model_forward.20} parent=27 // pred_check
        %p361 = pneg %p143
      $region42: #{mixer_model_forward.20} parent=27 // pred_check_branch
        %363 = sbr.rel (%p361) target = $region44
      $region43: #{mixer_model_forward.20} parent=27 // pred_region
        %p364 = scmp.lt.s32.totalorder %s21, 1
        %s365 = scalar_select %p364, %s21, 1
        %p366 = scmp.lt.s32.totalorder %s23, 0
        %s367 = scalar_select %p366, %s23, 0
        %s368 = sadd.s32 %s367, %s365
        %s369 = smul.addr %s368, 4
        %s370 = scalar_lea.vmem %s3, %s369
      $region44: #{mixer_model_forward.20} parent=27 // pred_fallthru
        _
      // Predicated region
      $region45: #{mixer_model_forward.20} parent=27 // pred_check
        %p371 = pneg %p173
      $region46: #{mixer_model_forward.20} parent=27 // pred_check_branch
        %373 = sbr.rel (%p371) target = $region48
      $region47: #{mixer_model_forward.20} parent=27 // pred_region
        %p374 = scmp.lt.s32.totalorder %s21, 1
        %s375 = scalar_select %p374, %s21, 1
        %p376 = scmp.lt.s32.totalorder %s23, 0
        %s377 = scalar_select %p376, %s23, 0
        %p378 = scmp.lt.s32.totalorder %s22, 0
        %s379 = scalar_select %p378, %s22, 0
        %s380 = sadd.s32 %s379, %s377
        %s381 = sadd.s32 %s380, %s375
        %s382 = smul.addr %s381, 4
        %s383 = scalar_lea.vmem %s4, %s382
      $region48: #{mixer_model_forward.20} parent=27 // pred_fallthru
        _
    $region28: #{mixer_model_forward.20} parent=5 // pred_fallthru
      _
    %p384 = scmp.le.s32.totalorder 1, %s14
    %p385 = scmp.lt.s32.totalorder %s14, 3
    %p386 = pnand %p384, %p385
    %p387 = pneg %p386
    // Predicated region
    $region49: #{mixer_model_forward.20} parent=5 // pred_check
      _
    $region50: #{mixer_model_forward.20} parent=5 // pred_check_branch
      %389 = sbr.rel (%p386) target = $region52
    $region51: #{mixer_model_forward.20} parent=5 // pred_region
      %s390 = ssub.s32 %s14, 1
      %p391 = scmp.lt.s32.totalorder %s24, 1
      %s392 = scalar_select %p391, %s24, 1
      %p393 = scmp.lt.s32.totalorder %s26, 0
      %s394 = scalar_select %p393, %s26, 0
      %p395 = scmp.lt.s32.totalorder %s25, 0
      %s396 = scalar_select %p395, %s25, 0
      %s397 = sadd.s32 %s396, %s394
      %s398 = sadd.s32 %s397, %s392
      %s399 = smul.addr %s398, 4
      %s400 = scalar_lea.vmem %s0, %s399
      %p401 = pneg %p63
      %p402 = pneg %p60
      %p403 = scmp.lt.s32.totalorder %s24, 1
      %s404 = scalar_select %p403, %s24, 1
      %p405 = scmp.lt.s32.totalorder %s26, 0
      %s406 = scalar_select %p405, %s26, 0
      %p407 = scmp.lt.s32.totalorder %s25, 0
      %s408 = scalar_select %p407, %s25, 0
      %s409 = sadd.s32 %s408, %s406
      %s410 = sadd.s32 %s409, %s404
      %s411 = smul.addr %s410, 4
      %s412 = scalar_lea.vmem %s1, %s411
      %p413 = pneg %p93
      %p414 = pneg %p90
      %p415 = scmp.lt.s32.totalorder %s24, 1
      %s416 = scalar_select %p415, %s24, 1
      %p417 = scmp.lt.s32.totalorder %s26, 0
      %s418 = scalar_select %p417, %s26, 0
      %s419 = sadd.s32 %s418, %s416
      %s420 = smul.addr %s419, 4
      %s421 = scalar_lea.vmem %s2, %s420
      %p422 = pneg %p121
      %p423 = pneg %p118
      %p424 = scmp.lt.s32.totalorder %s24, 1
      %s425 = scalar_select %p424, %s24, 1
      %p426 = scmp.lt.s32.totalorder %s26, 0
      %s427 = scalar_select %p426, %s26, 0
      %s428 = sadd.s32 %s427, %s425
      %s429 = smul.addr %s428, 4
      %s430 = scalar_lea.vmem %s3, %s429
      %p431 = pneg %p149
      %p432 = pneg %p146
      %p433 = scmp.lt.s32.totalorder %s24, 1
      %s434 = scalar_select %p433, %s24, 1
      %p435 = scmp.lt.s32.totalorder %s26, 0
      %s436 = scalar_select %p435, %s26, 0
      %p437 = scmp.lt.s32.totalorder %s25, 0
      %s438 = scalar_select %p437, %s25, 0
      %s439 = sadd.s32 %s438, %s436
      %s440 = sadd.s32 %s439, %s434
      %s441 = smul.addr %s440, 4
      %s442 = scalar_lea.vmem %s4, %s441
      %p443 = pneg %p179
      %p444 = pneg %p176
      %p445 = scmp.lt.s32.totalorder %s25, 0
      %s446 = scalar_select %p445, %s25, 0
      %s447 = smul.addr %s446, 8
      %s448 = scalar_lea.vmem %s5, %s447
      %p449 = pneg %p205
      %p450 = pneg %p202
      %p451 = scmp.lt.s32.totalorder %s25, 0
      %s452 = scalar_select %p451, %s25, 0
      %s453 = scalar_lea.vmem %s6, %s452
      %p454 = pneg %p231
      %p455 = pneg %p228
      %p456 = scmp.lt.s32.totalorder %s25, 0
      %s457 = scalar_select %p456, %s25, 0
      %s458 = scalar_lea.vmem %s7, %s457
      %p459 = pneg %p257
      %p460 = pneg %p254
      %p461 = pneg %p287
      %p462 = pneg %p284
      %p463 = scmp.lt.s32.totalorder %s24, 1
      %s464 = scalar_select %p463, %s24, 1
      %p465 = scmp.lt.s32.totalorder %s26, 0
      %s466 = scalar_select %p465, %s26, 0
      %p467 = scmp.lt.s32.totalorder %s25, 0
      %s468 = scalar_select %p467, %s25, 0
      %s469 = sadd.s32 %s468, %s466
      %s470 = sadd.s32 %s469, %s464
      %s471 = smul.addr %s470, 4
      %s472 = scalar_lea.vmem %s8, %s471
      %p473 = scmp.lt.s32.totalorder %s24, 1
      %s474 = scalar_select %p473, %s24, 1
      %p475 = scmp.lt.s32.totalorder %s26, 0
      %s476 = scalar_select %p475, %s26, 0
      %p477 = scmp.lt.s32.totalorder %s25, 0
      %s478 = scalar_select %p477, %s25, 0
      %s479 = sadd.s32 %s478, %s476
      %s480 = sadd.s32 %s479, %s474
      %s481 = smul.addr %s480, 4
      %s482 = scalar_lea.vmem %s0, %s481
      %p483 = scmp.lt.s32.totalorder %s24, 1
      %s484 = scalar_select %p483, %s24, 1
      %p485 = scmp.lt.s32.totalorder %s26, 0
      %s486 = scalar_select %p485, %s26, 0
      %p487 = scmp.lt.s32.totalorder %s25, 0
      %s488 = scalar_select %p487, %s25, 0
      %s489 = sadd.s32 %s488, %s486
      %s490 = sadd.s32 %s489, %s484
      %s491 = smul.addr %s490, 4
      %s492 = scalar_lea.vmem %s1, %s491
      %p493 = scmp.lt.s32.totalorder %s24, 1
      %s494 = scalar_select %p493, %s24, 1
      %p495 = scmp.lt.s32.totalorder %s26, 0
      %s496 = scalar_select %p495, %s26, 0
      %s497 = sadd.s32 %s496, %s494
      %s498 = smul.addr %s497, 4
      %s499 = scalar_lea.vmem %s2, %s498
      %p500 = scmp.lt.s32.totalorder %s24, 1
      %s501 = scalar_select %p500, %s24, 1
      %p502 = scmp.lt.s32.totalorder %s26, 0
      %s503 = scalar_select %p502, %s26, 0
      %s504 = sadd.s32 %s503, %s501
      %s505 = smul.addr %s504, 4
      %s506 = scalar_lea.vmem %s3, %s505
      %p507 = scmp.lt.s32.totalorder %s24, 1
      %s508 = scalar_select %p507, %s24, 1
      %p509 = scmp.lt.s32.totalorder %s26, 0
      %s510 = scalar_select %p509, %s26, 0
      %p511 = scmp.lt.s32.totalorder %s25, 0
      %s512 = scalar_select %p511, %s25, 0
      %s513 = sadd.s32 %s512, %s510
      %s514 = sadd.s32 %s513, %s508
      %s515 = smul.addr %s514, 4
      %s516 = scalar_lea.vmem %s4, %s515
      %p517 = scmp.lt.s32.totalorder %s25, 0
      %s518 = scalar_select %p517, %s25, 0
      %s519 = smul.addr %s518, 8
      %s520 = scalar_lea.vmem %s5, %s519
      %p521 = scmp.lt.s32.totalorder %s25, 0
      %s522 = scalar_select %p521, %s25, 0
      %s523 = scalar_lea.vmem %s6, %s522
      %p524 = scmp.lt.s32.totalorder %s25, 0
      %s525 = scalar_select %p524, %s25, 0
      %s526 = scalar_lea.vmem %s7, %s525
      %p527 = scmp.lt.s32.totalorder %s24, 1
      %s528 = scalar_select %p527, %s24, 1
      %p529 = scmp.lt.s32.totalorder %s26, 0
      %s530 = scalar_select %p529, %s26, 0
      %p531 = scmp.lt.s32.totalorder %s25, 0
      %s532 = scalar_select %p531, %s25, 0
      %s533 = sadd.s32 %s532, %s530
      %s534 = sadd.s32 %s533, %s528
      %s535 = smul.addr %s534, 4
      %s536 = scalar_lea.vmem %s8, %s535
      %p537 = scmp.eq.s32.totalorder %s26, 0
      // Predicated region
      $region53: #{mixer_model_forward.20} parent=51 // pred_check
        %p538 = pneg %p537
      $region54: #{mixer_model_forward.20} parent=51 // pred_check_branch
        %540 = sbr.rel (%p538) target = $region56
      $region55: #{mixer_model_forward.20} parent=51 // pred_region
        %vm541 = vcmask 523264
        %542 = vst.msk [vmem:[#allocation2] sm:$0xff] %vm541, 0.0
        %543 = vst.msk [vmem:[#allocation2 + $0x8] sm:$0xff] %vm541, 0.0
      $region56: #{mixer_model_forward.20} parent=51 // pred_fallthru
        _
      %v544 = vld [vmem:[%s492] sm:$0xf]
      %v545 = vunpack.c.l.bf16 %v544
      %v546 = vld [vmem:[%s526] sm:$0x1]
      %v548 = vlaneseq
      %v549 = vshrl.u32 %v548, 7
      %v550 = vsub.s32 0, %v549
      %v551 = vrot.slane %v546, %v550
      %v553 = vadd.f32 %v545, %v551
      %v554 = vmax.f32 %v553, 0.0
      %v555 = vand.u32 2147483647, %v553
      %v556 = vsub.f32 0.0, %v555
      %v557 = vmul.f32 %v556, 1.442695
      %v558 = vpow.pop %v557
      %v559 = vadd.f32 %v558, 1.0
      %v560 = vlog2.pop %v559
      %v561 = vmul.f32 %v560, 0.6931472
      %v562 = vadd.f32 %v554, %v561
      %vm563 = vcmask 523264
      %564 = vst.msk [vmem:[#allocation3] sm:$0xff] %vm563, %v562
      %v565 = vld [vmem:[%s482] sm:$0xf]
      %v566 = vunpack.c.l.bf16 %v565
      %v567 = vmul.f32 %v562, %v566
      %v568 = vld [vmem:[%s499] sm:$0xf]
      %v569 = vunpack.c.l.bf16 %v568
      %v570 = vld [vmem:[%s506] sm:$0xf]
      %v571 = vunpack.c.l.bf16 %v570
      %v572 = vlaneseq
      %v573 = vshrl.u32 %v572, 7
      %v574 = vsub.s32 0, %v573
      %v575 = vrot.slane %v569, %v574
      %577 = vbcast.lane.b32.xlu0 %v575, 256
      %v578 = vpop.permute.xlu0 %577
      %s580 = sor.u32 256, 8
      %581 = vbcast.lane.b32.xlu0 %v575, %s580
      %v582 = vpop.permute.xlu0 %581
      %v583 = vlaneseq
      %v584 = vshrl.u32 %v583, 7
      %v585 = vsub.s32 1, %v584
      %v586 = vrot.slane %v569, %v585
      %588 = vbcast.lane.b32.xlu0 %v586, 256
      %v589 = vpop.permute.xlu0 %588
      %s591 = sor.u32 256, 8
      %592 = vbcast.lane.b32.xlu0 %v586, %s591
      %v593 = vpop.permute.xlu0 %592
      %v594 = vlaneseq
      %v595 = vshrl.u32 %v594, 7
      %v596 = vsub.s32 2, %v595
      %v597 = vrot.slane %v569, %v596
      %599 = vbcast.lane.b32.xlu0 %v597, 256
      %v600 = vpop.permute.xlu0 %599
      %s602 = sor.u32 256, 8
      %603 = vbcast.lane.b32.xlu0 %v597, %s602
      %v604 = vpop.permute.xlu0 %603
      %v605 = vlaneseq
      %v606 = vshrl.u32 %v605, 7
      %v607 = vsub.s32 3, %v606
      %v608 = vrot.slane %v569, %v607
      %610 = vbcast.lane.b32.xlu0 %v608, 256
      %v611 = vpop.permute.xlu0 %610
      %s613 = sor.u32 256, 8
      %614 = vbcast.lane.b32.xlu0 %v608, %s613
      %v615 = vpop.permute.xlu0 %614
      %v616 = vlaneseq
      %v617 = vshrl.u32 %v616, 7
      %v618 = vsub.s32 4, %v617
      %v619 = vrot.slane %v569, %v618
      %621 = vbcast.lane.b32.xlu0 %v619, 256
      %v622 = vpop.permute.xlu0 %621
      %s624 = sor.u32 256, 8
      %625 = vbcast.lane.b32.xlu0 %v619, %s624
      %v626 = vpop.permute.xlu0 %625
      %v627 = vlaneseq
      %v628 = vshrl.u32 %v627, 7
      %v629 = vsub.s32 5, %v628
      %v630 = vrot.slane %v569, %v629
      %632 = vbcast.lane.b32.xlu0 %v630, 256
      %v633 = vpop.permute.xlu0 %632
      %s635 = sor.u32 256, 8
      %636 = vbcast.lane.b32.xlu0 %v630, %s635
      %v637 = vpop.permute.xlu0 %636
      %v638 = vlaneseq
      %v639 = vshrl.u32 %v638, 7
      %v640 = vsub.s32 6, %v639
      %v641 = vrot.slane %v569, %v640
      %643 = vbcast.lane.b32.xlu0 %v641, 256
      %v644 = vpop.permute.xlu0 %643
      %s646 = sor.u32 256, 8
      %647 = vbcast.lane.b32.xlu0 %v641, %s646
      %v648 = vpop.permute.xlu0 %647
      %v649 = vlaneseq
      %v650 = vshrl.u32 %v649, 7
      %v651 = vsub.s32 7, %v650
      %v652 = vrot.slane %v569, %v651
      %654 = vbcast.lane.b32.xlu0 %v652, 256
      %v655 = vpop.permute.xlu0 %654
      %s657 = sor.u32 256, 8
      %658 = vbcast.lane.b32.xlu0 %v652, %s657
      %v659 = vpop.permute.xlu0 %658
      %v661 = vcombine.high %v567, %v567
      %v663 = vunpack.c.l.s4 1966171168
      %v664 = vunpack.c.0.s8 %v663
      %v665 = vlaneseq
      %v666 = vshrl.u32 %v665, 7
      %v667 = vsub.s32 %v664, %v666
      %v668 = vrot.slane %v567, %v667
      %v670 = vunpack.c.l.s4 1966171168
      %v671 = vunpack.c.0.s8 %v670
      %v672 = vlaneseq
      %v673 = vshrl.u32 %v672, 7
      %v674 = vsub.s32 %v671, %v673
      %v675 = vrot.slane %v661, %v674
      %v676 = vcombine.high %v668, %v668
      %v677 = vcombine.high %v675, %v675
      %v679 = vunpack.c.l.s4 1966171168
      %v680 = vunpack.c.0.s8 %v679
      %v681 = vlaneseq
      %v682 = vshrl.u32 %v681, 7
      %v683 = vsub.s32 %v680, %v682
      %v684 = vrot.slane %v668, %v683
      %v686 = vunpack.c.l.s4 1966171168
      %v687 = vunpack.c.0.s8 %v686
      %v688 = vlaneseq
      %v689 = vshrl.u32 %v688, 7
      %v690 = vsub.s32 %v687, %v689
      %v691 = vrot.slane %v675, %v690
      %v693 = vunpack.c.l.s4 1966171168
      %v694 = vunpack.c.0.s8 %v693
      %v695 = vlaneseq
      %v696 = vshrl.u32 %v695, 7
      %v697 = vsub.s32 %v694, %v696
      %v698 = vrot.slane %v676, %v697
      %v700 = vunpack.c.l.s4 1966171168
      %v701 = vunpack.c.0.s8 %v700
      %v702 = vlaneseq
      %v703 = vshrl.u32 %v702, 7
      %v704 = vsub.s32 %v701, %v703
      %v705 = vrot.slane %v677, %v704
      %v706 = vcombine.high %v684, %v684
      %v707 = vcombine.high %v691, %v691
      %v708 = vcombine.high %v698, %v698
      %v709 = vcombine.high %v705, %v705
      %v710 = vlaneseq
      %v711 = vshrl.u32 %v710, 7
      %v712 = vsub.s32 0, %v711
      %v713 = vrot.slane %v684, %v712
      %v714 = vlaneseq
      %v715 = vshrl.u32 %v714, 7
      %v716 = vsub.s32 0, %v715
      %v717 = vrot.slane %v698, %v716
      %v718 = vlaneseq
      %v719 = vshrl.u32 %v718, 7
      %v720 = vsub.s32 0, %v719
      %v721 = vrot.slane %v706, %v720
      %v722 = vlaneseq
      %v723 = vshrl.u32 %v722, 7
      %v724 = vsub.s32 0, %v723
      %v725 = vrot.slane %v708, %v724
      %v726 = vlaneseq
      %v727 = vshrl.u32 %v726, 7
      %v728 = vsub.s32 0, %v727
      %v729 = vrot.slane %v691, %v728
      %v730 = vlaneseq
      %v731 = vshrl.u32 %v730, 7
      %v732 = vsub.s32 0, %v731
      %v733 = vrot.slane %v705, %v732
      %v734 = vlaneseq
      %v735 = vshrl.u32 %v734, 7
      %v736 = vsub.s32 0, %v735
      %v737 = vrot.slane %v707, %v736
      %v738 = vlaneseq
      %v739 = vshrl.u32 %v738, 7
      %v740 = vsub.s32 0, %v739
      %v741 = vrot.slane %v709, %v740
      %v750 = vmul.f32 %v578, %v713
      %v751 = vmul.f32 %v582, %v713
      %v752 = vmul.f32 %v589, %v717
      %v753 = vmul.f32 %v593, %v717
      %v754 = vmul.f32 %v600, %v721
      %v755 = vmul.f32 %v604, %v721
      %v756 = vmul.f32 %v611, %v725
      %v757 = vmul.f32 %v615, %v725
      %v758 = vmul.f32 %v622, %v729
      %v759 = vmul.f32 %v626, %v729
      %v760 = vmul.f32 %v633, %v733
      %v761 = vmul.f32 %v637, %v733
      %v762 = vmul.f32 %v644, %v737
      %v763 = vmul.f32 %v648, %v737
      %v764 = vmul.f32 %v655, %v741
      %v765 = vmul.f32 %v659, %v741
      %766 = vst.msk [vmem:[#allocation4] sm:$0xff] %vm563, %v750
      %767 = vst.msk [vmem:[#allocation4 + $0x8] sm:$0xff] %vm563, %v751
      %768 = vst.msk [vmem:[#allocation4 + $0x10] sm:$0xff] %vm563, %v752
      %769 = vst.msk [vmem:[#allocation4 + $0x18] sm:$0xff] %vm563, %v753
      %770 = vst.msk [vmem:[#allocation4 + $0x20] sm:$0xff] %vm563, %v754
      %771 = vst.msk [vmem:[#allocation4 + $0x28] sm:$0xff] %vm563, %v755
      %772 = vst.msk [vmem:[#allocation4 + $0x30] sm:$0xff] %vm563, %v756
      %773 = vst.msk [vmem:[#allocation4 + $0x38] sm:$0xff] %vm563, %v757
      %774 = vst.msk [vmem:[#allocation4 + $0x40] sm:$0xff] %vm563, %v758
      %775 = vst.msk [vmem:[#allocation4 + $0x48] sm:$0xff] %vm563, %v759
      %776 = vst.msk [vmem:[#allocation4 + $0x50] sm:$0xff] %vm563, %v760
      %777 = vst.msk [vmem:[#allocation4 + $0x58] sm:$0xff] %vm563, %v761
      %778 = vst.msk [vmem:[#allocation4 + $0x60] sm:$0xff] %vm563, %v762
      %779 = vst.msk [vmem:[#allocation4 + $0x68] sm:$0xff] %vm563, %v763
      %780 = vst.msk [vmem:[#allocation4 + $0x70] sm:$0xff] %vm563, %v764
      %781 = vst.msk [vmem:[#allocation4 + $0x78] sm:$0xff] %vm563, %v765
      %v782 = vlaneseq
      %v783 = vshrl.u32 %v782, 7
      %v784 = vsub.s32 0, %v783
      %v785 = vrot.slane %v571, %v784
      %787 = vbcast.lane.b32.xlu0 %v785, 256
      %v788 = vpop.permute.xlu0 %787
      %s790 = sor.u32 256, 8
      %791 = vbcast.lane.b32.xlu0 %v785, %s790
      %v792 = vpop.permute.xlu0 %791
      %v793 = vlaneseq
      %v794 = vshrl.u32 %v793, 7
      %v795 = vsub.s32 1, %v794
      %v796 = vrot.slane %v571, %v795
      %798 = vbcast.lane.b32.xlu0 %v796, 256
      %v799 = vpop.permute.xlu0 %798
      %s801 = sor.u32 256, 8
      %802 = vbcast.lane.b32.xlu0 %v796, %s801
      %v803 = vpop.permute.xlu0 %802
      %v804 = vlaneseq
      %v805 = vshrl.u32 %v804, 7
      %v806 = vsub.s32 2, %v805
      %v807 = vrot.slane %v571, %v806
      %809 = vbcast.lane.b32.xlu0 %v807, 256
      %v810 = vpop.permute.xlu0 %809
      %s812 = sor.u32 256, 8
      %813 = vbcast.lane.b32.xlu0 %v807, %s812
      %v814 = vpop.permute.xlu0 %813
      %v815 = vlaneseq
      %v816 = vshrl.u32 %v815, 7
      %v817 = vsub.s32 3, %v816
      %v818 = vrot.slane %v571, %v817
      %820 = vbcast.lane.b32.xlu0 %v818, 256
      %v821 = vpop.permute.xlu0 %820
      %s823 = sor.u32 256, 8
      %824 = vbcast.lane.b32.xlu0 %v818, %s823
      %v825 = vpop.permute.xlu0 %824
      %v826 = vlaneseq
      %v827 = vshrl.u32 %v826, 7
      %v828 = vsub.s32 4, %v827
      %v829 = vrot.slane %v571, %v828
      %831 = vbcast.lane.b32.xlu0 %v829, 256
      %v832 = vpop.permute.xlu0 %831
      %s834 = sor.u32 256, 8
      %835 = vbcast.lane.b32.xlu0 %v829, %s834
      %v836 = vpop.permute.xlu0 %835
      %v837 = vlaneseq
      %v838 = vshrl.u32 %v837, 7
      %v839 = vsub.s32 5, %v838
      %v840 = vrot.slane %v571, %v839
      %842 = vbcast.lane.b32.xlu0 %v840, 256
      %v843 = vpop.permute.xlu0 %842
      %s845 = sor.u32 256, 8
      %846 = vbcast.lane.b32.xlu0 %v840, %s845
      %v847 = vpop.permute.xlu0 %846
      %v848 = vlaneseq
      %v849 = vshrl.u32 %v848, 7
      %v850 = vsub.s32 6, %v849
      %v851 = vrot.slane %v571, %v850
      %853 = vbcast.lane.b32.xlu0 %v851, 256
      %v854 = vpop.permute.xlu0 %853
      %s856 = sor.u32 256, 8
      %857 = vbcast.lane.b32.xlu0 %v851, %s856
      %v858 = vpop.permute.xlu0 %857
      %v859 = vlaneseq
      %v860 = vshrl.u32 %v859, 7
      %v861 = vsub.s32 7, %v860
      %v862 = vrot.slane %v571, %v861
      %864 = vbcast.lane.b32.xlu0 %v862, 256
      %v865 = vpop.permute.xlu0 %864
      %s867 = sor.u32 256, 8
      %868 = vbcast.lane.b32.xlu0 %v862, %s867
      %v869 = vpop.permute.xlu0 %868
      %870 = vst.msk [vmem:[#allocation5] sm:$0xff] %vm563, %v788
      %871 = vst.msk [vmem:[#allocation5 + $0x8] sm:$0xff] %vm563, %v792
      %872 = vst.msk [vmem:[#allocation5 + $0x10] sm:$0xff] %vm563, %v799
      %873 = vst.msk [vmem:[#allocation5 + $0x18] sm:$0xff] %vm563, %v803
      %874 = vst.msk [vmem:[#allocation5 + $0x20] sm:$0xff] %vm563, %v810
      %875 = vst.msk [vmem:[#allocation5 + $0x28] sm:$0xff] %vm563, %v814
      %876 = vst.msk [vmem:[#allocation5 + $0x30] sm:$0xff] %vm563, %v821
      %877 = vst.msk [vmem:[#allocation5 + $0x38] sm:$0xff] %vm563, %v825
      %878 = vst.msk [vmem:[#allocation5 + $0x40] sm:$0xff] %vm563, %v832
      %879 = vst.msk [vmem:[#allocation5 + $0x48] sm:$0xff] %vm563, %v836
      %880 = vst.msk [vmem:[#allocation5 + $0x50] sm:$0xff] %vm563, %v843
      %881 = vst.msk [vmem:[#allocation5 + $0x58] sm:$0xff] %vm563, %v847
      %882 = vst.msk [vmem:[#allocation5 + $0x60] sm:$0xff] %vm563, %v854
      %883 = vst.msk [vmem:[#allocation5 + $0x68] sm:$0xff] %vm563, %v858
      %884 = vst.msk [vmem:[#allocation5 + $0x70] sm:$0xff] %vm563, %v865
      %885 = vst.msk [vmem:[#allocation5 + $0x78] sm:$0xff] %vm563, %v869
      %v886 = vld [vmem:[%s520] sm:$0xff]
      %v887 = vld [vmem:[%s520 + $0x8] sm:$0xff]
      loop: start=0, step=1, limit=8
      $region57: #{mixer_model_forward.20} parent=51 // loop_pre_header
        _
      $region58: #{mixer_model_forward.20} parent=51 // loop_header
        %s889 = sphi 0, %s893
        %p890 = scmp.ge.s32.totalorder %s889, 8
      $region59: #{mixer_model_forward.20} parent=51 // loop_header_branch
        %892 = sbr.rel (%p890) target = $region63
      $region60: #{mixer_model_forward.20} parent=51 // loop_body
        %s894 = scalar_lea.vmem [#allocation3], %s889
        %v895 = vld [vmem:[%s894] sm:$0x1]
        %v896 = vlaneseq
        %v897 = vshrl.u32 %v896, 7
        %v898 = vsub.s32 0, %v897
        %v899 = vrot.slane %v895, %v898
        %v900 = vmul.f32 %v899, %v886
        %v901 = vmul.f32 %v899, %v887
        %v902 = vmul.f32 %v900, 1.442695
        %v903 = vpow.pop %v902
        %v904 = vmul.f32 %v901, 1.442695
        %v905 = vpow.pop %v904
        %v906 = vld [vmem:[#allocation2] sm:$0xff]
        %v907 = vld [vmem:[#allocation2 + $0x8] sm:$0xff]
        %v908 = vmul.f32 %v903, %v906
        %v909 = vmul.f32 %v905, %v907
        %s910 = smul.u32 %s889, 16
        %s911 = scalar_lea.vmem [#allocation4], %s910
        %v912 = vld [vmem:[%s911] sm:$0xff]
        %v913 = vld [vmem:[%s911 + $0x8] sm:$0xff]
        %v914 = vadd.f32 %v908, %v912
        %v915 = vadd.f32 %v909, %v913
        %916 = vst.msk [vmem:[#allocation2] sm:$0xff] %vm563, %v914
        %917 = vst.msk [vmem:[#allocation2 + $0x8] sm:$0xff] %vm563, %v915
        %s918 = scalar_lea.vmem [#allocation5], %s910
        %v919 = vld [vmem:[%s918] sm:$0xff]
        %v920 = vld [vmem:[%s918 + $0x8] sm:$0xff]
        %v921 = vmul.f32 %v919, %v914
        %v922 = vmul.f32 %v920, %v915
        %v923 = vsel %vm563, %v921, 0.0
        %v924 = vsel %vm563, %v922, 0.0
        %v925 = vadd.f32 %v923, %v924
        %v926 = vrot.slane %v925, 4
        %v927 = vadd.f32 %v925, %v926
        %v928 = vrot.slane %v927, 2
        %v929 = vadd.f32 %v927, %v928
        %v930 = vrot.slane %v929, 1
        %v931 = vadd.f32 %v929, %v930
        %s932 = scalar_lea.vmem [#allocation6], %s889
        %vm933 = vcmask 516096
        %934 = vst.msk [vmem:[%s932] sm:$0x1] %vm933, %v931
      $region61: #{mixer_model_forward.20} parent=51 // loop_footer
        %s893 = sadd.s32 1, %s889
      $region62: #{mixer_model_forward.20} parent=51 // loop_footer_branch
        %888 = sbr.rel target = $region58
      $region63: #{mixer_model_forward.20} parent=51 // loop_exit
        _
      %v935 = vld [vmem:[%s516] sm:$0xf]
      %v936 = vunpack.c.l.bf16 %v935
      %v937 = vld [vmem:[#allocation6] sm:$0xff]
      %v938 = vld [vmem:[%s482] sm:$0xf]
      %v939 = vunpack.c.l.bf16 %v938
      %v940 = vld [vmem:[%s523] sm:$0x1]
      %v942 = vlaneseq
      %v943 = vshrl.u32 %v942, 7
      %v944 = vsub.s32 0, %v943
      %v945 = vrot.slane %v940, %v944
      %v947 = vmul.f32 %v939, %v945
      %v948 = vadd.f32 %v937, %v947
      %v949 = vsub.f32 0.0, %v936
      %v950 = vmul.f32 %v949, 1.442695
      %v951 = vpow.pop %v950
      %v952 = vadd.f32 %v951, 1.0
      %v953 = vrcp.pop %v952
      %v954 = vmul.f32 1.0, %v953
      %v955 = vmul.f32 %v936, %v954
      %v956 = vmul.f32 %v948, %v955
      %v957 = vpack.c.bf16 %v956, %v956
      %vm958 = vcmask 519168
      %959 = vst.msk [vmem:[%s536] sm:$0xf] %vm958, %v957
      %p960 = scmp.lt.s32.totalorder %s24, 1
      %s961 = scalar_select %p960, %s24, 1
      %p962 = scmp.lt.s32.totalorder %s26, 0
      %s963 = scalar_select %p962, %s26, 0
      %p964 = scmp.lt.s32.totalorder %s25, 0
      %s965 = scalar_select %p964, %s25, 0
      %s966 = sadd.s32 %s965, %s963
      %s967 = sadd.s32 %s966, %s961
      %s968 = smul.addr %s967, 4
      %s969 = scalar_lea.vmem %s8, %s968
      // Predicated region
      $region64: #{mixer_model_forward.20} parent=51 // pred_check
        %p970 = pneg %p284
      $region65: #{mixer_model_forward.20} parent=51 // pred_check_branch
        %972 = sbr.rel (%p970) target = $region67
      $region66: #{mixer_model_forward.20} parent=51 // pred_region
        _
      $region67: #{mixer_model_forward.20} parent=51 // pred_fallthru
        _
    $region52: #{mixer_model_forward.20} parent=5 // pred_fallthru
      _
    %p973 = scmp.le.s32.totalorder 2, %s14
    // Predicated region
    $region68: #{mixer_model_forward.20} parent=5 // pred_check
      %p974 = pneg %p973
    $region69: #{mixer_model_forward.20} parent=5 // pred_check_branch
      %976 = sbr.rel (%p974) target = $region71
    $region70: #{mixer_model_forward.20} parent=5 // pred_region
      %s977 = ssub.s32 %s14, 2
      // Predicated region
      $region72: #{mixer_model_forward.20} parent=70 // pred_check
        %p978 = pneg %p290
      $region73: #{mixer_model_forward.20} parent=70 // pred_check_branch
        %980 = sbr.rel (%p978) target = $region75
      $region74: #{mixer_model_forward.20} parent=70 // pred_region
        %p981 = scmp.lt.s32.totalorder %s27, 1
        %s982 = scalar_select %p981, %s27, 1
        %p983 = scmp.lt.s32.totalorder %s29, 0
        %s984 = scalar_select %p983, %s29, 0
        %p985 = scmp.lt.s32.totalorder %s28, 0
        %s986 = scalar_select %p985, %s28, 0
        %s987 = sadd.s32 %s986, %s984
        %s988 = sadd.s32 %s987, %s982
        %s989 = smul.addr %s988, 4
        %s990 = scalar_lea.vmem %s8, %s989
      $region75: #{mixer_model_forward.20} parent=70 // pred_fallthru
        _
    $region71: #{mixer_model_forward.20} parent=5 // pred_fallthru
      _
  $region6: #{mixer_model_forward.20} parent=0 // loop_footer
    %s18 = sadd.s32 1, %s14
  $region7: #{mixer_model_forward.20} parent=0 // loop_footer_branch
    %13 = sbr.rel target = $region3
  $region8: #{mixer_model_forward.20} parent=0 // loop_exit
    _

// kernel: mixer_model_forward.26
$region0: #{mixer_model_forward.26}
  #allocation0 [shape = 'u32[]', space=smem, size = 0x4, offset = 0x4, fixed_abs, tag = 'smem constant byte address 0x4 - core index']
  #allocation1 [shape = 'u32[144,128]{1,0:T(1,128)}', space=vmem, size = 0x12000, scoped, tag = 'internal scratch']
  #allocation2 [shape = 'f32[16,32]{1,0:T(8,128)}', space=vmem, size = 0x2000, scoped, tag = 'scratch operand']
  %s0 = inlined_call_operand.vmem [shape: bf16[16,64], index: 0, kind: input, shape index: {}]
  %s1 = inlined_call_operand.vmem [shape: bf16[16,64], index: 1, kind: input, shape index: {}]
  %s2 = inlined_call_operand.vmem [shape: bf16[64,32], index: 2, kind: input, shape index: {}]
  %s3 = inlined_call_operand.vmem [shape: bf16[64,32], index: 3, kind: input, shape index: {}]
  %s4 = inlined_call_operand.vmem [shape: f32[16,32], index: 4, kind: input, shape index: {}]
  %s5 = inlined_call_operand.vmem [shape: f32[16,32], index: 5, kind: input, shape index: {}]
  %s6 = inlined_call_operand.vmem [shape: f32[16,32], index: 6, kind: output, shape index: {0}]
  %s7 = inlined_call_operand.hbm [shape: f32[16,32], index: 7, kind: output, shape index: {1}]
  %8 = xla_tuple %s6, %s7
  %s9 = sld [smem:[#allocation0]]
  $region50: #{mixer_model_forward.26} parent=0
    _
  %s11 = ssub.s32 1, %s9
  %s12 = scalar_select 0, %s11, %s9
  $region1: #{mixer_model_forward.26} parent=0
    #allocation3 [shape = 'u8[8192]{0}', space=vmem, size = 0x2000, scoped, tag = 'output window, operand 1, single buffered']
    #allocation4 [shape = 's32[1]{0}', space=sflag, size = 0x4, scoped, tag = 'scoped memory for mixer_model_forward.26']
    %13 = vsyncpa [#allocation4], 0
    // Predicated region
    $region2: #{mixer_model_forward.26} parent=1 // pred_check
      _
    $region3: #{mixer_model_forward.26} parent=1 // pred_check_branch
      %15 = sbr.rel (0) target = $region5
    $region4: #{mixer_model_forward.26} parent=1 // pred_region
      _
    $region5: #{mixer_model_forward.26} parent=1 // pred_fallthru
      _
    // Predicated region
    $region6: #{mixer_model_forward.26} parent=1 // pred_check
      _
    $region7: #{mixer_model_forward.26} parent=1 // pred_check_branch
      %17 = sbr.rel (0) target = $region9
    $region8: #{mixer_model_forward.26} parent=1 // pred_region
      _
    $region9: #{mixer_model_forward.26} parent=1 // pred_fallthru
      _
    // Predicated region
    $region10: #{mixer_model_forward.26} parent=1 // pred_check
      _
    $region11: #{mixer_model_forward.26} parent=1 // pred_check_branch
      %19 = sbr.rel (0) target = $region13
    $region12: #{mixer_model_forward.26} parent=1 // pred_region
      _
    $region13: #{mixer_model_forward.26} parent=1 // pred_fallthru
      _
    // Predicated region
    $region14: #{mixer_model_forward.26} parent=1 // pred_check
      _
    $region15: #{mixer_model_forward.26} parent=1 // pred_check_branch
      %21 = sbr.rel (0) target = $region17
    $region16: #{mixer_model_forward.26} parent=1 // pred_region
      _
    $region17: #{mixer_model_forward.26} parent=1 // pred_fallthru
      _
    // Predicated region
    $region18: #{mixer_model_forward.26} parent=1 // pred_check
      _
    $region19: #{mixer_model_forward.26} parent=1 // pred_check_branch
      %23 = sbr.rel (0) target = $region21
    $region20: #{mixer_model_forward.26} parent=1 // pred_region
      _
    $region21: #{mixer_model_forward.26} parent=1 // pred_fallthru
      _
    // Predicated region
    $region22: #{mixer_model_forward.26} parent=1 // pred_check
      _
    $region23: #{mixer_model_forward.26} parent=1 // pred_check_branch
      %25 = sbr.rel (0) target = $region25
    $region24: #{mixer_model_forward.26} parent=1 // pred_region
      _
    $region25: #{mixer_model_forward.26} parent=1 // pred_fallthru
      _
    %p27 = scmp.eq.s32.totalorder 0, 0
    // Predicated region
    $region26: #{mixer_model_forward.26} parent=1 // pred_check
      %p28 = pneg %p27
    $region27: #{mixer_model_forward.26} parent=1 // pred_check_branch
      %30 = sbr.rel (%p28) target = $region29
    $region28: #{mixer_model_forward.26} parent=1 // pred_region
      %vm31 = vcmask 261120
      %32 = vst.msk [vmem:[#allocation2] sm:$0xff] %vm31, 0.0
      %33 = vst.msk [vmem:[#allocation2 + $0x8] sm:$0xff] %vm31, 0.0
    $region29: #{mixer_model_forward.26} parent=1 // pred_fallthru
      _
    %v34 = vld [vmem:[#allocation2] sm:$0xff]
    %v35 = vld [vmem:[#allocation2 + $0x8] sm:$0xff]
    %v36 = vld [vmem:[%s0] sm:$0xf]
    %v37 = vld [vmem:[%s0 + $0x4] sm:$0xf]
    %v38 = vld [vmem:[%s2] sm:$0xf]
    %v39 = vld [vmem:[%s2 + $0x4] sm:$0xf]
    %v40 = vld [vmem:[%s2 + $0x8] sm:$0xf]
    %v41 = vld [vmem:[%s2 + $0xc] sm:$0xf]
    %v42 = vld [vmem:[%s2 + $0x10] sm:$0xf]
    %v43 = vld [vmem:[%s2 + $0x14] sm:$0xf]
    %v44 = vld [vmem:[%s2 + $0x18] sm:$0xf]
    %v45 = vld [vmem:[%s2 + $0x1c] sm:$0xf]
    %v46 = vld [vmem:[%s1] sm:$0xf]
    %v47 = vld [vmem:[%s1 + $0x4] sm:$0xf]
    %v48 = vld [vmem:[%s3] sm:$0xf]
    %v49 = vld [vmem:[%s3 + $0x4] sm:$0xf]
    %v50 = vld [vmem:[%s3 + $0x8] sm:$0xf]
    %v51 = vld [vmem:[%s3 + $0xc] sm:$0xf]
    %v52 = vld [vmem:[%s3 + $0x10] sm:$0xf]
    %v53 = vld [vmem:[%s3 + $0x14] sm:$0xf]
    %v54 = vld [vmem:[%s3 + $0x18] sm:$0xf]
    %v55 = vld [vmem:[%s3 + $0x1c] sm:$0xf]
    %v58 = vunpack.c.l.b16 %v46
    %v59 = vunpack.c.l.b16 %v47
    %v60 = vpack.c.b16 %v59, %v58
    %v69 = vunpack.c.l.b16 %v48
    %v70 = vunpack.c.l.b16 %v49
    %v71 = vunpack.c.l.b16 %v50
    %v72 = vunpack.c.l.b16 %v51
    %v73 = vunpack.c.l.b16 %v52
    %v74 = vunpack.c.l.b16 %v53
    %v75 = vunpack.c.l.b16 %v54
    %v76 = vunpack.c.l.b16 %v55
    %v77 = vpack.c.b16 %v70, %v69
    %v78 = vpack.c.b16 %v72, %v71
    %v79 = vpack.c.b16 %v74, %v73
    %v80 = vpack.c.b16 %v76, %v75
    %vm85 = vcmask 523264
    %v87 = vsel %vm85, %v60, 0
    %89 = vmatprep.subr.bf16.mxu0 0
    %90 = vmatpush1.bf16.msra.mxu0 0
    %91 = vmatprep.subr.bf16.mxu0 0
    %92 = vmatpush1.bf16.msra.mxu0 0
    %93 = vmatprep.subr.bf16.mxu0 0
    %94 = vmatpush1.bf16.msra.mxu0 0
    %95 = vmatprep.subr.bf16.mxu0 0
    %96 = vmatpush1.bf16.msra.mxu0 0
    %97 = vmatprep.subr.bf16.mxu0 0
    %98 = vmatpush1.bf16.msra.mxu0 %v80
    %99 = vmatprep.subr.bf16.mxu0 0
    %100 = vmatpush1.bf16.msra.mxu0 %v79
    %101 = vmatprep.subr.bf16.mxu0 0
    %102 = vmatpush1.bf16.msra.mxu0 %v78
    %103 = vmatprep.subr.bf16.mxu0 0
    %104 = vmatpush1.bf16.msra.mxu0 %v77
    %105 = vmatprep.subr.bf16.mxu0 0
    %106 = vmatpush2.bf16.msra.mxu0 0
    %107 = vmatprep.subr.bf16.mxu0 0
    %108 = vmatpush2.bf16.msra.mxu0 0
    %109 = vmatprep.subr.bf16.mxu0 0
    %110 = vmatpush2.bf16.msra.mxu0 0
    %111 = vmatprep.subr.bf16.mxu0 0
    %112 = vmatpush2.bf16.msra.mxu0 0
    %113 = vmatprep.subr.bf16.mxu0 0
    %114 = vmatpush2.bf16.msra.mxu0 0
    %115 = vmatprep.subr.bf16.mxu0 0
    %116 = vmatpush2.bf16.msra.mxu0 0
    %117 = vmatprep.subr.bf16.mxu0 0
    %118 = vmatpush2.bf16.msra.mxu0 0
    %119 = vmatprep.subr.bf16.mxu0 0
    %120 = vmatpush2.bf16.msra.mxu0 0
    %121 = vmatprep.mubr.bf16.mxu0 0
    %122 = vmatmul.mubr.bf16.gmra.mxu0 %v87
    %v123 = vpop.f32.mrf.mxu0
    %v124 = vadd.f32 0.0, %v123
    %v125 = vpop.f32.mrf.mxu0
    %v126 = vpop.f32.mrf.mxu0
    %v127 = vadd.f32 0.0, %v126
    %v128 = vpop.f32.mrf.mxu0
    %129 = vdwg.mxu0
    %v132 = vunpack.c.l.b16 %v36
    %v133 = vunpack.c.l.b16 %v37
    %v134 = vpack.c.b16 %v133, %v132
    %v143 = vunpack.c.l.b16 %v38
    %v144 = vunpack.c.l.b16 %v39
    %v145 = vunpack.c.l.b16 %v40
    %v146 = vunpack.c.l.b16 %v41
    %v147 = vunpack.c.l.b16 %v42
    %v148 = vunpack.c.l.b16 %v43
    %v149 = vunpack.c.l.b16 %v44
    %v150 = vunpack.c.l.b16 %v45
    %v151 = vpack.c.b16 %v144, %v143
    %v152 = vpack.c.b16 %v146, %v145
    %v153 = vpack.c.b16 %v148, %v147
    %v154 = vpack.c.b16 %v150, %v149
    %v160 = vsel %vm85, %v134, 0
    %162 = vmatprep.subr.bf16.mxu0 0
    %163 = vmatpush1.bf16.msra.mxu0 0
    %164 = vmatprep.subr.bf16.mxu0 0
    %165 = vmatpush1.bf16.msra.mxu0 0
    %166 = vmatprep.subr.bf16.mxu0 0
    %167 = vmatpush1.bf16.msra.mxu0 0
    %168 = vmatprep.subr.bf16.mxu0 0
    %169 = vmatpush1.bf16.msra.mxu0 0
    %170 = vmatprep.subr.bf16.mxu0 0
    %171 = vmatpush1.bf16.msra.mxu0 %v154
    %172 = vmatprep.subr.bf16.mxu0 0
    %173 = vmatpush1.bf16.msra.mxu0 %v153
    %174 = vmatprep.subr.bf16.mxu0 0
    %175 = vmatpush1.bf16.msra.mxu0 %v152
    %176 = vmatprep.subr.bf16.mxu0 0
    %177 = vmatpush1.bf16.msra.mxu0 %v151
    %178 = vmatprep.subr.bf16.mxu0 0
    %179 = vmatpush2.bf16.msra.mxu0 0
    %180 = vmatprep.subr.bf16.mxu0 0
    %181 = vmatpush2.bf16.msra.mxu0 0
    %182 = vmatprep.subr.bf16.mxu0 0
    %183 = vmatpush2.bf16.msra.mxu0 0
    %184 = vmatprep.subr.bf16.mxu0 0
    %185 = vmatpush2.bf16.msra.mxu0 0
    %186 = vmatprep.subr.bf16.mxu0 0
    %187 = vmatpush2.bf16.msra.mxu0 0
    %188 = vmatprep.subr.bf16.mxu0 0
    %189 = vmatpush2.bf16.msra.mxu0 0
    %190 = vmatprep.subr.bf16.mxu0 0
    %191 = vmatpush2.bf16.msra.mxu0 0
    %192 = vmatprep.subr.bf16.mxu0 0
    %193 = vmatpush2.bf16.msra.mxu0 0
    %194 = vmatprep.mubr.bf16.mxu0 0
    %195 = vmatmul.mubr.bf16.gmra.mxu0 %v160
    %v196 = vpop.f32.mrf.mxu0
    %v197 = vadd.f32 %v124, %v196
    %v198 = vpop.f32.mrf.mxu0
    %v199 = vpop.f32.mrf.mxu0
    %v200 = vadd.f32 %v127, %v199
    %v201 = vpop.f32.mrf.mxu0
    %202 = vdwg.mxu0
    %v203 = vadd.f32 %v34, %v197
    %v204 = vadd.f32 %v35, %v200
    %vm205 = vcmask 261120
    %206 = vst.msk [vmem:[#allocation2] sm:$0xff] %vm205, %v203
    %207 = vst.msk [vmem:[#allocation2 + $0x8] sm:$0xff] %vm205, %v204
    // Predicated region
    $region30: #{mixer_model_forward.26} parent=1 // pred_check
      %p208 = pneg %p27
    $region31: #{mixer_model_forward.26} parent=1 // pred_check_branch
      %210 = sbr.rel (%p208) target = $region33
    $region32: #{mixer_model_forward.26} parent=1 // pred_region
      %v211 = vld [vmem:[#allocation2] sm:$0xff]
      %v212 = vld [vmem:[#allocation2 + $0x8] sm:$0xff]
      %v213 = vmul.f32 %v211, 0.5
      %v214 = vmul.f32 %v212, 0.5
      %v215 = vld [vmem:[%s4] sm:$0xff]
      %v216 = vld [vmem:[%s4 + $0x8] sm:$0xff]
      %217 = vst.msk [vmem:[%s6] sm:$0xff] %vm205, %v213
      %218 = vst.msk [vmem:[%s6 + $0x8] sm:$0xff] %vm205, %v214
      %v219 = vsub.f32 1.0, %v215
      %v220 = vsub.f32 1.0, %v216
      %v221 = vmul.f32 %v219, %v213
      %v222 = vmul.f32 %v220, %v214
      %v223 = vld [vmem:[%s5] sm:$0xff]
      %v224 = vld [vmem:[%s5 + $0x8] sm:$0xff]
      %v225 = vmul.f32 %v215, %v223
      %v226 = vmul.f32 %v216, %v224
      %v227 = vadd.f32 %v221, %v225
      %v228 = vadd.f32 %v222, %v226
      %229 = vst.msk [vmem:[#allocation3] sm:$0xff] %vm205, %v227
      %230 = vst.msk [vmem:[#allocation3 + $0x8] sm:$0xff] %vm205, %v228
    $region33: #{mixer_model_forward.26} parent=1 // pred_fallthru
      _
    // Predicated region
    $region34: #{mixer_model_forward.26} parent=1 // pred_check
      _
    $region35: #{mixer_model_forward.26} parent=1 // pred_check_branch
      %232 = sbr.rel (0) target = $region37
    $region36: #{mixer_model_forward.26} parent=1 // pred_region
      _
    $region37: #{mixer_model_forward.26} parent=1 // pred_fallthru
      _
    // Predicated region
    $region38: #{mixer_model_forward.26} parent=1 // pred_check
      _
    $region39: #{mixer_model_forward.26} parent=1 // pred_check_branch
      %234 = sbr.rel (0) target = $region41
    $region40: #{mixer_model_forward.26} parent=1 // pred_region
      %s236 = ssub.s32 256, 256
      %237 = vsyncadd [#allocation4], %s236
      %s238 = sshll.u32 [#allocation3], 4
      %s239 = int_to_ptr.vmem [resolvable:$true] %s238
      %244 = dma.vmem_to_hbm [thread:$0]  %s239, 256, %s7, [#allocation4], 128, 128, 8
    $region41: #{mixer_model_forward.26} parent=1 // pred_fallthru
      _
    // Predicated region
    $region42: #{mixer_model_forward.26} parent=1 // pred_check
      _
    $region43: #{mixer_model_forward.26} parent=1 // pred_check_branch
      %246 = sbr.rel (0) target = $region45
    $region44: #{mixer_model_forward.26} parent=1 // pred_region
      _
    $region45: #{mixer_model_forward.26} parent=1 // pred_fallthru
      _
    // Predicated region
    $region46: #{mixer_model_forward.26} parent=1 // pred_check
      _
    $region47: #{mixer_model_forward.26} parent=1 // pred_check_branch
      %248 = sbr.rel (0) target = $region49
    $region48: #{mixer_model_forward.26} parent=1 // pred_region
      %249 = dma.done [#allocation4], 256
    $region49: #{mixer_model_forward.26} parent=1 // pred_fallthru
      _
    %250 = vsyncpa [#allocation4], 1

// kernel: mixer_model_forward.27
$region0: #{mixer_model_forward.27}
  #allocation0 [shape = 'u32[]', space=smem, size = 0x4, offset = 0x4, fixed_abs, tag = 'smem constant byte address 0x4 - core index']
  #allocation1 [shape = 'u32[144,128]{1,0:T(1,128)}', space=vmem, size = 0x12000, scoped, tag = 'internal scratch']
  %s0 = inlined_call_operand.vmem [shape: f32[16,32], index: 0, kind: input, shape index: {}]
  %s1 = inlined_call_operand.vmem [shape: f32[16,32], index: 1, kind: input, shape index: {}]
  %s2 = inlined_call_operand.vmem [shape: f32[1,32], index: 2, kind: input, shape index: {}]
  %s3 = inlined_call_operand.vmem [shape: f32[1,32], index: 3, kind: input, shape index: {}]
  %s4 = inlined_call_operand.hbm [shape: f32[16,32], index: 4, kind: output, shape index: {}]
  %s5 = sld [smem:[#allocation0]]
  $region26: #{mixer_model_forward.27} parent=0
    _
  %s7 = ssub.s32 1, %s5
  %s8 = scalar_select 0, %s7, %s5
  $region1: #{mixer_model_forward.27} parent=0
    #allocation2 [shape = 'u8[8192]{0}', space=vmem, size = 0x2000, scoped, tag = 'output window, operand 0, single buffered']
    #allocation3 [shape = 's32[1]{0}', space=sflag, size = 0x4, scoped, tag = 'scoped memory for mixer_model_forward.27']
    %9 = vsyncpa [#allocation3], 0
    // Predicated region
    $region2: #{mixer_model_forward.27} parent=1 // pred_check
      _
    $region3: #{mixer_model_forward.27} parent=1 // pred_check_branch
      %11 = sbr.rel (0) target = $region5
    $region4: #{mixer_model_forward.27} parent=1 // pred_region
      _
    $region5: #{mixer_model_forward.27} parent=1 // pred_fallthru
      _
    // Predicated region
    $region6: #{mixer_model_forward.27} parent=1 // pred_check
      _
    $region7: #{mixer_model_forward.27} parent=1 // pred_check_branch
      %13 = sbr.rel (0) target = $region9
    $region8: #{mixer_model_forward.27} parent=1 // pred_region
      _
    $region9: #{mixer_model_forward.27} parent=1 // pred_fallthru
      _
    // Predicated region
    $region10: #{mixer_model_forward.27} parent=1 // pred_check
      _
    $region11: #{mixer_model_forward.27} parent=1 // pred_check_branch
      %15 = sbr.rel (0) target = $region13
    $region12: #{mixer_model_forward.27} parent=1 // pred_region
      _
    $region13: #{mixer_model_forward.27} parent=1 // pred_fallthru
      _
    // Predicated region
    $region14: #{mixer_model_forward.27} parent=1 // pred_check
      _
    $region15: #{mixer_model_forward.27} parent=1 // pred_check_branch
      %17 = sbr.rel (0) target = $region17
    $region16: #{mixer_model_forward.27} parent=1 // pred_region
      _
    $region17: #{mixer_model_forward.27} parent=1 // pred_fallthru
      _
    %v18 = vld [vmem:[%s0] sm:$0xff]
    %v19 = vld [vmem:[%s0 + $0x8] sm:$0xff]
    %v20 = vld [vmem:[%s1] sm:$0xff]
    %v21 = vld [vmem:[%s1 + $0x8] sm:$0xff]
    %v22 = vadd.f32 %v18, %v20
    %v23 = vadd.f32 %v19, %v21
    %v24 = vld [vmem:[%s2] sm:$0x1]
    %v25 = vld [vmem:[%s3] sm:$0x1]
    %vm26 = vcmask 261120
    %v27 = vsel %vm26, %v22, 0.0
    %28 = vadd.xlane.f32.xlu0 %v27
    %v29 = vpop.xlane.xlu0 %28
    %v30 = vsel %vm26, %v23, 0.0
    %31 = vadd.xlane.f32.xlu0 %v30
    %v32 = vpop.xlane.xlu0 %31
    %v33 = vrcp.pop 32.0
    %v34 = vmul.f32 %v29, %v33
    %v35 = vmul.f32 %v32, %v33
    %v36 = vsub.f32 %v22, %v34
    %v37 = vsub.f32 %v23, %v35
    %v38 = vmul.f32 %v36, %v36
    %v39 = vmul.f32 %v37, %v37
    %v40 = vsel %vm26, %v38, 0.0
    %41 = vadd.xlane.f32.xlu0 %v40
    %v42 = vpop.xlane.xlu0 %41
    %v43 = vsel %vm26, %v39, 0.0
    %44 = vadd.xlane.f32.xlu0 %v43
    %v45 = vpop.xlane.xlu0 %44
    %v46 = vmul.f32 %v42, %v33
    %v47 = vmul.f32 %v45, %v33
    %v48 = vadd.f32 %v46, 1e-05
    %v49 = vadd.f32 %v47, 1e-05
    %v50 = vrsqrt.pop %v48
    %v51 = vrsqrt.pop %v49
    %v52 = vmul.f32 %v36, %v50
    %v53 = vmul.f32 %v37, %v51
    %v55 = vlaneseq
    %v56 = vshrl.u32 %v55, 7
    %v57 = vsub.s32 0, %v56
    %v58 = vrot.slane %v24, %v57
    %v60 = vmul.f32 %v52, %v58
    %v61 = vmul.f32 %v53, %v58
    %v63 = vlaneseq
    %v64 = vshrl.u32 %v63, 7
    %v65 = vsub.s32 0, %v64
    %v66 = vrot.slane %v25, %v65
    %v68 = vadd.f32 %v60, %v66
    %v69 = vadd.f32 %v61, %v66
    %70 = vst.msk [vmem:[#allocation2] sm:$0xff] %vm26, %v68
    %71 = vst.msk [vmem:[#allocation2 + $0x8] sm:$0xff] %vm26, %v69
    // Predicated region
    $region18: #{mixer_model_forward.27} parent=1 // pred_check
      _
    $region19: #{mixer_model_forward.27} parent=1 // pred_check_branch
      %73 = sbr.rel (0) target = $region21
    $region20: #{mixer_model_forward.27} parent=1 // pred_region
      %s75 = ssub.s32 256, 256
      %76 = vsyncadd [#allocation3], %s75
      %s77 = sshll.u32 [#allocation2], 4
      %s78 = int_to_ptr.vmem [resolvable:$true] %s77
      %83 = dma.vmem_to_hbm [thread:$0]  %s78, 256, %s4, [#allocation3], 128, 128, 8
    $region21: #{mixer_model_forward.27} parent=1 // pred_fallthru
      _
    // Predicated region
    $region22: #{mixer_model_forward.27} parent=1 // pred_check
      _
    $region23: #{mixer_model_forward.27} parent=1 // pred_check_branch
      %85 = sbr.rel (0) target = $region25
    $region24: #{mixer_model_forward.27} parent=1 // pred_region
      %86 = dma.done [#allocation3], 256
    $region25: #{mixer_model_forward.27} parent=1 // pred_fallthru
      _
    %87 = vsyncpa [#allocation3], 1

</llo_original>
